<compile_context>
chip_gen: v6e
topology: v6e:2x2x1
jax: 0.10.0
libtpu: 0.0.40
codegen_flags: <defaults>
</compile_context>

<pallas_src>
import jax
import jax.numpy as jnp
from jax import lax
from jax.experimental import pallas as pl
from jax.experimental.pallas import tpu as pltpu


def _round_up(x, m):
    return (x + m - 1) // m * m


def _pad_axis(x, axis, new_size):
    if x.shape[axis] == new_size:
        return x
    pad = [(0, 0)] * x.ndim
    pad[axis] = (0, new_size - x.shape[axis])
    return jnp.pad(x, pad)


def _pad_gate_blocks(w, H, Hp):
    """(..., 4H) in [i,f,g,o] order -> (..., 4*Hp); each gate block zero-padded."""
    if H == Hp:
        return w
    parts = [_pad_axis(w[..., k * H:(k + 1) * H], -1, Hp) for k in range(4)]
    return jnp.concatenate(parts, axis=-1)


def char_decoder_kernel(x_ref, h0_ref, c0_ref,
                        w_ih_ref, w_hh_ref, b_ref,
                        w_out_ref, b_out_ref,
                        scores_ref, h_out_ref, c_out_ref,
                        xproj_ref, h_all_ref):
    """One batch tile: full L-step LSTM recurrence in a single grid step."""
    Bt, Hp = h0_ref.shape
    L = x_ref.shape[0] // Bt

    # (1) Hoisted input projection + bias: one dense MXU matmul with M = L*Bt
    #     (near-dense MXU utilisation) instead of L tiny dependent matmuls.
    xproj_ref[...] = (
        jnp.dot(x_ref[...], w_ih_ref[...], preferred_element_type=jnp.float32)
        + b_ref[...])

    # (2) Serial recurrence: ONE dependent matmul per step, weights streamed
    #     from their VMEM refs (not pinned in vregs across the unrolled body).
    def step(t, carry):
        h, c = carry
        row = pl.multiple_of(t * Bt, Bt)
        gates = xproj_ref[pl.ds(row, Bt), :] + jnp.dot(
            h, w_hh_ref[...], preferred_element_type=jnp.float32)
        # Hp is a multiple of 128 -> every gate slice is lane-aligned (free).
        i_g = jax.nn.sigmoid(gates[:, 0 * Hp:1 * Hp])
        f_g = jax.nn.sigmoid(gates[:, 1 * Hp:2 * Hp])
        g_g = jnp.tanh(gates[:, 2 * Hp:3 * Hp])
        o_g = jax.nn.sigmoid(gates[:, 3 * Hp:4 * Hp])
        c_new = f_g * c + i_g * g_g
        h_new = o_g * jnp.tanh(c_new)
        # Stash h_t for the post-loop projection (rows are sublane-aligned).
        h_all_ref[pl.ds(row, Bt), :] = h_new
        return h_new, c_new

    h_fin, c_fin = lax.fori_loop(0, L, step, (h0_ref[...], c0_ref[...]),
                                 unroll=min(L, 8))
    h_out_ref[...] = h_fin
    c_out_ref[...] = c_fin

    # (3) Output projection hoisted off the serial path: one lane-dense matmul.
    scores_ref[...] = (
        jnp.dot(h_all_ref[...], w_out_ref[...], preferred_element_type=jnp.float32)
        + b_out_ref[...])


def _choose_batch_tile(Bp, L, Ep, Hp, Vp, budget_bytes=8 << 20):
    """Largest batch tile (multiple of 8, divides Bp) whose per-tile working
    set (x, xproj, h_all, scores rows) stays under budget_bytes (v7x-safe)."""
    per_row_bytes = 4 * (Ep + 4 * Hp + Hp + Vp)
    bt = Bp
    while bt > 8 and bt % 16 == 0 and L * bt * per_row_bytes > budget_bytes:
        bt //= 2
    return bt


def char_decoder_forward(input_ids, params, dec_hidden=None):
    """Equivalent of CharDecoder.forward.

    input_ids : (L, B) int32
    returns   : scores (L, B, V), (h_n, c_n) each (1, B, H)
    """
    emb = params["embedding"]          # (V, E), padding row already zero
    w_ih_t = params["w_ih_t"]          # (E, 4H)
    w_hh_t = params["w_hh_t"]          # (H, 4H)
    b = params["b"]                    # (1, 4H) = b_ih + b_hh
    w_out_t = params["w_out_t"]        # (H, V)
    b_out = params["b_out"]            # (1, V)

    L, B = input_ids.shape
    V, E = emb.shape
    H = w_hh_t.shape[0]

    Bp = _round_up(B, 8)       # sublane alignment
    Hp = _round_up(H, 128)     # lane alignment -> lane-aligned gate slices
    Ep = _round_up(E, 128)
    Vp = _round_up(V, 128)     # lane-dense (unmasked) scores store
    # TODO(synk): for tiny H (H=32 -> 4H=128) evaluate packing all four gates
    # into one 128-lane vreg instead of per-gate padding each gate to 128.

    Bt = _choose_batch_tile(Bp, L, Ep, Hp, Vp)
    Gb = Bp // Bt

    # Embedding gather stays as XLA glue (E, V tiny).
    # TODO(synk): fuse the gather via scalar prefetch + pl.Element if E/L grow.
    x_emb = jnp.take(emb, input_ids, axis=0).astype(jnp.float32)        # (L, B, E)
    x_emb = _pad_axis(_pad_axis(x_emb, 1, Bp), 2, Ep)                   # (L, Bp, Ep)
    # Re-layout: each batch tile becomes a contiguous (L*Bt, Ep) time-major slab.
    x_tiles = (x_emb.reshape(L, Gb, Bt, Ep)
               .transpose(1, 0, 2, 3)
               .reshape(Gb, L * Bt, Ep))

    if dec_hidden is None:
        h0 = jnp.zeros((1, B, H), jnp.float32)
        c0 = jnp.zeros((1, B, H), jnp.float32)
    else:
        h0, c0 = dec_hidden
    h0p = _pad_axis(_pad_axis(h0[0].astype(jnp.float32), 0, Bp), 1, Hp)  # (Bp, Hp)
    c0p = _pad_axis(_pad_axis(c0[0].astype(jnp.float32), 0, Bp), 1, Hp)  # (Bp, Hp)

    # Per-gate zero padding keeps padded hidden LANES exactly zero throughout.
    w_ih_p = _pad_axis(_pad_gate_blocks(w_ih_t, H, Hp), 0, Ep)    # (Ep, 4Hp)
    w_hh_p = _pad_axis(_pad_gate_blocks(w_hh_t, H, Hp), 0, Hp)    # (Hp, 4Hp)
    b_p = _pad_gate_blocks(b, H, Hp)                              # (1, 4Hp)
    w_out_p = _pad_axis(_pad_axis(w_out_t, 1, Vp), 0, Hp)         # (Hp, Vp)
    b_out_p = _pad_axis(b_out, 1, Vp)                             # (1, Vp)
    # TODO(synk): on v6e/v7x cast matmul operands to bf16 (f32 accumulation)
    # once accuracy tolerance vs. the f32 reference allows it.

    # Explicit scoped-VMEM budget (v5e default is only 16 MiB scoped).
    weight_bytes = 4 * (Ep * 4 * Hp + Hp * 4 * Hp + 4 * Hp + Hp * Vp + Vp)
    tile_io_bytes = 4 * (L * Bt * (Ep + Vp) + 4 * Bt * Hp)
    scratch_bytes = 4 * (L * Bt * 5 * Hp)          # xproj (4Hp) + h_all (Hp)
    vmem_limit = min(2 * (weight_bytes + tile_io_bytes) + scratch_bytes + (4 << 20),
                     64 << 20)

    grid_spec = pltpu.PrefetchScalarGridSpec(
        num_scalar_prefetch=0,
        grid=(Gb,),
        in_specs=[
            pl.BlockSpec((None, L * Bt, Ep), lambda g: (g, 0, 0)),   # x tile
            pl.BlockSpec((Bt, Hp), lambda g: (g, 0)),                # h0 tile
            pl.BlockSpec((Bt, Hp), lambda g: (g, 0)),                # c0 tile
            pl.BlockSpec((Ep, 4 * Hp), lambda g: (0, 0)),            # W_ih^T
            pl.BlockSpec((Hp, 4 * Hp), lambda g: (0, 0)),            # W_hh^T
            pl.BlockSpec((1, 4 * Hp), lambda g: (0, 0)),             # b_ih + b_hh
            pl.BlockSpec((Hp, Vp), lambda g: (0, 0)),                # W_out^T
            pl.BlockSpec((1, Vp), lambda g: (0, 0)),                 # b_out
        ],
        out_specs=(
            pl.BlockSpec((None, L * Bt, Vp), lambda g: (g, 0, 0)),   # scores tile
            pl.BlockSpec((Bt, Hp), lambda g: (g, 0)),                # h_n tile
            pl.BlockSpec((Bt, Hp), lambda g: (g, 0)),                # c_n tile
        ),
        scratch_shapes=[
            pltpu.VMEM((L * Bt, 4 * Hp), jnp.float32),   # hoisted x @ W_ih + b
            pltpu.VMEM((L * Bt, Hp), jnp.float32),       # h_t history
        ],
    )

    scores_tiles, h_np, c_np = pl.pallas_call(
        char_decoder_kernel,
        out_shape=(jax.ShapeDtypeStruct((Gb, L * Bt, Vp), jnp.float32),
                   jax.ShapeDtypeStruct((Bp, Hp), jnp.float32),
                   jax.ShapeDtypeStruct((Bp, Hp), jnp.float32)),
        grid_spec=grid_spec,
        compiler_params=pltpu.CompilerParams(
            dimension_semantics=("parallel",),      # batch tiles are independent
            vmem_limit_bytes=int(vmem_limit)),
    )(x_tiles, h0p, c0p, w_ih_p, w_hh_p, b_p, w_out_p, b_out_p)

    scores = (scores_tiles.reshape(Gb, L, Bt, Vp)
              .transpose(1, 0, 2, 3)
              .reshape(L, Bp, Vp)[:, :B, :V])
    h_n = h_np[:B, :H][None]
    c_n = c_np[:B, :H][None]
    return scores, (h_n, c_n)


def init_params(key, vocab_size, char_emb_size, hidden_size, pad_idx=0):
    """Deterministic synthetic parameters (shapes match nn.LSTM / Linear / Embedding)."""
    ks = jax.random.split(key, 7)
    k = 1.0 / jnp.sqrt(hidden_size)

    emb = jax.random.normal(ks[0], (vocab_size, char_emb_size), jnp.float32)
    emb = emb.at[pad_idx].set(0.0)  # padding_idx row is zero

    w_ih = jax.random.uniform(ks[1], (4 * hidden_size, char_emb_size),
                              jnp.float32, -k, k)
    w_hh = jax.random.uniform(ks[2], (4 * hidden_size, hidden_size),
                              jnp.float32, -k, k)
    b_ih = jax.random.uniform(ks[3], (4 * hidden_size,), jnp.float32, -k, k)
    b_hh = jax.random.uniform(ks[4], (4 * hidden_size,), jnp.float32, -k, k)

    w_out = jax.random.uniform(ks[5], (vocab_size, hidden_size),
                               jnp.float32, -k, k)
    b_out = jax.random.uniform(ks[6], (vocab_size,), jnp.float32, -k, k)

    return {
        "embedding": emb,
        "w_ih_t": w_ih.T,                       # (E, 4H)
        "w_hh_t": w_hh.T,                       # (H, 4H)
        "b": (b_ih + b_hh)[None, :],            # (1, 4H)
        "w_out_t": w_out.T,                     # (H, V)
        "b_out": b_out[None, :],                # (1, V)
    }


def reference_forward(input_ids, params, dec_hidden):
    """Pure-JAX reference (lax.scan LSTM) for correctness checking."""
    x_emb = jnp.take(params["embedding"], input_ids, axis=0)
    h, c = dec_hidden[0][0], dec_hidden[1][0]
    H = h.shape[-1]

    def step(carry, x):
        h, c = carry
        gates = x @ params["w_ih_t"] + h @ params["w_hh_t"] + params["b"]
        i = jax.nn.sigmoid(gates[:, :H])
        f = jax.nn.sigmoid(gates[:, H:2 * H])
        g = jnp.tanh(gates[:, 2 * H:3 * H])
        o = jax.nn.sigmoid(gates[:, 3 * H:])
        c = f * c + i * g
        h = o * jnp.tanh(c)
        return (h, c), h @ params["w_out_t"] + params["b_out"]

    (h, c), scores = jax.lax.scan(step, (h, c), x_emb)
    return scores, (h[None], c[None])


# TODO(synk): train_forward (summed CE loss w/ ignore_index) and decode_greedy
# (host-side string assembly) are not part of the kernel; only forward() is.

if __name__ == "__main__":
    L, B = 8, 4            # (length, batch)
    HIDDEN = 32
    CHAR_EMB = 50
    VOCAB = 30
    PAD_IDX = 0

    key = jax.random.PRNGKey(0)
    k_par, k_ids, k_h, k_c = jax.random.split(key, 4)

    params = init_params(k_par, VOCAB, CHAR_EMB, HIDDEN, PAD_IDX)
    input_ids = jax.random.randint(k_ids, (L, B), 0, VOCAB, jnp.int32)
    h0 = jax.random.normal(k_h, (1, B, HIDDEN), jnp.float32)
    c0 = jax.random.normal(k_c, (1, B, HIDDEN), jnp.float32)

    scores, (h_n, c_n) = char_decoder_forward(input_ids, params, (h0, c0))
    jax.block_until_ready((scores, h_n, c_n))

    ref_scores, (ref_h, ref_c) = reference_forward(input_ids, params, (h0, c0))

    assert scores.shape == (L, B, VOCAB)
    assert h_n.shape == (1, B, HIDDEN) and c_n.shape == (1, B, HIDDEN)
    assert jnp.allclose(scores, ref_scores, atol=1e-4, rtol=1e-4)
    assert jnp.allclose(h_n, ref_h, atol=1e-4, rtol=1e-4)
    assert jnp.allclose(c_n, ref_c, atol=1e-4, rtol=1e-4)

    # Also exercise the dec_hidden=None path (zero initial state).
    scores0, (h0_n, c0_n) = char_decoder_forward(input_ids, params, None)
    zero_hidden = (jnp.zeros((1, B, HIDDEN)), jnp.zeros((1, B, HIDDEN)))
    ref_scores0, (ref_h0, ref_c0) = reference_forward(input_ids, params, zero_hidden)
    assert jnp.allclose(scores0, ref_scores0, atol=1e-4, rtol=1e-4)
    assert jnp.allclose(h0_n, ref_h0, atol=1e-4, rtol=1e-4)
    assert jnp.allclose(c0_n, ref_c0, atol=1e-4, rtol=1e-4)

    print("KERNEL_OK")
</pallas_src>

<mosaic_0001>
module attributes {stable_mosaic.version = 11 : i64} {
  func.func @char_decoder_kernel(%arg0: i32, %arg1: memref<1x64x128xf32, #tpu.memory_space<vmem>>, %arg2: memref<8x128xf32, #tpu.memory_space<vmem>>, %arg3: memref<8x128xf32, #tpu.memory_space<vmem>>, %arg4: memref<128x512xf32, #tpu.memory_space<vmem>>, %arg5: memref<128x512xf32, #tpu.memory_space<vmem>>, %arg6: memref<1x512xf32, #tpu.memory_space<vmem>>, %arg7: memref<128x128xf32, #tpu.memory_space<vmem>>, %arg8: memref<1x128xf32, #tpu.memory_space<vmem>>, %arg9: memref<1x64x128xf32, #tpu.memory_space<vmem>>, %arg10: memref<8x128xf32, #tpu.memory_space<vmem>>, %arg11: memref<8x128xf32, #tpu.memory_space<vmem>>, %arg12: memref<64x512xf32, #tpu.memory_space<vmem>>, %arg13: memref<64x128xf32, #tpu.memory_space<vmem>>) attributes {dimension_semantics = [#tpu.dimension_semantics<parallel>], iteration_bounds = array<i64: 1>, scalar_prefetch = 0 : i64, scratch_operands = 2 : i64, tpu.core_type = #tpu.core_type<tc>, window_params = [{transform_indices = @transform_0, window_bounds = array<i64: 1, 64, 128>}, {transform_indices = @transform_1, window_bounds = array<i64: 8, 128>}, {transform_indices = @transform_2, window_bounds = array<i64: 8, 128>}, {pipeline_mode = #tpu.pipeline_mode<synchronous>, transform_indices = @transform_3, window_bounds = array<i64: 128, 512>}, {pipeline_mode = #tpu.pipeline_mode<synchronous>, transform_indices = @transform_4, window_bounds = array<i64: 128, 512>}, {pipeline_mode = #tpu.pipeline_mode<synchronous>, transform_indices = @transform_5, window_bounds = array<i64: 1, 512>}, {pipeline_mode = #tpu.pipeline_mode<synchronous>, transform_indices = @transform_6, window_bounds = array<i64: 128, 128>}, {pipeline_mode = #tpu.pipeline_mode<synchronous>, transform_indices = @transform_7, window_bounds = array<i64: 1, 128>}, {transform_indices = @transform_8, window_bounds = array<i64: 1, 64, 128>}, {transform_indices = @transform_9, window_bounds = array<i64: 8, 128>}, {transform_indices = @transform_10, window_bounds = array<i64: 8, 128>}]} {
    %c0 = arith.constant 0 : index
    %c0_0 = arith.constant 0 : index
    %c0_1 = arith.constant 0 : index
    %0 = vector.load %arg1[%c0, %c0_0, %c0_1] : memref<1x64x128xf32, #tpu.memory_space<vmem>>, vector<1x64x128xf32>
    %1 = vector.shape_cast %0 : vector<1x64x128xf32> to vector<64x128xf32>
    %c0_2 = arith.constant 0 : index
    %c0_3 = arith.constant 0 : index
    %2 = vector.load %arg4[%c0_2, %c0_3] : memref<128x512xf32, #tpu.memory_space<vmem>>, vector<128x512xf32>
    %cst = arith.constant dense<0.000000e+00> : vector<64x512xf32>
    %3 = tpu.matmul %1, %2, %cst {dimension_numbers = #tpu.dot_dimension_numbers<[1], [0], [0], [1], [0, 0, 1, 1], [], []>} : vector<64x128xf32>, vector<128x512xf32>, vector<64x512xf32> -> vector<64x512xf32>
    %c0_4 = arith.constant 0 : index
    %c0_5 = arith.constant 0 : index
    %4 = vector.load %arg6[%c0_4, %c0_5] : memref<1x512xf32, #tpu.memory_space<vmem>>, vector<1x512xf32>
    %5 = vector.broadcast %4 : vector<1x512xf32> to vector<64x512xf32>
    %6 = arith.addf %3, %5 : vector<64x512xf32>
    %c0_6 = arith.constant 0 : index
    %c0_7 = arith.constant 0 : index
    %7 = vector.load %arg12[%c0_6, %c0_7] : memref<64x512xf32, #tpu.memory_space<vmem>>, vector<64x512xf32>
    tpu.vector_store %arg12[%c0_6, %c0_7], %6 {strides = array<i32>} : memref<64x512xf32, #tpu.memory_space<vmem>>, vector<64x512xf32>,
    %c0_8 = arith.constant 0 : index
    %c0_9 = arith.constant 0 : index
    %8 = vector.load %arg2[%c0_8, %c0_9] : memref<8x128xf32, #tpu.memory_space<vmem>>, vector<8x128xf32>
    %c0_10 = arith.constant 0 : index
    %c0_11 = arith.constant 0 : index
    %9 = vector.load %arg3[%c0_10, %c0_11] : memref<8x128xf32, #tpu.memory_space<vmem>>, vector<8x128xf32>
    %c0_i32 = arith.constant 0 : i32
    %c8_i32 = arith.constant 8 : i32
    %10 = arith.muli %c0_i32, %c8_i32 : i32
    %11 = tpu.assume_multiple %10, 8 : i32
    %12 = arith.index_cast %11 : i32 to index
    %c0_12 = arith.constant 0 : index
    %13 = vector.load %arg12[%12, %c0_12] : memref<64x512xf32, #tpu.memory_space<vmem>>, vector<8x512xf32>
    %c0_13 = arith.constant 0 : index
    %c0_14 = arith.constant 0 : index
    %14 = vector.load %arg5[%c0_13, %c0_14] : memref<128x512xf32, #tpu.memory_space<vmem>>, vector<128x512xf32>
    %cst_15 = arith.constant dense<0.000000e+00> : vector<8x512xf32>
    %15 = tpu.matmul %8, %14, %cst_15 {dimension_numbers = #tpu.dot_dimension_numbers<[1], [0], [0], [1], [0, 0, 1, 1], [], []>} : vector<8x128xf32>, vector<128x512xf32>, vector<8x512xf32> -> vector<8x512xf32>
    %16 = arith.addf %13, %15 : vector<8x512xf32>
    %17 = vector.extract_strided_slice %16 {offsets = [0, 0], sizes = [8, 128], strides = [1, 1]} : vector<8x512xf32> to vector<8x128xf32>
    %18 = arith.negf %17 : vector<8x128xf32>
    %19 = math.exp %18 : vector<8x128xf32>
    %cst_16 = arith.constant 1.000000e+00 : f32
    %20 = vector.broadcast %cst_16 : f32 to vector<8x128xf32>
    %21 = arith.addf %20, %19 : vector<8x128xf32>
    %22 = arith.divf %20, %21 : vector<8x128xf32>
    %23 = vector.extract_strided_slice %16 {offsets = [0, 128], sizes = [8, 128], strides = [1, 1]} : vector<8x512xf32> to vector<8x128xf32>
    %24 = arith.negf %23 : vector<8x128xf32>
    %25 = math.exp %24 : vector<8x128xf32>
    %cst_17 = arith.constant 1.000000e+00 : f32
    %26 = vector.broadcast %cst_17 : f32 to vector<8x128xf32>
    %27 = arith.addf %26, %25 : vector<8x128xf32>
    %28 = arith.divf %26, %27 : vector<8x128xf32>
    %29 = vector.extract_strided_slice %16 {offsets = [0, 256], sizes = [8, 128], strides = [1, 1]} : vector<8x512xf32> to vector<8x128xf32>
    %30 = math.tanh %29 : vector<8x128xf32>
    %31 = vector.extract_strided_slice %16 {offsets = [0, 384], sizes = [8, 128], strides = [1, 1]} : vector<8x512xf32> to vector<8x128xf32>
    %32 = arith.negf %31 : vector<8x128xf32>
    %33 = math.exp %32 : vector<8x128xf32>
    %cst_18 = arith.constant 1.000000e+00 : f32
    %34 = vector.broadcast %cst_18 : f32 to vector<8x128xf32>
    %35 = arith.addf %34, %33 : vector<8x128xf32>
    %36 = arith.divf %34, %35 : vector<8x128xf32>
    %37 = arith.mulf %28, %9 : vector<8x128xf32>
    %38 = arith.mulf %22, %30 : vector<8x128xf32>
    %39 = arith.addf %37, %38 : vector<8x128xf32>
    %40 = math.tanh %39 : vector<8x128xf32>
    %41 = arith.mulf %36, %40 : vector<8x128xf32>
    %42 = arith.index_cast %11 : i32 to index
    %c0_19 = arith.constant 0 : index
    %43 = vector.load %arg13[%42, %c0_19] : memref<64x128xf32, #tpu.memory_space<vmem>>, vector<8x128xf32>
    tpu.vector_store %arg13[%42, %c0_19], %41 {strides = array<i32>} : memref<64x128xf32, #tpu.memory_space<vmem>>, vector<8x128xf32>,
    %c1_i32 = arith.constant 1 : i32
    %c8_i32_20 = arith.constant 8 : i32
    %44 = arith.muli %c1_i32, %c8_i32_20 : i32
    %45 = tpu.assume_multiple %44, 8 : i32
    %46 = arith.index_cast %45 : i32 to index
    %c0_21 = arith.constant 0 : index
    %47 = vector.load %arg12[%46, %c0_21] : memref<64x512xf32, #tpu.memory_space<vmem>>, vector<8x512xf32>
    %c0_22 = arith.constant 0 : index
    %c0_23 = arith.constant 0 : index
    %48 = vector.load %arg5[%c0_22, %c0_23] : memref<128x512xf32, #tpu.memory_space<vmem>>, vector<128x512xf32>
    %cst_24 = arith.constant dense<0.000000e+00> : vector<8x512xf32>
    %49 = tpu.matmul %41, %48, %cst_24 {dimension_numbers = #tpu.dot_dimension_numbers<[1], [0], [0], [1], [0, 0, 1, 1], [], []>} : vector<8x128xf32>, vector<128x512xf32>, vector<8x512xf32> -> vector<8x512xf32>
    %50 = arith.addf %47, %49 : vector<8x512xf32>
    %51 = vector.extract_strided_slice %50 {offsets = [0, 0], sizes = [8, 128], strides = [1, 1]} : vector<8x512xf32> to vector<8x128xf32>
    %52 = arith.negf %51 : vector<8x128xf32>
    %53 = math.exp %52 : vector<8x128xf32>
    %cst_25 = arith.constant 1.000000e+00 : f32
    %54 = vector.broadcast %cst_25 : f32 to vector<8x128xf32>
    %55 = arith.addf %54, %53 : vector<8x128xf32>
    %56 = arith.divf %54, %55 : vector<8x128xf32>
    %57 = vector.extract_strided_slice %50 {offsets = [0, 128], sizes = [8, 128], strides = [1, 1]} : vector<8x512xf32> to vector<8x128xf32>
    %58 = arith.negf %57 : vector<8x128xf32>
    %59 = math.exp %58 : vector<8x128xf32>
    %cst_26 = arith.constant 1.000000e+00 : f32
    %60 = vector.broadcast %cst_26 : f32 to vector<8x128xf32>
    %61 = arith.addf %60, %59 : vector<8x128xf32>
    %62 = arith.divf %60, %61 : vector<8x128xf32>
    %63 = vector.extract_strided_slice %50 {offsets = [0, 256], sizes = [8, 128], strides = [1, 1]} : vector<8x512xf32> to vector<8x128xf32>
    %64 = math.tanh %63 : vector<8x128xf32>
    %65 = vector.extract_strided_slice %50 {offsets = [0, 384], sizes = [8, 128], strides = [1, 1]} : vector<8x512xf32> to vector<8x128xf32>
    %66 = arith.negf %65 : vector<8x128xf32>
    %67 = math.exp %66 : vector<8x128xf32>
    %cst_27 = arith.constant 1.000000e+00 : f32
    %68 = vector.broadcast %cst_27 : f32 to vector<8x128xf32>
    %69 = arith.addf %68, %67 : vector<8x128xf32>
    %70 = arith.divf %68, %69 : vector<8x128xf32>
    %71 = arith.mulf %62, %39 : vector<8x128xf32>
    %72 = arith.mulf %56, %64 : vector<8x128xf32>
    %73 = arith.addf %71, %72 : vector<8x128xf32>
    %74 = math.tanh %73 : vector<8x128xf32>
    %75 = arith.mulf %70, %74 : vector<8x128xf32>
    %76 = arith.index_cast %45 : i32 to index
    %c0_28 = arith.constant 0 : index
    %77 = vector.load %arg13[%76, %c0_28] : memref<64x128xf32, #tpu.memory_space<vmem>>, vector<8x128xf32>
    tpu.vector_store %arg13[%76, %c0_28], %75 {strides = array<i32>} : memref<64x128xf32, #tpu.memory_space<vmem>>, vector<8x128xf32>,
    %c2_i32 = arith.constant 2 : i32
    %c8_i32_29 = arith.constant 8 : i32
    %78 = arith.muli %c2_i32, %c8_i32_29 : i32
    %79 = tpu.assume_multiple %78, 8 : i32
    %80 = arith.index_cast %79 : i32 to index
    %c0_30 = arith.constant 0 : index
    %81 = vector.load %arg12[%80, %c0_30] : memref<64x512xf32, #tpu.memory_space<vmem>>, vector<8x512xf32>
    %c0_31 = arith.constant 0 : index
    %c0_32 = arith.constant 0 : index
    %82 = vector.load %arg5[%c0_31, %c0_32] : memref<128x512xf32, #tpu.memory_space<vmem>>, vector<128x512xf32>
    %cst_33 = arith.constant dense<0.000000e+00> : vector<8x512xf32>
    %83 = tpu.matmul %75, %82, %cst_33 {dimension_numbers = #tpu.dot_dimension_numbers<[1], [0], [0], [1], [0, 0, 1, 1], [], []>} : vector<8x128xf32>, vector<128x512xf32>, vector<8x512xf32> -> vector<8x512xf32>
    %84 = arith.addf %81, %83 : vector<8x512xf32>
    %85 = vector.extract_strided_slice %84 {offsets = [0, 0], sizes = [8, 128], strides = [1, 1]} : vector<8x512xf32> to vector<8x128xf32>
    %86 = arith.negf %85 : vector<8x128xf32>
    %87 = math.exp %86 : vector<8x128xf32>
    %cst_34 = arith.constant 1.000000e+00 : f32
    %88 = vector.broadcast %cst_34 : f32 to vector<8x128xf32>
    %89 = arith.addf %88, %87 : vector<8x128xf32>
    %90 = arith.divf %88, %89 : vector<8x128xf32>
    %91 = vector.extract_strided_slice %84 {offsets = [0, 128], sizes = [8, 128], strides = [1, 1]} : vector<8x512xf32> to vector<8x128xf32>
    %92 = arith.negf %91 : vector<8x128xf32>
    %93 = math.exp %92 : vector<8x128xf32>
    %cst_35 = arith.constant 1.000000e+00 : f32
    %94 = vector.broadcast %cst_35 : f32 to vector<8x128xf32>
    %95 = arith.addf %94, %93 : vector<8x128xf32>
    %96 = arith.divf %94, %95 : vector<8x128xf32>
    %97 = vector.extract_strided_slice %84 {offsets = [0, 256], sizes = [8, 128], strides = [1, 1]} : vector<8x512xf32> to vector<8x128xf32>
    %98 = math.tanh %97 : vector<8x128xf32>
    %99 = vector.extract_strided_slice %84 {offsets = [0, 384], sizes = [8, 128], strides = [1, 1]} : vector<8x512xf32> to vector<8x128xf32>
    %100 = arith.negf %99 : vector<8x128xf32>
    %101 = math.exp %100 : vector<8x128xf32>
    %cst_36 = arith.constant 1.000000e+00 : f32
    %102 = vector.broadcast %cst_36 : f32 to vector<8x128xf32>
    %103 = arith.addf %102, %101 : vector<8x128xf32>
    %104 = arith.divf %102, %103 : vector<8x128xf32>
    %105 = arith.mulf %96, %73 : vector<8x128xf32>
    %106 = arith.mulf %90, %98 : vector<8x128xf32>
    %107 = arith.addf %105, %106 : vector<8x128xf32>
    %108 = math.tanh %107 : vector<8x128xf32>
    %109 = arith.mulf %104, %108 : vector<8x128xf32>
    %110 = arith.index_cast %79 : i32 to index
    %c0_37 = arith.constant 0 : index
    %111 = vector.load %arg13[%110, %c0_37] : memref<64x128xf32, #tpu.memory_space<vmem>>, vector<8x128xf32>
    tpu.vector_store %arg13[%110, %c0_37], %109 {strides = array<i32>} : memref<64x128xf32, #tpu.memory_space<vmem>>, vector<8x128xf32>,
    %c3_i32 = arith.constant 3 : i32
    %c8_i32_38 = arith.constant 8 : i32
    %112 = arith.muli %c3_i32, %c8_i32_38 : i32
    %113 = tpu.assume_multiple %112, 8 : i32
    %114 = arith.index_cast %113 : i32 to index
    %c0_39 = arith.constant 0 : index
    %115 = vector.load %arg12[%114, %c0_39] : memref<64x512xf32, #tpu.memory_space<vmem>>, vector<8x512xf32>
    %c0_40 = arith.constant 0 : index
    %c0_41 = arith.constant 0 : index
    %116 = vector.load %arg5[%c0_40, %c0_41] : memref<128x512xf32, #tpu.memory_space<vmem>>, vector<128x512xf32>
    %cst_42 = arith.constant dense<0.000000e+00> : vector<8x512xf32>
    %117 = tpu.matmul %109, %116, %cst_42 {dimension_numbers = #tpu.dot_dimension_numbers<[1], [0], [0], [1], [0, 0, 1, 1], [], []>} : vector<8x128xf32>, vector<128x512xf32>, vector<8x512xf32> -> vector<8x512xf32>
    %118 = arith.addf %115, %117 : vector<8x512xf32>
    %119 = vector.extract_strided_slice %118 {offsets = [0, 0], sizes = [8, 128], strides = [1, 1]} : vector<8x512xf32> to vector<8x128xf32>
    %120 = arith.negf %119 : vector<8x128xf32>
    %121 = math.exp %120 : vector<8x128xf32>
    %cst_43 = arith.constant 1.000000e+00 : f32
    %122 = vector.broadcast %cst_43 : f32 to vector<8x128xf32>
    %123 = arith.addf %122, %121 : vector<8x128xf32>
    %124 = arith.divf %122, %123 : vector<8x128xf32>
    %125 = vector.extract_strided_slice %118 {offsets = [0, 128], sizes = [8, 128], strides = [1, 1]} : vector<8x512xf32> to vector<8x128xf32>
    %126 = arith.negf %125 : vector<8x128xf32>
    %127 = math.exp %126 : vector<8x128xf32>
    %cst_44 = arith.constant 1.000000e+00 : f32
    %128 = vector.broadcast %cst_44 : f32 to vector<8x128xf32>
    %129 = arith.addf %128, %127 : vector<8x128xf32>
    %130 = arith.divf %128, %129 : vector<8x128xf32>
    %131 = vector.extract_strided_slice %118 {offsets = [0, 256], sizes = [8, 128], strides = [1, 1]} : vector<8x512xf32> to vector<8x128xf32>
    %132 = math.tanh %131 : vector<8x128xf32>
    %133 = vector.extract_strided_slice %118 {offsets = [0, 384], sizes = [8, 128], strides = [1, 1]} : vector<8x512xf32> to vector<8x128xf32>
    %134 = arith.negf %133 : vector<8x128xf32>
    %135 = math.exp %134 : vector<8x128xf32>
    %cst_45 = arith.constant 1.000000e+00 : f32
    %136 = vector.broadcast %cst_45 : f32 to vector<8x128xf32>
    %137 = arith.addf %136, %135 : vector<8x128xf32>
    %138 = arith.divf %136, %137 : vector<8x128xf32>
    %139 = arith.mulf %130, %107 : vector<8x128xf32>
    %140 = arith.mulf %124, %132 : vector<8x128xf32>
    %141 = arith.addf %139, %140 : vector<8x128xf32>
    %142 = math.tanh %141 : vector<8x128xf32>
    %143 = arith.mulf %138, %142 : vector<8x128xf32>
    %144 = arith.index_cast %113 : i32 to index
    %c0_46 = arith.constant 0 : index
    %145 = vector.load %arg13[%144, %c0_46] : memref<64x128xf32, #tpu.memory_space<vmem>>, vector<8x128xf32>
    tpu.vector_store %arg13[%144, %c0_46], %143 {strides = array<i32>} : memref<64x128xf32, #tpu.memory_space<vmem>>, vector<8x128xf32>,
    %c4_i32 = arith.constant 4 : i32
    %c8_i32_47 = arith.constant 8 : i32
    %146 = arith.muli %c4_i32, %c8_i32_47 : i32
    %147 = tpu.assume_multiple %146, 8 : i32
    %148 = arith.index_cast %147 : i32 to index
    %c0_48 = arith.constant 0 : index
    %149 = vector.load %arg12[%148, %c0_48] : memref<64x512xf32, #tpu.memory_space<vmem>>, vector<8x512xf32>
    %c0_49 = arith.constant 0 : index
    %c0_50 = arith.constant 0 : index
    %150 = vector.load %arg5[%c0_49, %c0_50] : memref<128x512xf32, #tpu.memory_space<vmem>>, vector<128x512xf32>
    %cst_51 = arith.constant dense<0.000000e+00> : vector<8x512xf32>
    %151 = tpu.matmul %143, %150, %cst_51 {dimension_numbers = #tpu.dot_dimension_numbers<[1], [0], [0], [1], [0, 0, 1, 1], [], []>} : vector<8x128xf32>, vector<128x512xf32>, vector<8x512xf32> -> vector<8x512xf32>
    %152 = arith.addf %149, %151 : vector<8x512xf32>
    %153 = vector.extract_strided_slice %152 {offsets = [0, 0], sizes = [8, 128], strides = [1, 1]} : vector<8x512xf32> to vector<8x128xf32>
    %154 = arith.negf %153 : vector<8x128xf32>
    %155 = math.exp %154 : vector<8x128xf32>
    %cst_52 = arith.constant 1.000000e+00 : f32
    %156 = vector.broadcast %cst_52 : f32 to vector<8x128xf32>
    %157 = arith.addf %156, %155 : vector<8x128xf32>
    %158 = arith.divf %156, %157 : vector<8x128xf32>
    %159 = vector.extract_strided_slice %152 {offsets = [0, 128], sizes = [8, 128], strides = [1, 1]} : vector<8x512xf32> to vector<8x128xf32>
    %160 = arith.negf %159 : vector<8x128xf32>
    %161 = math.exp %160 : vector<8x128xf32>
    %cst_53 = arith.constant 1.000000e+00 : f32
    %162 = vector.broadcast %cst_53 : f32 to vector<8x128xf32>
    %163 = arith.addf %162, %161 : vector<8x128xf32>
    %164 = arith.divf %162, %163 : vector<8x128xf32>
    %165 = vector.extract_strided_slice %152 {offsets = [0, 256], sizes = [8, 128], strides = [1, 1]} : vector<8x512xf32> to vector<8x128xf32>
    %166 = math.tanh %165 : vector<8x128xf32>
    %167 = vector.extract_strided_slice %152 {offsets = [0, 384], sizes = [8, 128], strides = [1, 1]} : vector<8x512xf32> to vector<8x128xf32>
    %168 = arith.negf %167 : vector<8x128xf32>
    %169 = math.exp %168 : vector<8x128xf32>
    %cst_54 = arith.constant 1.000000e+00 : f32
    %170 = vector.broadcast %cst_54 : f32 to vector<8x128xf32>
    %171 = arith.addf %170, %169 : vector<8x128xf32>
    %172 = arith.divf %170, %171 : vector<8x128xf32>
    %173 = arith.mulf %164, %141 : vector<8x128xf32>
    %174 = arith.mulf %158, %166 : vector<8x128xf32>
    %175 = arith.addf %173, %174 : vector<8x128xf32>
    %176 = math.tanh %175 : vector<8x128xf32>
    %177 = arith.mulf %172, %176 : vector<8x128xf32>
    %178 = arith.index_cast %147 : i32 to index
    %c0_55 = arith.constant 0 : index
    %179 = vector.load %arg13[%178, %c0_55] : memref<64x128xf32, #tpu.memory_space<vmem>>, vector<8x128xf32>
    tpu.vector_store %arg13[%178, %c0_55], %177 {strides = array<i32>} : memref<64x128xf32, #tpu.memory_space<vmem>>, vector<8x128xf32>,
    %c5_i32 = arith.constant 5 : i32
    %c8_i32_56 = arith.constant 8 : i32
    %180 = arith.muli %c5_i32, %c8_i32_56 : i32
    %181 = tpu.assume_multiple %180, 8 : i32
    %182 = arith.index_cast %181 : i32 to index
    %c0_57 = arith.constant 0 : index
    %183 = vector.load %arg12[%182, %c0_57] : memref<64x512xf32, #tpu.memory_space<vmem>>, vector<8x512xf32>
    %c0_58 = arith.constant 0 : index
    %c0_59 = arith.constant 0 : index
    %184 = vector.load %arg5[%c0_58, %c0_59] : memref<128x512xf32, #tpu.memory_space<vmem>>, vector<128x512xf32>
    %cst_60 = arith.constant dense<0.000000e+00> : vector<8x512xf32>
    %185 = tpu.matmul %177, %184, %cst_60 {dimension_numbers = #tpu.dot_dimension_numbers<[1], [0], [0], [1], [0, 0, 1, 1], [], []>} : vector<8x128xf32>, vector<128x512xf32>, vector<8x512xf32> -> vector<8x512xf32>
    %186 = arith.addf %183, %185 : vector<8x512xf32>
    %187 = vector.extract_strided_slice %186 {offsets = [0, 0], sizes = [8, 128], strides = [1, 1]} : vector<8x512xf32> to vector<8x128xf32>
    %188 = arith.negf %187 : vector<8x128xf32>
    %189 = math.exp %188 : vector<8x128xf32>
    %cst_61 = arith.constant 1.000000e+00 : f32
    %190 = vector.broadcast %cst_61 : f32 to vector<8x128xf32>
    %191 = arith.addf %190, %189 : vector<8x128xf32>
    %192 = arith.divf %190, %191 : vector<8x128xf32>
    %193 = vector.extract_strided_slice %186 {offsets = [0, 128], sizes = [8, 128], strides = [1, 1]} : vector<8x512xf32> to vector<8x128xf32>
    %194 = arith.negf %193 : vector<8x128xf32>
    %195 = math.exp %194 : vector<8x128xf32>
    %cst_62 = arith.constant 1.000000e+00 : f32
    %196 = vector.broadcast %cst_62 : f32 to vector<8x128xf32>
    %197 = arith.addf %196, %195 : vector<8x128xf32>
    %198 = arith.divf %196, %197 : vector<8x128xf32>
    %199 = vector.extract_strided_slice %186 {offsets = [0, 256], sizes = [8, 128], strides = [1, 1]} : vector<8x512xf32> to vector<8x128xf32>
    %200 = math.tanh %199 : vector<8x128xf32>
    %201 = vector.extract_strided_slice %186 {offsets = [0, 384], sizes = [8, 128], strides = [1, 1]} : vector<8x512xf32> to vector<8x128xf32>
    %202 = arith.negf %201 : vector<8x128xf32>
    %203 = math.exp %202 : vector<8x128xf32>
    %cst_63 = arith.constant 1.000000e+00 : f32
    %204 = vector.broadcast %cst_63 : f32 to vector<8x128xf32>
    %205 = arith.addf %204, %203 : vector<8x128xf32>
    %206 = arith.divf %204, %205 : vector<8x128xf32>
    %207 = arith.mulf %198, %175 : vector<8x128xf32>
    %208 = arith.mulf %192, %200 : vector<8x128xf32>
    %209 = arith.addf %207, %208 : vector<8x128xf32>
    %210 = math.tanh %209 : vector<8x128xf32>
    %211 = arith.mulf %206, %210 : vector<8x128xf32>
    %212 = arith.index_cast %181 : i32 to index
    %c0_64 = arith.constant 0 : index
    %213 = vector.load %arg13[%212, %c0_64] : memref<64x128xf32, #tpu.memory_space<vmem>>, vector<8x128xf32>
    tpu.vector_store %arg13[%212, %c0_64], %211 {strides = array<i32>} : memref<64x128xf32, #tpu.memory_space<vmem>>, vector<8x128xf32>,
    %c6_i32 = arith.constant 6 : i32
    %c8_i32_65 = arith.constant 8 : i32
    %214 = arith.muli %c6_i32, %c8_i32_65 : i32
    %215 = tpu.assume_multiple %214, 8 : i32
    %216 = arith.index_cast %215 : i32 to index
    %c0_66 = arith.constant 0 : index
    %217 = vector.load %arg12[%216, %c0_66] : memref<64x512xf32, #tpu.memory_space<vmem>>, vector<8x512xf32>
    %c0_67 = arith.constant 0 : index
    %c0_68 = arith.constant 0 : index
    %218 = vector.load %arg5[%c0_67, %c0_68] : memref<128x512xf32, #tpu.memory_space<vmem>>, vector<128x512xf32>
    %cst_69 = arith.constant dense<0.000000e+00> : vector<8x512xf32>
    %219 = tpu.matmul %211, %218, %cst_69 {dimension_numbers = #tpu.dot_dimension_numbers<[1], [0], [0], [1], [0, 0, 1, 1], [], []>} : vector<8x128xf32>, vector<128x512xf32>, vector<8x512xf32> -> vector<8x512xf32>
    %220 = arith.addf %217, %219 : vector<8x512xf32>
    %221 = vector.extract_strided_slice %220 {offsets = [0, 0], sizes = [8, 128], strides = [1, 1]} : vector<8x512xf32> to vector<8x128xf32>
    %222 = arith.negf %221 : vector<8x128xf32>
    %223 = math.exp %222 : vector<8x128xf32>
    %cst_70 = arith.constant 1.000000e+00 : f32
    %224 = vector.broadcast %cst_70 : f32 to vector<8x128xf32>
    %225 = arith.addf %224, %223 : vector<8x128xf32>
    %226 = arith.divf %224, %225 : vector<8x128xf32>
    %227 = vector.extract_strided_slice %220 {offsets = [0, 128], sizes = [8, 128], strides = [1, 1]} : vector<8x512xf32> to vector<8x128xf32>
    %228 = arith.negf %227 : vector<8x128xf32>
    %229 = math.exp %228 : vector<8x128xf32>
    %cst_71 = arith.constant 1.000000e+00 : f32
    %230 = vector.broadcast %cst_71 : f32 to vector<8x128xf32>
    %231 = arith.addf %230, %229 : vector<8x128xf32>
    %232 = arith.divf %230, %231 : vector<8x128xf32>
    %233 = vector.extract_strided_slice %220 {offsets = [0, 256], sizes = [8, 128], strides = [1, 1]} : vector<8x512xf32> to vector<8x128xf32>
    %234 = math.tanh %233 : vector<8x128xf32>
    %235 = vector.extract_strided_slice %220 {offsets = [0, 384], sizes = [8, 128], strides = [1, 1]} : vector<8x512xf32> to vector<8x128xf32>
    %236 = arith.negf %235 : vector<8x128xf32>
    %237 = math.exp %236 : vector<8x128xf32>
    %cst_72 = arith.constant 1.000000e+00 : f32
    %238 = vector.broadcast %cst_72 : f32 to vector<8x128xf32>
    %239 = arith.addf %238, %237 : vector<8x128xf32>
    %240 = arith.divf %238, %239 : vector<8x128xf32>
    %241 = arith.mulf %232, %209 : vector<8x128xf32>
    %242 = arith.mulf %226, %234 : vector<8x128xf32>
    %243 = arith.addf %241, %242 : vector<8x128xf32>
    %244 = math.tanh %243 : vector<8x128xf32>
    %245 = arith.mulf %240, %244 : vector<8x128xf32>
    %246 = arith.index_cast %215 : i32 to index
    %c0_73 = arith.constant 0 : index
    %247 = vector.load %arg13[%246, %c0_73] : memref<64x128xf32, #tpu.memory_space<vmem>>, vector<8x128xf32>
    tpu.vector_store %arg13[%246, %c0_73], %245 {strides = array<i32>} : memref<64x128xf32, #tpu.memory_space<vmem>>, vector<8x128xf32>,
    %c7_i32 = arith.constant 7 : i32
    %c8_i32_74 = arith.constant 8 : i32
    %248 = arith.muli %c7_i32, %c8_i32_74 : i32
    %249 = tpu.assume_multiple %248, 8 : i32
    %250 = arith.index_cast %249 : i32 to index
    %c0_75 = arith.constant 0 : index
    %251 = vector.load %arg12[%250, %c0_75] : memref<64x512xf32, #tpu.memory_space<vmem>>, vector<8x512xf32>
    %c0_76 = arith.constant 0 : index
    %c0_77 = arith.constant 0 : index
    %252 = vector.load %arg5[%c0_76, %c0_77] : memref<128x512xf32, #tpu.memory_space<vmem>>, vector<128x512xf32>
    %cst_78 = arith.constant dense<0.000000e+00> : vector<8x512xf32>
    %253 = tpu.matmul %245, %252, %cst_78 {dimension_numbers = #tpu.dot_dimension_numbers<[1], [0], [0], [1], [0, 0, 1, 1], [], []>} : vector<8x128xf32>, vector<128x512xf32>, vector<8x512xf32> -> vector<8x512xf32>
    %254 = arith.addf %251, %253 : vector<8x512xf32>
    %255 = vector.extract_strided_slice %254 {offsets = [0, 0], sizes = [8, 128], strides = [1, 1]} : vector<8x512xf32> to vector<8x128xf32>
    %256 = arith.negf %255 : vector<8x128xf32>
    %257 = math.exp %256 : vector<8x128xf32>
    %cst_79 = arith.constant 1.000000e+00 : f32
    %258 = vector.broadcast %cst_79 : f32 to vector<8x128xf32>
    %259 = arith.addf %258, %257 : vector<8x128xf32>
    %260 = arith.divf %258, %259 : vector<8x128xf32>
    %261 = vector.extract_strided_slice %254 {offsets = [0, 128], sizes = [8, 128], strides = [1, 1]} : vector<8x512xf32> to vector<8x128xf32>
    %262 = arith.negf %261 : vector<8x128xf32>
    %263 = math.exp %262 : vector<8x128xf32>
    %cst_80 = arith.constant 1.000000e+00 : f32
    %264 = vector.broadcast %cst_80 : f32 to vector<8x128xf32>
    %265 = arith.addf %264, %263 : vector<8x128xf32>
    %266 = arith.divf %264, %265 : vector<8x128xf32>
    %267 = vector.extract_strided_slice %254 {offsets = [0, 256], sizes = [8, 128], strides = [1, 1]} : vector<8x512xf32> to vector<8x128xf32>
    %268 = math.tanh %267 : vector<8x128xf32>
    %269 = vector.extract_strided_slice %254 {offsets = [0, 384], sizes = [8, 128], strides = [1, 1]} : vector<8x512xf32> to vector<8x128xf32>
    %270 = arith.negf %269 : vector<8x128xf32>
    %271 = math.exp %270 : vector<8x128xf32>
    %cst_81 = arith.constant 1.000000e+00 : f32
    %272 = vector.broadcast %cst_81 : f32 to vector<8x128xf32>
    %273 = arith.addf %272, %271 : vector<8x128xf32>
    %274 = arith.divf %272, %273 : vector<8x128xf32>
    %275 = arith.mulf %266, %243 : vector<8x128xf32>
    %276 = arith.mulf %260, %268 : vector<8x128xf32>
    %277 = arith.addf %275, %276 : vector<8x128xf32>
    %278 = math.tanh %277 : vector<8x128xf32>
    %279 = arith.mulf %274, %278 : vector<8x128xf32>
    %280 = arith.index_cast %249 : i32 to index
    %c0_82 = arith.constant 0 : index
    %281 = vector.load %arg13[%280, %c0_82] : memref<64x128xf32, #tpu.memory_space<vmem>>, vector<8x128xf32>
    tpu.vector_store %arg13[%280, %c0_82], %279 {strides = array<i32>} : memref<64x128xf32, #tpu.memory_space<vmem>>, vector<8x128xf32>,
    %c8_i32_83 = arith.constant 8 : i32
    %c0_84 = arith.constant 0 : index
    %c0_85 = arith.constant 0 : index
    %282 = vector.load %arg10[%c0_84, %c0_85] : memref<8x128xf32, #tpu.memory_space<vmem>>, vector<8x128xf32>
    tpu.vector_store %arg10[%c0_84, %c0_85], %279 {strides = array<i32>} : memref<8x128xf32, #tpu.memory_space<vmem>>, vector<8x128xf32>,
    %c0_86 = arith.constant 0 : index
    %c0_87 = arith.constant 0 : index
    %283 = vector.load %arg11[%c0_86, %c0_87] : memref<8x128xf32, #tpu.memory_space<vmem>>, vector<8x128xf32>
    tpu.vector_store %arg11[%c0_86, %c0_87], %277 {strides = array<i32>} : memref<8x128xf32, #tpu.memory_space<vmem>>, vector<8x128xf32>,
    %c0_88 = arith.constant 0 : index
    %c0_89 = arith.constant 0 : index
    %284 = vector.load %arg13[%c0_88, %c0_89] : memref<64x128xf32, #tpu.memory_space<vmem>>, vector<64x128xf32>
    %c0_90 = arith.constant 0 : index
    %c0_91 = arith.constant 0 : index
    %285 = vector.load %arg7[%c0_90, %c0_91] : memref<128x128xf32, #tpu.memory_space<vmem>>, vector<128x128xf32>
    %cst_92 = arith.constant dense<0.000000e+00> : vector<64x128xf32>
    %286 = tpu.matmul %284, %285, %cst_92 {dimension_numbers = #tpu.dot_dimension_numbers<[1], [0], [0], [1], [0, 0, 1, 1], [], []>} : vector<64x128xf32>, vector<128x128xf32>, vector<64x128xf32> -> vector<64x128xf32>
    %c0_93 = arith.constant 0 : index
    %c0_94 = arith.constant 0 : index
    %287 = vector.load %arg8[%c0_93, %c0_94] : memref<1x128xf32, #tpu.memory_space<vmem>>, vector<1x128xf32>
    %288 = vector.broadcast %287 : vector<1x128xf32> to vector<64x128xf32>
    %289 = arith.addf %286, %288 : vector<64x128xf32>
    %c0_95 = arith.constant 0 : index
    %c0_96 = arith.constant 0 : index
    %c0_97 = arith.constant 0 : index
    %290 = vector.load %arg9[%c0_95, %c0_96, %c0_97] : memref<1x64x128xf32, #tpu.memory_space<vmem>>, vector<1x64x128xf32>
    %291 = vector.shape_cast %290 : vector<1x64x128xf32> to vector<64x128xf32>
    %292 = vector.shape_cast %289 : vector<64x128xf32> to vector<1x64x128xf32>
    tpu.vector_store %arg9[%c0_95, %c0_96, %c0_97], %292 {strides = array<i32>} : memref<1x64x128xf32, #tpu.memory_space<vmem>>, vector<1x64x128xf32>,
    return
  }
  func.func @transform_0(%arg0: i32) -> (i32, i32, i32) {
    %c0_i32 = arith.constant 0 : i32
    %c0_i32_0 = arith.constant 0 : i32
    %c0_i32_1 = arith.constant 0 : i32
    return %arg0, %c0_i32, %c0_i32_0 : i32, i32, i32
  }
  func.func @transform_1(%arg0: i32) -> (i32, i32) {
    %c0_i32 = arith.constant 0 : i32
    %c0_i32_0 = arith.constant 0 : i32
    return %arg0, %c0_i32 : i32, i32
  }
  func.func @transform_2(%arg0: i32) -> (i32, i32) {
    %c0_i32 = arith.constant 0 : i32
    %c0_i32_0 = arith.constant 0 : i32
    return %arg0, %c0_i32 : i32, i32
  }
  func.func @transform_3(%arg0: i32) -> (i32, i32) {
    %c0_i32 = arith.constant 0 : i32
    %c0_i32_0 = arith.constant 0 : i32
    %c0_i32_1 = arith.constant 0 : i32
    return %c0_i32, %c0_i32_0 : i32, i32
  }
  func.func @transform_4(%arg0: i32) -> (i32, i32) {
    %c0_i32 = arith.constant 0 : i32
    %c0_i32_0 = arith.constant 0 : i32
    %c0_i32_1 = arith.constant 0 : i32
    return %c0_i32, %c0_i32_0 : i32, i32
  }
  func.func @transform_5(%arg0: i32) -> (i32, i32) {
    %c0_i32 = arith.constant 0 : i32
    %c0_i32_0 = arith.constant 0 : i32
    %c0_i32_1 = arith.constant 0 : i32
    return %c0_i32, %c0_i32_0 : i32, i32
  }
  func.func @transform_6(%arg0: i32) -> (i32, i32) {
    %c0_i32 = arith.constant 0 : i32
    %c0_i32_0 = arith.constant 0 : i32
    %c0_i32_1 = arith.constant 0 : i32
    return %c0_i32, %c0_i32_0 : i32, i32
  }
  func.func @transform_7(%arg0: i32) -> (i32, i32) {
    %c0_i32 = arith.constant 0 : i32
    %c0_i32_0 = arith.constant 0 : i32
    %c0_i32_1 = arith.constant 0 : i32
    return %c0_i32, %c0_i32_0 : i32, i32
  }
  func.func @transform_8(%arg0: i32) -> (i32, i32, i32) {
    %c0_i32 = arith.constant 0 : i32
    %c0_i32_0 = arith.constant 0 : i32
    %c0_i32_1 = arith.constant 0 : i32
    return %arg0, %c0_i32, %c0_i32_0 : i32, i32, i32
  }
  func.func @transform_9(%arg0: i32) -> (i32, i32) {
    %c0_i32 = arith.constant 0 : i32
    %c0_i32_0 = arith.constant 0 : i32
    return %arg0, %c0_i32 : i32, i32
  }
  func.func @transform_10(%arg0: i32) -> (i32, i32) {
    %c0_i32 = arith.constant 0 : i32
    %c0_i32_0 = arith.constant 0 : i32
    return %arg0, %c0_i32 : i32, i32
  }
}

</mosaic_0001>

<llo_original>
// kernel: tpu_custom_call.1
$region0: #{tpu_custom_call.1}
  #allocation0 [shape = 'u32[]', space=smem, size = 0x4, offset = 0x4, fixed_abs, tag = 'smem constant byte address 0x4 - core index']
  #allocation1 [shape = 'u32[144,128]{1,0:T(1,128)}', space=vmem, size = 0x12000, scoped, tag = 'internal scratch']
  #allocation2 [shape = 'f32[64,512]{1,0:T(8,128)}', space=vmem, size = 0x20000, scoped, tag = 'scratch operand']
  #allocation3 [shape = 'f32[64,128]{1,0:T(8,128)}', space=vmem, size = 0x8000, scoped, tag = 'scratch operand']
  %s0 = inlined_call_operand.hbm [shape: f32[1,64,128], index: 0, kind: input, shape index: {}]
  %s1 = inlined_call_operand.hbm [shape: f32[8,128], index: 1, kind: input, shape index: {}]
  %s2 = inlined_call_operand.hbm [shape: f32[8,128], index: 2, kind: input, shape index: {}]
  %s3 = inlined_call_operand.hbm [shape: f32[128,512], index: 3, kind: input, shape index: {}]
  %s4 = inlined_call_operand.hbm [shape: f32[128,512], index: 4, kind: input, shape index: {}]
  %s5 = inlined_call_operand.vmem [shape: f32[1,512], index: 5, kind: input, shape index: {}]
  %s6 = inlined_call_operand.hbm [shape: f32[128,128], index: 6, kind: input, shape index: {}]
  %s7 = inlined_call_operand.vmem [shape: f32[1,128], index: 7, kind: input, shape index: {}]
  %s8 = inlined_call_operand.hbm [shape: f32[1,64,128], index: 8, kind: output, shape index: {0}]
  %s9 = inlined_call_operand.hbm [shape: f32[8,128], index: 9, kind: output, shape index: {1}]
  %s10 = inlined_call_operand.hbm [shape: f32[8,128], index: 10, kind: output, shape index: {2}]
  %11 = xla_tuple %s8, %s9, %s10
  %s12 = sld [smem:[#allocation0]]
  $region82: #{tpu_custom_call.1} parent=0
    _
  %s14 = ssub.s32 1, %s12
  %s15 = scalar_select 0, %s14, %s12
  $region1: #{tpu_custom_call.1} parent=0
    #allocation4 [shape = 'u8[32768]{0}', space=vmem, size = 0x8000, scoped, tag = 'input window, operand 0, single buffered']
    #allocation5 [shape = 's32[1]{0}', space=sflag, size = 0x4, scoped, tag = 'scoped memory for tpu_custom_call.1']
    #allocation6 [shape = 's32[1]{0}', space=sflag, size = 0x4, scoped, tag = 'scoped memory for tpu_custom_call.1']
    #allocation7 [shape = 'u8[4096]{0}', space=vmem, size = 0x1000, scoped, tag = 'input window, operand 1, single buffered']
    #allocation8 [shape = 's32[1]{0}', space=sflag, size = 0x4, scoped, tag = 'scoped memory for tpu_custom_call.1']
    #allocation9 [shape = 'u8[4096]{0}', space=vmem, size = 0x1000, scoped, tag = 'input window, operand 2, single buffered']
    #allocation10 [shape = 'u8[262144]{0}', space=vmem, size = 0x40000, scoped, tag = 'input window, operand 3, single buffered']
    #allocation11 [shape = 's32[1]{0}', space=sflag, size = 0x4, scoped, tag = 'scoped memory for tpu_custom_call.1']
    #allocation12 [shape = 'u8[262144]{0}', space=vmem, size = 0x40000, scoped, tag = 'input window, operand 4, single buffered']
    #allocation13 [shape = 'u8[65536]{0}', space=vmem, size = 0x10000, scoped, tag = 'input window, operand 6, single buffered']
    #allocation14 [shape = 's32[1]{0}', space=sflag, size = 0x4, scoped, tag = 'scoped memory for tpu_custom_call.1']
    #allocation15 [shape = 'u8[32768]{0}', space=vmem, size = 0x8000, scoped, tag = 'output window, operand 0, single buffered']
    #allocation16 [shape = 'u8[4096]{0}', space=vmem, size = 0x1000, scoped, tag = 'output window, operand 1, single buffered']
    #allocation17 [shape = 's32[1]{0}', space=sflag, size = 0x4, scoped, tag = 'scoped memory for tpu_custom_call.1']
    #allocation18 [shape = 'u8[4096]{0}', space=vmem, size = 0x1000, scoped, tag = 'output window, operand 2, single buffered']
    %16 = vsyncpa [#allocation5], 0
    %17 = vsyncpa [#allocation8], 0
    %18 = vsyncpa [#allocation11], 0
    %19 = vsyncpa [#allocation14], 0
    %20 = vsyncpa [#allocation6], 0
    %21 = vsyncpa [#allocation17], 0
    // Predicated region
    $region2: #{tpu_custom_call.1} parent=1 // pred_check
      _
    $region3: #{tpu_custom_call.1} parent=1 // pred_check_branch
      %23 = sbr.rel (0) target = $region5
    $region4: #{tpu_custom_call.1} parent=1 // pred_region
      %s25 = ssub.s32 1024, 1024
      %26 = vsyncadd [#allocation5], %s25
      %s27 = sshll.u32 [#allocation4], 4
      %s28 = int_to_ptr.vmem [resolvable:$true] %s27
      %33 = dma.hbm_to_vmem [thread:$0]  %s0, 1024, %s28, [#allocation5], 128, 128, 8
    $region5: #{tpu_custom_call.1} parent=1 // pred_fallthru
      _
    // Predicated region
    $region6: #{tpu_custom_call.1} parent=1 // pred_check
      _
    $region7: #{tpu_custom_call.1} parent=1 // pred_check_branch
      %35 = sbr.rel (0) target = $region9
    $region8: #{tpu_custom_call.1} parent=1 // pred_region
      %s37 = ssub.s32 128, 128
      %38 = vsyncadd [#allocation8], %s37
      %s40 = sshll.u32 [#allocation7], 4
      %s41 = int_to_ptr.vmem [resolvable:$true] %s40
      %43 = dma.hbm_to_vmem [thread:$0]  %s1, 128, %s41, [#allocation8]
    $region9: #{tpu_custom_call.1} parent=1 // pred_fallthru
      _
    // Predicated region
    $region10: #{tpu_custom_call.1} parent=1 // pred_check
      _
    $region11: #{tpu_custom_call.1} parent=1 // pred_check_branch
      %45 = sbr.rel (0) target = $region13
    $region12: #{tpu_custom_call.1} parent=1 // pred_region
      %s47 = ssub.s32 128, 128
      %48 = vsyncadd [#allocation8], %s47
      %s50 = sshll.u32 [#allocation9], 4
      %s51 = int_to_ptr.vmem [resolvable:$true] %s50
      %53 = dma.hbm_to_vmem [thread:$0]  %s2, 128, %s51, [#allocation8]
    $region13: #{tpu_custom_call.1} parent=1 // pred_fallthru
      _
    // Predicated region
    $region14: #{tpu_custom_call.1} parent=1 // pred_check
      _
    $region15: #{tpu_custom_call.1} parent=1 // pred_check_branch
      %55 = sbr.rel (0) target = $region17
    $region16: #{tpu_custom_call.1} parent=1 // pred_region
      %s57 = ssub.s32 8192, 8192
      %58 = vsyncadd [#allocation11], %s57
      %s59 = sshll.u32 [#allocation10], 4
      %s60 = int_to_ptr.vmem [resolvable:$true] %s59
      %65 = dma.hbm_to_vmem [thread:$0]  %s3, 8192, %s60, [#allocation11], 512, 512, 32
    $region17: #{tpu_custom_call.1} parent=1 // pred_fallthru
      _
    // Predicated region
    $region18: #{tpu_custom_call.1} parent=1 // pred_check
      _
    $region19: #{tpu_custom_call.1} parent=1 // pred_check_branch
      %67 = sbr.rel (0) target = $region21
    $region20: #{tpu_custom_call.1} parent=1 // pred_region
      %s69 = ssub.s32 8192, 8192
      %70 = vsyncadd [#allocation11], %s69
      %s71 = sshll.u32 [#allocation12], 4
      %s72 = int_to_ptr.vmem [resolvable:$true] %s71
      %77 = dma.hbm_to_vmem [thread:$0]  %s4, 8192, %s72, [#allocation11], 512, 512, 32
    $region21: #{tpu_custom_call.1} parent=1 // pred_fallthru
      _
    // Predicated region
    $region22: #{tpu_custom_call.1} parent=1 // pred_check
      _
    $region23: #{tpu_custom_call.1} parent=1 // pred_check_branch
      %79 = sbr.rel (0) target = $region25
    $region24: #{tpu_custom_call.1} parent=1 // pred_region
      _
    $region25: #{tpu_custom_call.1} parent=1 // pred_fallthru
      _
    // Predicated region
    $region26: #{tpu_custom_call.1} parent=1 // pred_check
      _
    $region27: #{tpu_custom_call.1} parent=1 // pred_check_branch
      %81 = sbr.rel (0) target = $region29
    $region28: #{tpu_custom_call.1} parent=1 // pred_region
      %s83 = ssub.s32 2048, 2048
      %84 = vsyncadd [#allocation14], %s83
      %s85 = sshll.u32 [#allocation13], 4
      %s86 = int_to_ptr.vmem [resolvable:$true] %s85
      %91 = dma.hbm_to_vmem [thread:$0]  %s6, 2048, %s86, [#allocation14], 128, 128, 8
    $region29: #{tpu_custom_call.1} parent=1 // pred_fallthru
      _
    // Predicated region
    $region30: #{tpu_custom_call.1} parent=1 // pred_check
      _
    $region31: #{tpu_custom_call.1} parent=1 // pred_check_branch
      %93 = sbr.rel (0) target = $region33
    $region32: #{tpu_custom_call.1} parent=1 // pred_region
      _
    $region33: #{tpu_custom_call.1} parent=1 // pred_fallthru
      _
    // Predicated region
    $region34: #{tpu_custom_call.1} parent=1 // pred_check
      _
    $region35: #{tpu_custom_call.1} parent=1 // pred_check_branch
      %95 = sbr.rel (0) target = $region37
    $region36: #{tpu_custom_call.1} parent=1 // pred_region
      %96 = dma.done [#allocation5], 1024
    $region37: #{tpu_custom_call.1} parent=1 // pred_fallthru
      _
    // Predicated region
    $region38: #{tpu_custom_call.1} parent=1 // pred_check
      _
    $region39: #{tpu_custom_call.1} parent=1 // pred_check_branch
      %98 = sbr.rel (0) target = $region41
    $region40: #{tpu_custom_call.1} parent=1 // pred_region
      %99 = dma.done [#allocation8], 128
    $region41: #{tpu_custom_call.1} parent=1 // pred_fallthru
      _
    // Predicated region
    $region42: #{tpu_custom_call.1} parent=1 // pred_check
      _
    $region43: #{tpu_custom_call.1} parent=1 // pred_check_branch
      %101 = sbr.rel (0) target = $region45
    $region44: #{tpu_custom_call.1} parent=1 // pred_region
      %102 = dma.done [#allocation8], 128
    $region45: #{tpu_custom_call.1} parent=1 // pred_fallthru
      _
    // Predicated region
    $region46: #{tpu_custom_call.1} parent=1 // pred_check
      _
    $region47: #{tpu_custom_call.1} parent=1 // pred_check_branch
      %104 = sbr.rel (0) target = $region49
    $region48: #{tpu_custom_call.1} parent=1 // pred_region
      %105 = dma.done [#allocation11], 8192
    $region49: #{tpu_custom_call.1} parent=1 // pred_fallthru
      _
    // Predicated region
    $region50: #{tpu_custom_call.1} parent=1 // pred_check
      _
    $region51: #{tpu_custom_call.1} parent=1 // pred_check_branch
      %107 = sbr.rel (0) target = $region53
    $region52: #{tpu_custom_call.1} parent=1 // pred_region
      %108 = dma.done [#allocation11], 8192
    $region53: #{tpu_custom_call.1} parent=1 // pred_fallthru
      _
    // Predicated region
    $region54: #{tpu_custom_call.1} parent=1 // pred_check
      _
    $region55: #{tpu_custom_call.1} parent=1 // pred_check_branch
      %110 = sbr.rel (0) target = $region57
    $region56: #{tpu_custom_call.1} parent=1 // pred_region
      %111 = dma.done [#allocation14], 2048
    $region57: #{tpu_custom_call.1} parent=1 // pred_fallthru
      _
    %v112 = vld [vmem:[#allocation4] sm:$0xff]
    %v113 = vld [vmem:[#allocation4 + $0x8] sm:$0xff]
    %v114 = vld [vmem:[#allocation4 + $0x10] sm:$0xff]
    %v115 = vld [vmem:[#allocation4 + $0x18] sm:$0xff]
    %v116 = vld [vmem:[#allocation4 + $0x20] sm:$0xff]
    %v117 = vld [vmem:[#allocation4 + $0x28] sm:$0xff]
    %v118 = vld [vmem:[#allocation4 + $0x30] sm:$0xff]
    %v119 = vld [vmem:[#allocation4 + $0x38] sm:$0xff]
    %v120 = vld [vmem:[#allocation10] sm:$0xff]
    %v121 = vld [vmem:[#allocation10 + $0x8] sm:$0xff]
    %v122 = vld [vmem:[#allocation10 + $0x10] sm:$0xff]
    %v123 = vld [vmem:[#allocation10 + $0x18] sm:$0xff]
    %v124 = vld [vmem:[#allocation10 + $0x20] sm:$0xff]
    %v125 = vld [vmem:[#allocation10 + $0x28] sm:$0xff]
    %v126 = vld [vmem:[#allocation10 + $0x30] sm:$0xff]
    %v127 = vld [vmem:[#allocation10 + $0x38] sm:$0xff]
    %v128 = vld [vmem:[#allocation10 + $0x40] sm:$0xff]
    %v129 = vld [vmem:[#allocation10 + $0x48] sm:$0xff]
    %v130 = vld [vmem:[#allocation10 + $0x50] sm:$0xff]
    %v131 = vld [vmem:[#allocation10 + $0x58] sm:$0xff]
    %v132 = vld [vmem:[#allocation10 + $0x60] sm:$0xff]
    %v133 = vld [vmem:[#allocation10 + $0x68] sm:$0xff]
    %v134 = vld [vmem:[#allocation10 + $0x70] sm:$0xff]
    %v135 = vld [vmem:[#allocation10 + $0x78] sm:$0xff]
    %v136 = vld [vmem:[#allocation10 + $0x80] sm:$0xff]
    %v137 = vld [vmem:[#allocation10 + $0x88] sm:$0xff]
    %v138 = vld [vmem:[#allocation10 + $0x90] sm:$0xff]
    %v139 = vld [vmem:[#allocation10 + $0x98] sm:$0xff]
    %v140 = vld [vmem:[#allocation10 + $0xa0] sm:$0xff]
    %v141 = vld [vmem:[#allocation10 + $0xa8] sm:$0xff]
    %v142 = vld [vmem:[#allocation10 + $0xb0] sm:$0xff]
    %v143 = vld [vmem:[#allocation10 + $0xb8] sm:$0xff]
    %v144 = vld [vmem:[#allocation10 + $0xc0] sm:$0xff]
    %v145 = vld [vmem:[#allocation10 + $0xc8] sm:$0xff]
    %v146 = vld [vmem:[#allocation10 + $0xd0] sm:$0xff]
    %v147 = vld [vmem:[#allocation10 + $0xd8] sm:$0xff]
    %v148 = vld [vmem:[#allocation10 + $0xe0] sm:$0xff]
    %v149 = vld [vmem:[#allocation10 + $0xe8] sm:$0xff]
    %v150 = vld [vmem:[#allocation10 + $0xf0] sm:$0xff]
    %v151 = vld [vmem:[#allocation10 + $0xf8] sm:$0xff]
    %v152 = vld [vmem:[#allocation10 + $0x100] sm:$0xff]
    %v153 = vld [vmem:[#allocation10 + $0x108] sm:$0xff]
    %v154 = vld [vmem:[#allocation10 + $0x110] sm:$0xff]
    %v155 = vld [vmem:[#allocation10 + $0x118] sm:$0xff]
    %v156 = vld [vmem:[#allocation10 + $0x120] sm:$0xff]
    %v157 = vld [vmem:[#allocation10 + $0x128] sm:$0xff]
    %v158 = vld [vmem:[#allocation10 + $0x130] sm:$0xff]
    %v159 = vld [vmem:[#allocation10 + $0x138] sm:$0xff]
    %v160 = vld [vmem:[#allocation10 + $0x140] sm:$0xff]
    %v161 = vld [vmem:[#allocation10 + $0x148] sm:$0xff]
    %v162 = vld [vmem:[#allocation10 + $0x150] sm:$0xff]
    %v163 = vld [vmem:[#allocation10 + $0x158] sm:$0xff]
    %v164 = vld [vmem:[#allocation10 + $0x160] sm:$0xff]
    %v165 = vld [vmem:[#allocation10 + $0x168] sm:$0xff]
    %v166 = vld [vmem:[#allocation10 + $0x170] sm:$0xff]
    %v167 = vld [vmem:[#allocation10 + $0x178] sm:$0xff]
    %v168 = vld [vmem:[#allocation10 + $0x180] sm:$0xff]
    %v169 = vld [vmem:[#allocation10 + $0x188] sm:$0xff]
    %v170 = vld [vmem:[#allocation10 + $0x190] sm:$0xff]
    %v171 = vld [vmem:[#allocation10 + $0x198] sm:$0xff]
    %v172 = vld [vmem:[#allocation10 + $0x1a0] sm:$0xff]
    %v173 = vld [vmem:[#allocation10 + $0x1a8] sm:$0xff]
    %v174 = vld [vmem:[#allocation10 + $0x1b0] sm:$0xff]
    %v175 = vld [vmem:[#allocation10 + $0x1b8] sm:$0xff]
    %v176 = vld [vmem:[#allocation10 + $0x1c0] sm:$0xff]
    %v177 = vld [vmem:[#allocation10 + $0x1c8] sm:$0xff]
    %v178 = vld [vmem:[#allocation10 + $0x1d0] sm:$0xff]
    %v179 = vld [vmem:[#allocation10 + $0x1d8] sm:$0xff]
    %v180 = vld [vmem:[#allocation10 + $0x1e0] sm:$0xff]
    %v181 = vld [vmem:[#allocation10 + $0x1e8] sm:$0xff]
    %v182 = vld [vmem:[#allocation10 + $0x1f0] sm:$0xff]
    %v183 = vld [vmem:[#allocation10 + $0x1f8] sm:$0xff]
    %v184 = vld [vmem:[%s5] sm:$0xf]
    %v186 = vlaneseq
    %v187 = vshrl.u32 %v186, 7
    %v188 = vsub.s32 0, %v187
    %v189 = vrot.slane %v184, %v188
    %v190 = vlaneseq
    %v191 = vshrl.u32 %v190, 7
    %v192 = vsub.s32 1, %v191
    %v193 = vrot.slane %v184, %v192
    %v194 = vlaneseq
    %v195 = vshrl.u32 %v194, 7
    %v196 = vsub.s32 2, %v195
    %v197 = vrot.slane %v184, %v196
    %v198 = vlaneseq
    %v199 = vshrl.u32 %v198, 7
    %v200 = vsub.s32 3, %v199
    %v201 = vrot.slane %v184, %v200
    %206 = vmatprep.subr.mxu0 %v181
    %207 = vmatpush1.msra.mxu0 %v180
    %208 = vmatprep.subr.mxu0 %v177
    %209 = vmatpush1.msra.mxu0 %v176
    %210 = vmatprep.subr.mxu0 %v173
    %211 = vmatpush1.msra.mxu0 %v172
    %212 = vmatprep.subr.mxu0 %v169
    %213 = vmatpush1.msra.mxu0 %v168
    %214 = vmatprep.subr.mxu0 %v165
    %215 = vmatpush1.msra.mxu0 %v164
    %216 = vmatprep.subr.mxu0 %v161
    %217 = vmatpush1.msra.mxu0 %v160
    %218 = vmatprep.subr.mxu0 %v157
    %219 = vmatpush1.msra.mxu0 %v156
    %220 = vmatprep.subr.mxu0 %v153
    %221 = vmatpush1.msra.mxu0 %v152
    %222 = vmatprep.subr.mxu0 %v149
    %223 = vmatpush1.msra.mxu0 %v148
    %224 = vmatprep.subr.mxu0 %v145
    %225 = vmatpush1.msra.mxu0 %v144
    %226 = vmatprep.subr.mxu0 %v141
    %227 = vmatpush1.msra.mxu0 %v140
    %228 = vmatprep.subr.mxu0 %v137
    %229 = vmatpush1.msra.mxu0 %v136
    %230 = vmatprep.subr.mxu0 %v133
    %231 = vmatpush1.msra.mxu0 %v132
    %232 = vmatprep.subr.mxu0 %v129
    %233 = vmatpush1.msra.mxu0 %v128
    %234 = vmatprep.subr.mxu0 %v125
    %235 = vmatpush1.msra.mxu0 %v124
    %236 = vmatprep.subr.mxu0 %v121
    %237 = vmatpush1.msra.mxu0 %v120
    %238 = vmatprep.subr.mxu0 0.0
    %239 = vmatpush2.msra.mxu0 0.0
    %240 = vmatprep.subr.mxu0 0.0
    %241 = vmatpush2.msra.mxu0 0.0
    %242 = vmatprep.subr.mxu0 0.0
    %243 = vmatpush2.msra.mxu0 0.0
    %244 = vmatprep.subr.mxu0 0.0
    %245 = vmatpush2.msra.mxu0 0.0
    %246 = vmatprep.subr.mxu0 0.0
    %247 = vmatpush2.msra.mxu0 0.0
    %248 = vmatprep.subr.mxu0 0.0
    %249 = vmatpush2.msra.mxu0 0.0
    %250 = vmatprep.subr.mxu0 0.0
    %251 = vmatpush2.msra.mxu0 0.0
    %252 = vmatprep.subr.mxu0 0.0
    %253 = vmatpush2.msra.mxu0 0.0
    %254 = vmatprep.subr.mxu0 0.0
    %255 = vmatpush2.msra.mxu0 0.0
    %256 = vmatprep.subr.mxu0 0.0
    %257 = vmatpush2.msra.mxu0 0.0
    %258 = vmatprep.subr.mxu0 0.0
    %259 = vmatpush2.msra.mxu0 0.0
    %260 = vmatprep.subr.mxu0 0.0
    %261 = vmatpush2.msra.mxu0 0.0
    %262 = vmatprep.subr.mxu0 0.0
    %263 = vmatpush2.msra.mxu0 0.0
    %264 = vmatprep.subr.mxu0 0.0
    %265 = vmatpush2.msra.mxu0 0.0
    %266 = vmatprep.subr.mxu0 0.0
    %267 = vmatpush2.msra.mxu0 0.0
    %268 = vmatprep.subr.mxu0 0.0
    %269 = vmatpush2.msra.mxu0 0.0
    %270 = vmatprep.mubr.f32.mxu0 0.0
    %271 = vmatmul.mubr.f32.gmra.mxu0 %v112
    %v272 = vpop.f32.mrf.mxu0
    %v273 = vadd.f32 %v189, %v272
    %v274 = vpop.f32.mrf.mxu0
    %v275 = vadd.f32 %v193, %v274
    %276 = vmatprep.mubr.f32.mxu0 0.0
    %277 = vmatmul.mubr.f32.gmra.mxu0 %v113
    %v278 = vpop.f32.mrf.mxu0
    %v279 = vadd.f32 %v189, %v278
    %v280 = vpop.f32.mrf.mxu0
    %v281 = vadd.f32 %v193, %v280
    %282 = vmatprep.mubr.f32.mxu0 0.0
    %283 = vmatmul.mubr.f32.gmra.mxu0 %v114
    %v284 = vpop.f32.mrf.mxu0
    %v285 = vadd.f32 %v189, %v284
    %v286 = vpop.f32.mrf.mxu0
    %v287 = vadd.f32 %v193, %v286
    %288 = vmatprep.mubr.f32.mxu0 0.0
    %289 = vmatmul.mubr.f32.gmra.mxu0 %v115
    %v290 = vpop.f32.mrf.mxu0
    %v291 = vadd.f32 %v189, %v290
    %v292 = vpop.f32.mrf.mxu0
    %v293 = vadd.f32 %v193, %v292
    %294 = vmatprep.mubr.f32.mxu0 0.0
    %295 = vmatmul.mubr.f32.gmra.mxu0 %v116
    %v296 = vpop.f32.mrf.mxu0
    %v297 = vadd.f32 %v189, %v296
    %v298 = vpop.f32.mrf.mxu0
    %v299 = vadd.f32 %v193, %v298
    %300 = vmatprep.mubr.f32.mxu0 0.0
    %301 = vmatmul.mubr.f32.gmra.mxu0 %v117
    %v302 = vpop.f32.mrf.mxu0
    %v303 = vadd.f32 %v189, %v302
    %v304 = vpop.f32.mrf.mxu0
    %v305 = vadd.f32 %v193, %v304
    %306 = vmatprep.mubr.f32.mxu0 0.0
    %307 = vmatmul.mubr.f32.gmra.mxu0 %v118
    %v308 = vpop.f32.mrf.mxu0
    %v309 = vadd.f32 %v189, %v308
    %v310 = vpop.f32.mrf.mxu0
    %v311 = vadd.f32 %v193, %v310
    %312 = vmatprep.mubr.f32.mxu0 0.0
    %313 = vmatmul.mubr.f32.gmra.mxu0 %v119
    %v314 = vpop.f32.mrf.mxu0
    %v315 = vadd.f32 %v189, %v314
    %v316 = vpop.f32.mrf.mxu0
    %v317 = vadd.f32 %v193, %v316
    %318 = vdwg.mxu0
    %319 = vmatprep.subr.mxu0 %v183
    %320 = vmatpush1.msra.mxu0 %v182
    %321 = vmatprep.subr.mxu0 %v179
    %322 = vmatpush1.msra.mxu0 %v178
    %323 = vmatprep.subr.mxu0 %v175
    %324 = vmatpush1.msra.mxu0 %v174
    %325 = vmatprep.subr.mxu0 %v171
    %326 = vmatpush1.msra.mxu0 %v170
    %327 = vmatprep.subr.mxu0 %v167
    %328 = vmatpush1.msra.mxu0 %v166
    %329 = vmatprep.subr.mxu0 %v163
    %330 = vmatpush1.msra.mxu0 %v162
    %331 = vmatprep.subr.mxu0 %v159
    %332 = vmatpush1.msra.mxu0 %v158
    %333 = vmatprep.subr.mxu0 %v155
    %334 = vmatpush1.msra.mxu0 %v154
    %335 = vmatprep.subr.mxu0 %v151
    %336 = vmatpush1.msra.mxu0 %v150
    %337 = vmatprep.subr.mxu0 %v147
    %338 = vmatpush1.msra.mxu0 %v146
    %339 = vmatprep.subr.mxu0 %v143
    %340 = vmatpush1.msra.mxu0 %v142
    %341 = vmatprep.subr.mxu0 %v139
    %342 = vmatpush1.msra.mxu0 %v138
    %343 = vmatprep.subr.mxu0 %v135
    %344 = vmatpush1.msra.mxu0 %v134
    %345 = vmatprep.subr.mxu0 %v131
    %346 = vmatpush1.msra.mxu0 %v130
    %347 = vmatprep.subr.mxu0 %v127
    %348 = vmatpush1.msra.mxu0 %v126
    %349 = vmatprep.subr.mxu0 %v123
    %350 = vmatpush1.msra.mxu0 %v122
    %351 = vmatprep.subr.mxu0 0.0
    %352 = vmatpush2.msra.mxu0 0.0
    %353 = vmatprep.subr.mxu0 0.0
    %354 = vmatpush2.msra.mxu0 0.0
    %355 = vmatprep.subr.mxu0 0.0
    %356 = vmatpush2.msra.mxu0 0.0
    %357 = vmatprep.subr.mxu0 0.0
    %358 = vmatpush2.msra.mxu0 0.0
    %359 = vmatprep.subr.mxu0 0.0
    %360 = vmatpush2.msra.mxu0 0.0
    %361 = vmatprep.subr.mxu0 0.0
    %362 = vmatpush2.msra.mxu0 0.0
    %363 = vmatprep.subr.mxu0 0.0
    %364 = vmatpush2.msra.mxu0 0.0
    %365 = vmatprep.subr.mxu0 0.0
    %366 = vmatpush2.msra.mxu0 0.0
    %367 = vmatprep.subr.mxu0 0.0
    %368 = vmatpush2.msra.mxu0 0.0
    %369 = vmatprep.subr.mxu0 0.0
    %370 = vmatpush2.msra.mxu0 0.0
    %371 = vmatprep.subr.mxu0 0.0
    %372 = vmatpush2.msra.mxu0 0.0
    %373 = vmatprep.subr.mxu0 0.0
    %374 = vmatpush2.msra.mxu0 0.0
    %375 = vmatprep.subr.mxu0 0.0
    %376 = vmatpush2.msra.mxu0 0.0
    %377 = vmatprep.subr.mxu0 0.0
    %378 = vmatpush2.msra.mxu0 0.0
    %379 = vmatprep.subr.mxu0 0.0
    %380 = vmatpush2.msra.mxu0 0.0
    %381 = vmatprep.subr.mxu0 0.0
    %382 = vmatpush2.msra.mxu0 0.0
    %383 = vmatprep.mubr.f32.mxu0 0.0
    %384 = vmatmul.mubr.f32.gmra.mxu0 %v112
    %v385 = vpop.f32.mrf.mxu0
    %v386 = vadd.f32 %v197, %v385
    %v387 = vpop.f32.mrf.mxu0
    %v388 = vadd.f32 %v201, %v387
    %389 = vmatprep.mubr.f32.mxu0 0.0
    %390 = vmatmul.mubr.f32.gmra.mxu0 %v113
    %v391 = vpop.f32.mrf.mxu0
    %v392 = vadd.f32 %v197, %v391
    %v393 = vpop.f32.mrf.mxu0
    %v394 = vadd.f32 %v201, %v393
    %395 = vmatprep.mubr.f32.mxu0 0.0
    %396 = vmatmul.mubr.f32.gmra.mxu0 %v114
    %v397 = vpop.f32.mrf.mxu0
    %v398 = vadd.f32 %v197, %v397
    %v399 = vpop.f32.mrf.mxu0
    %v400 = vadd.f32 %v201, %v399
    %401 = vmatprep.mubr.f32.mxu0 0.0
    %402 = vmatmul.mubr.f32.gmra.mxu0 %v115
    %v403 = vpop.f32.mrf.mxu0
    %v404 = vadd.f32 %v197, %v403
    %v405 = vpop.f32.mrf.mxu0
    %v406 = vadd.f32 %v201, %v405
    %407 = vmatprep.mubr.f32.mxu0 0.0
    %408 = vmatmul.mubr.f32.gmra.mxu0 %v116
    %v409 = vpop.f32.mrf.mxu0
    %v410 = vadd.f32 %v197, %v409
    %v411 = vpop.f32.mrf.mxu0
    %v412 = vadd.f32 %v201, %v411
    %413 = vmatprep.mubr.f32.mxu0 0.0
    %414 = vmatmul.mubr.f32.gmra.mxu0 %v117
    %v415 = vpop.f32.mrf.mxu0
    %v416 = vadd.f32 %v197, %v415
    %v417 = vpop.f32.mrf.mxu0
    %v418 = vadd.f32 %v201, %v417
    %419 = vmatprep.mubr.f32.mxu0 0.0
    %420 = vmatmul.mubr.f32.gmra.mxu0 %v118
    %v421 = vpop.f32.mrf.mxu0
    %v422 = vadd.f32 %v197, %v421
    %v423 = vpop.f32.mrf.mxu0
    %v424 = vadd.f32 %v201, %v423
    %425 = vmatprep.mubr.f32.mxu0 0.0
    %426 = vmatmul.mubr.f32.gmra.mxu0 %v119
    %v427 = vpop.f32.mrf.mxu0
    %v428 = vadd.f32 %v197, %v427
    %v429 = vpop.f32.mrf.mxu0
    %v430 = vadd.f32 %v201, %v429
    %431 = vdwg.mxu0
    %432 = vst [vmem:[#allocation2] sm:$0xff] %v273
    %433 = vst [vmem:[#allocation2 + $0x8] sm:$0xff] %v275
    %434 = vst [vmem:[#allocation2 + $0x10] sm:$0xff] %v386
    %435 = vst [vmem:[#allocation2 + $0x18] sm:$0xff] %v388
    %436 = vst [vmem:[#allocation2 + $0x20] sm:$0xff] %v279
    %437 = vst [vmem:[#allocation2 + $0x28] sm:$0xff] %v281
    %438 = vst [vmem:[#allocation2 + $0x30] sm:$0xff] %v392
    %439 = vst [vmem:[#allocation2 + $0x38] sm:$0xff] %v394
    %440 = vst [vmem:[#allocation2 + $0x40] sm:$0xff] %v285
    %441 = vst [vmem:[#allocation2 + $0x48] sm:$0xff] %v287
    %442 = vst [vmem:[#allocation2 + $0x50] sm:$0xff] %v398
    %443 = vst [vmem:[#allocation2 + $0x58] sm:$0xff] %v400
    %444 = vst [vmem:[#allocation2 + $0x60] sm:$0xff] %v291
    %445 = vst [vmem:[#allocation2 + $0x68] sm:$0xff] %v293
    %446 = vst [vmem:[#allocation2 + $0x70] sm:$0xff] %v404
    %447 = vst [vmem:[#allocation2 + $0x78] sm:$0xff] %v406
    %448 = vst [vmem:[#allocation2 + $0x80] sm:$0xff] %v297
    %449 = vst [vmem:[#allocation2 + $0x88] sm:$0xff] %v299
    %450 = vst [vmem:[#allocation2 + $0x90] sm:$0xff] %v410
    %451 = vst [vmem:[#allocation2 + $0x98] sm:$0xff] %v412
    %452 = vst [vmem:[#allocation2 + $0xa0] sm:$0xff] %v303
    %453 = vst [vmem:[#allocation2 + $0xa8] sm:$0xff] %v305
    %454 = vst [vmem:[#allocation2 + $0xb0] sm:$0xff] %v416
    %455 = vst [vmem:[#allocation2 + $0xb8] sm:$0xff] %v418
    %456 = vst [vmem:[#allocation2 + $0xc0] sm:$0xff] %v309
    %457 = vst [vmem:[#allocation2 + $0xc8] sm:$0xff] %v311
    %458 = vst [vmem:[#allocation2 + $0xd0] sm:$0xff] %v422
    %459 = vst [vmem:[#allocation2 + $0xd8] sm:$0xff] %v424
    %460 = vst [vmem:[#allocation2 + $0xe0] sm:$0xff] %v315
    %461 = vst [vmem:[#allocation2 + $0xe8] sm:$0xff] %v317
    %462 = vst [vmem:[#allocation2 + $0xf0] sm:$0xff] %v428
    %463 = vst [vmem:[#allocation2 + $0xf8] sm:$0xff] %v430
    %v464 = vld [vmem:[#allocation7] sm:$0xff]
    %v465 = vld [vmem:[#allocation9] sm:$0xff]
    %s466 = smul.u32 0, 4
    %s467 = smul.addr %s466, 8
    %s468 = scalar_lea.vmem [#allocation2], %s467
    %v469 = vld [vmem:[%s468] sm:$0xff]
    %v470 = vld [vmem:[%s468 + $0x8] sm:$0xff]
    %v471 = vld [vmem:[%s468 + $0x10] sm:$0xff]
    %v472 = vld [vmem:[%s468 + $0x18] sm:$0xff]
    %v473 = vld [vmem:[#allocation12] sm:$0xff]
    %v474 = vld [vmem:[#allocation12 + $0x8] sm:$0xff]
    %v475 = vld [vmem:[#allocation12 + $0x10] sm:$0xff]
    %v476 = vld [vmem:[#allocation12 + $0x18] sm:$0xff]
    %v477 = vld [vmem:[#allocation12 + $0x20] sm:$0xff]
    %v478 = vld [vmem:[#allocation12 + $0x28] sm:$0xff]
    %v479 = vld [vmem:[#allocation12 + $0x30] sm:$0xff]
    %v480 = vld [vmem:[#allocation12 + $0x38] sm:$0xff]
    %v481 = vld [vmem:[#allocation12 + $0x40] sm:$0xff]
    %v482 = vld [vmem:[#allocation12 + $0x48] sm:$0xff]
    %v483 = vld [vmem:[#allocation12 + $0x50] sm:$0xff]
    %v484 = vld [vmem:[#allocation12 + $0x58] sm:$0xff]
    %v485 = vld [vmem:[#allocation12 + $0x60] sm:$0xff]
    %v486 = vld [vmem:[#allocation12 + $0x68] sm:$0xff]
    %v487 = vld [vmem:[#allocation12 + $0x70] sm:$0xff]
    %v488 = vld [vmem:[#allocation12 + $0x78] sm:$0xff]
    %v489 = vld [vmem:[#allocation12 + $0x80] sm:$0xff]
    %v490 = vld [vmem:[#allocation12 + $0x88] sm:$0xff]
    %v491 = vld [vmem:[#allocation12 + $0x90] sm:$0xff]
    %v492 = vld [vmem:[#allocation12 + $0x98] sm:$0xff]
    %v493 = vld [vmem:[#allocation12 + $0xa0] sm:$0xff]
    %v494 = vld [vmem:[#allocation12 + $0xa8] sm:$0xff]
    %v495 = vld [vmem:[#allocation12 + $0xb0] sm:$0xff]
    %v496 = vld [vmem:[#allocation12 + $0xb8] sm:$0xff]
    %v497 = vld [vmem:[#allocation12 + $0xc0] sm:$0xff]
    %v498 = vld [vmem:[#allocation12 + $0xc8] sm:$0xff]
    %v499 = vld [vmem:[#allocation12 + $0xd0] sm:$0xff]
    %v500 = vld [vmem:[#allocation12 + $0xd8] sm:$0xff]
    %v501 = vld [vmem:[#allocation12 + $0xe0] sm:$0xff]
    %v502 = vld [vmem:[#allocation12 + $0xe8] sm:$0xff]
    %v503 = vld [vmem:[#allocation12 + $0xf0] sm:$0xff]
    %v504 = vld [vmem:[#allocation12 + $0xf8] sm:$0xff]
    %v505 = vld [vmem:[#allocation12 + $0x100] sm:$0xff]
    %v506 = vld [vmem:[#allocation12 + $0x108] sm:$0xff]
    %v507 = vld [vmem:[#allocation12 + $0x110] sm:$0xff]
    %v508 = vld [vmem:[#allocation12 + $0x118] sm:$0xff]
    %v509 = vld [vmem:[#allocation12 + $0x120] sm:$0xff]
    %v510 = vld [vmem:[#allocation12 + $0x128] sm:$0xff]
    %v511 = vld [vmem:[#allocation12 + $0x130] sm:$0xff]
    %v512 = vld [vmem:[#allocation12 + $0x138] sm:$0xff]
    %v513 = vld [vmem:[#allocation12 + $0x140] sm:$0xff]
    %v514 = vld [vmem:[#allocation12 + $0x148] sm:$0xff]
    %v515 = vld [vmem:[#allocation12 + $0x150] sm:$0xff]
    %v516 = vld [vmem:[#allocation12 + $0x158] sm:$0xff]
    %v517 = vld [vmem:[#allocation12 + $0x160] sm:$0xff]
    %v518 = vld [vmem:[#allocation12 + $0x168] sm:$0xff]
    %v519 = vld [vmem:[#allocation12 + $0x170] sm:$0xff]
    %v520 = vld [vmem:[#allocation12 + $0x178] sm:$0xff]
    %v521 = vld [vmem:[#allocation12 + $0x180] sm:$0xff]
    %v522 = vld [vmem:[#allocation12 + $0x188] sm:$0xff]
    %v523 = vld [vmem:[#allocation12 + $0x190] sm:$0xff]
    %v524 = vld [vmem:[#allocation12 + $0x198] sm:$0xff]
    %v525 = vld [vmem:[#allocation12 + $0x1a0] sm:$0xff]
    %v526 = vld [vmem:[#allocation12 + $0x1a8] sm:$0xff]
    %v527 = vld [vmem:[#allocation12 + $0x1b0] sm:$0xff]
    %v528 = vld [vmem:[#allocation12 + $0x1b8] sm:$0xff]
    %v529 = vld [vmem:[#allocation12 + $0x1c0] sm:$0xff]
    %v530 = vld [vmem:[#allocation12 + $0x1c8] sm:$0xff]
    %v531 = vld [vmem:[#allocation12 + $0x1d0] sm:$0xff]
    %v532 = vld [vmem:[#allocation12 + $0x1d8] sm:$0xff]
    %v533 = vld [vmem:[#allocation12 + $0x1e0] sm:$0xff]
    %v534 = vld [vmem:[#allocation12 + $0x1e8] sm:$0xff]
    %v535 = vld [vmem:[#allocation12 + $0x1f0] sm:$0xff]
    %v536 = vld [vmem:[#allocation12 + $0x1f8] sm:$0xff]
    %537 = vmatprep.subr.mxu0 %v534
    %538 = vmatpush1.msra.mxu0 %v533
    %539 = vmatprep.subr.mxu0 %v530
    %540 = vmatpush1.msra.mxu0 %v529
    %541 = vmatprep.subr.mxu0 %v526
    %542 = vmatpush1.msra.mxu0 %v525
    %543 = vmatprep.subr.mxu0 %v522
    %544 = vmatpush1.msra.mxu0 %v521
    %545 = vmatprep.subr.mxu0 %v518
    %546 = vmatpush1.msra.mxu0 %v517
    %547 = vmatprep.subr.mxu0 %v514
    %548 = vmatpush1.msra.mxu0 %v513
    %549 = vmatprep.subr.mxu0 %v510
    %550 = vmatpush1.msra.mxu0 %v509
    %551 = vmatprep.subr.mxu0 %v506
    %552 = vmatpush1.msra.mxu0 %v505
    %553 = vmatprep.subr.mxu0 %v502
    %554 = vmatpush1.msra.mxu0 %v501
    %555 = vmatprep.subr.mxu0 %v498
    %556 = vmatpush1.msra.mxu0 %v497
    %557 = vmatprep.subr.mxu0 %v494
    %558 = vmatpush1.msra.mxu0 %v493
    %559 = vmatprep.subr.mxu0 %v490
    %560 = vmatpush1.msra.mxu0 %v489
    %561 = vmatprep.subr.mxu0 %v486
    %562 = vmatpush1.msra.mxu0 %v485
    %563 = vmatprep.subr.mxu0 %v482
    %564 = vmatpush1.msra.mxu0 %v481
    %565 = vmatprep.subr.mxu0 %v478
    %566 = vmatpush1.msra.mxu0 %v477
    %567 = vmatprep.subr.mxu0 %v474
    %568 = vmatpush1.msra.mxu0 %v473
    %569 = vmatprep.subr.mxu0 0.0
    %570 = vmatpush2.msra.mxu0 0.0
    %571 = vmatprep.subr.mxu0 0.0
    %572 = vmatpush2.msra.mxu0 0.0
    %573 = vmatprep.subr.mxu0 0.0
    %574 = vmatpush2.msra.mxu0 0.0
    %575 = vmatprep.subr.mxu0 0.0
    %576 = vmatpush2.msra.mxu0 0.0
    %577 = vmatprep.subr.mxu0 0.0
    %578 = vmatpush2.msra.mxu0 0.0
    %579 = vmatprep.subr.mxu0 0.0
    %580 = vmatpush2.msra.mxu0 0.0
    %581 = vmatprep.subr.mxu0 0.0
    %582 = vmatpush2.msra.mxu0 0.0
    %583 = vmatprep.subr.mxu0 0.0
    %584 = vmatpush2.msra.mxu0 0.0
    %585 = vmatprep.subr.mxu0 0.0
    %586 = vmatpush2.msra.mxu0 0.0
    %587 = vmatprep.subr.mxu0 0.0
    %588 = vmatpush2.msra.mxu0 0.0
    %589 = vmatprep.subr.mxu0 0.0
    %590 = vmatpush2.msra.mxu0 0.0
    %591 = vmatprep.subr.mxu0 0.0
    %592 = vmatpush2.msra.mxu0 0.0
    %593 = vmatprep.subr.mxu0 0.0
    %594 = vmatpush2.msra.mxu0 0.0
    %595 = vmatprep.subr.mxu0 0.0
    %596 = vmatpush2.msra.mxu0 0.0
    %597 = vmatprep.subr.mxu0 0.0
    %598 = vmatpush2.msra.mxu0 0.0
    %599 = vmatprep.subr.mxu0 0.0
    %600 = vmatpush2.msra.mxu0 0.0
    %601 = vmatprep.mubr.f32.mxu0 0.0
    %602 = vmatmul.mubr.f32.gmra.mxu0 %v464
    %v603 = vpop.f32.mrf.mxu0
    %v604 = vadd.f32 0.0, %v603
    %v605 = vpop.f32.mrf.mxu0
    %v606 = vadd.f32 0.0, %v605
    %607 = vdwg.mxu0
    %608 = vmatprep.subr.mxu0 %v536
    %609 = vmatpush1.msra.mxu0 %v535
    %610 = vmatprep.subr.mxu0 %v532
    %611 = vmatpush1.msra.mxu0 %v531
    %612 = vmatprep.subr.mxu0 %v528
    %613 = vmatpush1.msra.mxu0 %v527
    %614 = vmatprep.subr.mxu0 %v524
    %615 = vmatpush1.msra.mxu0 %v523
    %616 = vmatprep.subr.mxu0 %v520
    %617 = vmatpush1.msra.mxu0 %v519
    %618 = vmatprep.subr.mxu0 %v516
    %619 = vmatpush1.msra.mxu0 %v515
    %620 = vmatprep.subr.mxu0 %v512
    %621 = vmatpush1.msra.mxu0 %v511
    %622 = vmatprep.subr.mxu0 %v508
    %623 = vmatpush1.msra.mxu0 %v507
    %624 = vmatprep.subr.mxu0 %v504
    %625 = vmatpush1.msra.mxu0 %v503
    %626 = vmatprep.subr.mxu0 %v500
    %627 = vmatpush1.msra.mxu0 %v499
    %628 = vmatprep.subr.mxu0 %v496
    %629 = vmatpush1.msra.mxu0 %v495
    %630 = vmatprep.subr.mxu0 %v492
    %631 = vmatpush1.msra.mxu0 %v491
    %632 = vmatprep.subr.mxu0 %v488
    %633 = vmatpush1.msra.mxu0 %v487
    %634 = vmatprep.subr.mxu0 %v484
    %635 = vmatpush1.msra.mxu0 %v483
    %636 = vmatprep.subr.mxu0 %v480
    %637 = vmatpush1.msra.mxu0 %v479
    %638 = vmatprep.subr.mxu0 %v476
    %639 = vmatpush1.msra.mxu0 %v475
    %640 = vmatprep.subr.mxu0 0.0
    %641 = vmatpush2.msra.mxu0 0.0
    %642 = vmatprep.subr.mxu0 0.0
    %643 = vmatpush2.msra.mxu0 0.0
    %644 = vmatprep.subr.mxu0 0.0
    %645 = vmatpush2.msra.mxu0 0.0
    %646 = vmatprep.subr.mxu0 0.0
    %647 = vmatpush2.msra.mxu0 0.0
    %648 = vmatprep.subr.mxu0 0.0
    %649 = vmatpush2.msra.mxu0 0.0
    %650 = vmatprep.subr.mxu0 0.0
    %651 = vmatpush2.msra.mxu0 0.0
    %652 = vmatprep.subr.mxu0 0.0
    %653 = vmatpush2.msra.mxu0 0.0
    %654 = vmatprep.subr.mxu0 0.0
    %655 = vmatpush2.msra.mxu0 0.0
    %656 = vmatprep.subr.mxu0 0.0
    %657 = vmatpush2.msra.mxu0 0.0
    %658 = vmatprep.subr.mxu0 0.0
    %659 = vmatpush2.msra.mxu0 0.0
    %660 = vmatprep.subr.mxu0 0.0
    %661 = vmatpush2.msra.mxu0 0.0
    %662 = vmatprep.subr.mxu0 0.0
    %663 = vmatpush2.msra.mxu0 0.0
    %664 = vmatprep.subr.mxu0 0.0
    %665 = vmatpush2.msra.mxu0 0.0
    %666 = vmatprep.subr.mxu0 0.0
    %667 = vmatpush2.msra.mxu0 0.0
    %668 = vmatprep.subr.mxu0 0.0
    %669 = vmatpush2.msra.mxu0 0.0
    %670 = vmatprep.subr.mxu0 0.0
    %671 = vmatpush2.msra.mxu0 0.0
    %672 = vmatprep.mubr.f32.mxu0 0.0
    %673 = vmatmul.mubr.f32.gmra.mxu0 %v464
    %v674 = vpop.f32.mrf.mxu0
    %v675 = vadd.f32 0.0, %v674
    %v676 = vpop.f32.mrf.mxu0
    %v677 = vadd.f32 0.0, %v676
    %678 = vdwg.mxu0
    %v679 = vadd.f32 %v469, %v604
    %v680 = vadd.f32 %v470, %v606
    %v681 = vadd.f32 %v471, %v675
    %v682 = vadd.f32 %v472, %v677
    %v683 = vxor.u32 %v679, 2147483648
    %v684 = vmul.f32 %v683, 1.442695
    %v685 = vpow.pop %v684
    %v686 = vadd.f32 %v685, 1.0
    %v687 = vrcp.pop %v686
    %v688 = vmul.f32 1.0, %v687
    %v689 = vxor.u32 %v680, 2147483648
    %v690 = vmul.f32 %v689, 1.442695
    %v691 = vpow.pop %v690
    %v692 = vadd.f32 %v691, 1.0
    %v693 = vrcp.pop %v692
    %v694 = vmul.f32 1.0, %v693
    %v695 = vtanh.pop %v681
    %v696 = vxor.u32 %v682, 2147483648
    %v697 = vmul.f32 %v696, 1.442695
    %v698 = vpow.pop %v697
    %v699 = vadd.f32 %v698, 1.0
    %v700 = vrcp.pop %v699
    %v701 = vmul.f32 1.0, %v700
    %v702 = vmul.f32 %v694, %v465
    %v703 = vmul.f32 %v688, %v695
    %v704 = vadd.f32 %v702, %v703
    %v705 = vtanh.pop %v704
    %v706 = vmul.f32 %v701, %v705
    %707 = vst [vmem:[#allocation3] sm:$0xff] %v706
    %s708 = smul.u32 1, 4
    %s709 = smul.addr %s708, 8
    %s710 = scalar_lea.vmem [#allocation2], %s709
    %v711 = vld [vmem:[%s710] sm:$0xff]
    %v712 = vld [vmem:[%s710 + $0x8] sm:$0xff]
    %v713 = vld [vmem:[%s710 + $0x10] sm:$0xff]
    %v714 = vld [vmem:[%s710 + $0x18] sm:$0xff]
    %v715 = vld [vmem:[#allocation12] sm:$0xff]
    %v716 = vld [vmem:[#allocation12 + $0x8] sm:$0xff]
    %v717 = vld [vmem:[#allocation12 + $0x10] sm:$0xff]
    %v718 = vld [vmem:[#allocation12 + $0x18] sm:$0xff]
    %v719 = vld [vmem:[#allocation12 + $0x20] sm:$0xff]
    %v720 = vld [vmem:[#allocation12 + $0x28] sm:$0xff]
    %v721 = vld [vmem:[#allocation12 + $0x30] sm:$0xff]
    %v722 = vld [vmem:[#allocation12 + $0x38] sm:$0xff]
    %v723 = vld [vmem:[#allocation12 + $0x40] sm:$0xff]
    %v724 = vld [vmem:[#allocation12 + $0x48] sm:$0xff]
    %v725 = vld [vmem:[#allocation12 + $0x50] sm:$0xff]
    %v726 = vld [vmem:[#allocation12 + $0x58] sm:$0xff]
    %v727 = vld [vmem:[#allocation12 + $0x60] sm:$0xff]
    %v728 = vld [vmem:[#allocation12 + $0x68] sm:$0xff]
    %v729 = vld [vmem:[#allocation12 + $0x70] sm:$0xff]
    %v730 = vld [vmem:[#allocation12 + $0x78] sm:$0xff]
    %v731 = vld [vmem:[#allocation12 + $0x80] sm:$0xff]
    %v732 = vld [vmem:[#allocation12 + $0x88] sm:$0xff]
    %v733 = vld [vmem:[#allocation12 + $0x90] sm:$0xff]
    %v734 = vld [vmem:[#allocation12 + $0x98] sm:$0xff]
    %v735 = vld [vmem:[#allocation12 + $0xa0] sm:$0xff]
    %v736 = vld [vmem:[#allocation12 + $0xa8] sm:$0xff]
    %v737 = vld [vmem:[#allocation12 + $0xb0] sm:$0xff]
    %v738 = vld [vmem:[#allocation12 + $0xb8] sm:$0xff]
    %v739 = vld [vmem:[#allocation12 + $0xc0] sm:$0xff]
    %v740 = vld [vmem:[#allocation12 + $0xc8] sm:$0xff]
    %v741 = vld [vmem:[#allocation12 + $0xd0] sm:$0xff]
    %v742 = vld [vmem:[#allocation12 + $0xd8] sm:$0xff]
    %v743 = vld [vmem:[#allocation12 + $0xe0] sm:$0xff]
    %v744 = vld [vmem:[#allocation12 + $0xe8] sm:$0xff]
    %v745 = vld [vmem:[#allocation12 + $0xf0] sm:$0xff]
    %v746 = vld [vmem:[#allocation12 + $0xf8] sm:$0xff]
    %v747 = vld [vmem:[#allocation12 + $0x100] sm:$0xff]
    %v748 = vld [vmem:[#allocation12 + $0x108] sm:$0xff]
    %v749 = vld [vmem:[#allocation12 + $0x110] sm:$0xff]
    %v750 = vld [vmem:[#allocation12 + $0x118] sm:$0xff]
    %v751 = vld [vmem:[#allocation12 + $0x120] sm:$0xff]
    %v752 = vld [vmem:[#allocation12 + $0x128] sm:$0xff]
    %v753 = vld [vmem:[#allocation12 + $0x130] sm:$0xff]
    %v754 = vld [vmem:[#allocation12 + $0x138] sm:$0xff]
    %v755 = vld [vmem:[#allocation12 + $0x140] sm:$0xff]
    %v756 = vld [vmem:[#allocation12 + $0x148] sm:$0xff]
    %v757 = vld [vmem:[#allocation12 + $0x150] sm:$0xff]
    %v758 = vld [vmem:[#allocation12 + $0x158] sm:$0xff]
    %v759 = vld [vmem:[#allocation12 + $0x160] sm:$0xff]
    %v760 = vld [vmem:[#allocation12 + $0x168] sm:$0xff]
    %v761 = vld [vmem:[#allocation12 + $0x170] sm:$0xff]
    %v762 = vld [vmem:[#allocation12 + $0x178] sm:$0xff]
    %v763 = vld [vmem:[#allocation12 + $0x180] sm:$0xff]
    %v764 = vld [vmem:[#allocation12 + $0x188] sm:$0xff]
    %v765 = vld [vmem:[#allocation12 + $0x190] sm:$0xff]
    %v766 = vld [vmem:[#allocation12 + $0x198] sm:$0xff]
    %v767 = vld [vmem:[#allocation12 + $0x1a0] sm:$0xff]
    %v768 = vld [vmem:[#allocation12 + $0x1a8] sm:$0xff]
    %v769 = vld [vmem:[#allocation12 + $0x1b0] sm:$0xff]
    %v770 = vld [vmem:[#allocation12 + $0x1b8] sm:$0xff]
    %v771 = vld [vmem:[#allocation12 + $0x1c0] sm:$0xff]
    %v772 = vld [vmem:[#allocation12 + $0x1c8] sm:$0xff]
    %v773 = vld [vmem:[#allocation12 + $0x1d0] sm:$0xff]
    %v774 = vld [vmem:[#allocation12 + $0x1d8] sm:$0xff]
    %v775 = vld [vmem:[#allocation12 + $0x1e0] sm:$0xff]
    %v776 = vld [vmem:[#allocation12 + $0x1e8] sm:$0xff]
    %v777 = vld [vmem:[#allocation12 + $0x1f0] sm:$0xff]
    %v778 = vld [vmem:[#allocation12 + $0x1f8] sm:$0xff]
    %779 = vmatprep.subr.mxu0 %v776
    %780 = vmatpush1.msra.mxu0 %v775
    %781 = vmatprep.subr.mxu0 %v772
    %782 = vmatpush1.msra.mxu0 %v771
    %783 = vmatprep.subr.mxu0 %v768
    %784 = vmatpush1.msra.mxu0 %v767
    %785 = vmatprep.subr.mxu0 %v764
    %786 = vmatpush1.msra.mxu0 %v763
    %787 = vmatprep.subr.mxu0 %v760
    %788 = vmatpush1.msra.mxu0 %v759
    %789 = vmatprep.subr.mxu0 %v756
    %790 = vmatpush1.msra.mxu0 %v755
    %791 = vmatprep.subr.mxu0 %v752
    %792 = vmatpush1.msra.mxu0 %v751
    %793 = vmatprep.subr.mxu0 %v748
    %794 = vmatpush1.msra.mxu0 %v747
    %795 = vmatprep.subr.mxu0 %v744
    %796 = vmatpush1.msra.mxu0 %v743
    %797 = vmatprep.subr.mxu0 %v740
    %798 = vmatpush1.msra.mxu0 %v739
    %799 = vmatprep.subr.mxu0 %v736
    %800 = vmatpush1.msra.mxu0 %v735
    %801 = vmatprep.subr.mxu0 %v732
    %802 = vmatpush1.msra.mxu0 %v731
    %803 = vmatprep.subr.mxu0 %v728
    %804 = vmatpush1.msra.mxu0 %v727
    %805 = vmatprep.subr.mxu0 %v724
    %806 = vmatpush1.msra.mxu0 %v723
    %807 = vmatprep.subr.mxu0 %v720
    %808 = vmatpush1.msra.mxu0 %v719
    %809 = vmatprep.subr.mxu0 %v716
    %810 = vmatpush1.msra.mxu0 %v715
    %811 = vmatprep.subr.mxu0 0.0
    %812 = vmatpush2.msra.mxu0 0.0
    %813 = vmatprep.subr.mxu0 0.0
    %814 = vmatpush2.msra.mxu0 0.0
    %815 = vmatprep.subr.mxu0 0.0
    %816 = vmatpush2.msra.mxu0 0.0
    %817 = vmatprep.subr.mxu0 0.0
    %818 = vmatpush2.msra.mxu0 0.0
    %819 = vmatprep.subr.mxu0 0.0
    %820 = vmatpush2.msra.mxu0 0.0
    %821 = vmatprep.subr.mxu0 0.0
    %822 = vmatpush2.msra.mxu0 0.0
    %823 = vmatprep.subr.mxu0 0.0
    %824 = vmatpush2.msra.mxu0 0.0
    %825 = vmatprep.subr.mxu0 0.0
    %826 = vmatpush2.msra.mxu0 0.0
    %827 = vmatprep.subr.mxu0 0.0
    %828 = vmatpush2.msra.mxu0 0.0
    %829 = vmatprep.subr.mxu0 0.0
    %830 = vmatpush2.msra.mxu0 0.0
    %831 = vmatprep.subr.mxu0 0.0
    %832 = vmatpush2.msra.mxu0 0.0
    %833 = vmatprep.subr.mxu0 0.0
    %834 = vmatpush2.msra.mxu0 0.0
    %835 = vmatprep.subr.mxu0 0.0
    %836 = vmatpush2.msra.mxu0 0.0
    %837 = vmatprep.subr.mxu0 0.0
    %838 = vmatpush2.msra.mxu0 0.0
    %839 = vmatprep.subr.mxu0 0.0
    %840 = vmatpush2.msra.mxu0 0.0
    %841 = vmatprep.subr.mxu0 0.0
    %842 = vmatpush2.msra.mxu0 0.0
    %843 = vmatprep.mubr.f32.mxu0 0.0
    %844 = vmatmul.mubr.f32.gmra.mxu0 %v706
    %v845 = vpop.f32.mrf.mxu0
    %v846 = vadd.f32 0.0, %v845
    %v847 = vpop.f32.mrf.mxu0
    %v848 = vadd.f32 0.0, %v847
    %849 = vdwg.mxu0
    %850 = vmatprep.subr.mxu0 %v778
    %851 = vmatpush1.msra.mxu0 %v777
    %852 = vmatprep.subr.mxu0 %v774
    %853 = vmatpush1.msra.mxu0 %v773
    %854 = vmatprep.subr.mxu0 %v770
    %855 = vmatpush1.msra.mxu0 %v769
    %856 = vmatprep.subr.mxu0 %v766
    %857 = vmatpush1.msra.mxu0 %v765
    %858 = vmatprep.subr.mxu0 %v762
    %859 = vmatpush1.msra.mxu0 %v761
    %860 = vmatprep.subr.mxu0 %v758
    %861 = vmatpush1.msra.mxu0 %v757
    %862 = vmatprep.subr.mxu0 %v754
    %863 = vmatpush1.msra.mxu0 %v753
    %864 = vmatprep.subr.mxu0 %v750
    %865 = vmatpush1.msra.mxu0 %v749
    %866 = vmatprep.subr.mxu0 %v746
    %867 = vmatpush1.msra.mxu0 %v745
    %868 = vmatprep.subr.mxu0 %v742
    %869 = vmatpush1.msra.mxu0 %v741
    %870 = vmatprep.subr.mxu0 %v738
    %871 = vmatpush1.msra.mxu0 %v737
    %872 = vmatprep.subr.mxu0 %v734
    %873 = vmatpush1.msra.mxu0 %v733
    %874 = vmatprep.subr.mxu0 %v730
    %875 = vmatpush1.msra.mxu0 %v729
    %876 = vmatprep.subr.mxu0 %v726
    %877 = vmatpush1.msra.mxu0 %v725
    %878 = vmatprep.subr.mxu0 %v722
    %879 = vmatpush1.msra.mxu0 %v721
    %880 = vmatprep.subr.mxu0 %v718
    %881 = vmatpush1.msra.mxu0 %v717
    %882 = vmatprep.subr.mxu0 0.0
    %883 = vmatpush2.msra.mxu0 0.0
    %884 = vmatprep.subr.mxu0 0.0
    %885 = vmatpush2.msra.mxu0 0.0
    %886 = vmatprep.subr.mxu0 0.0
    %887 = vmatpush2.msra.mxu0 0.0
    %888 = vmatprep.subr.mxu0 0.0
    %889 = vmatpush2.msra.mxu0 0.0
    %890 = vmatprep.subr.mxu0 0.0
    %891 = vmatpush2.msra.mxu0 0.0
    %892 = vmatprep.subr.mxu0 0.0
    %893 = vmatpush2.msra.mxu0 0.0
    %894 = vmatprep.subr.mxu0 0.0
    %895 = vmatpush2.msra.mxu0 0.0
    %896 = vmatprep.subr.mxu0 0.0
    %897 = vmatpush2.msra.mxu0 0.0
    %898 = vmatprep.subr.mxu0 0.0
    %899 = vmatpush2.msra.mxu0 0.0
    %900 = vmatprep.subr.mxu0 0.0
    %901 = vmatpush2.msra.mxu0 0.0
    %902 = vmatprep.subr.mxu0 0.0
    %903 = vmatpush2.msra.mxu0 0.0
    %904 = vmatprep.subr.mxu0 0.0
    %905 = vmatpush2.msra.mxu0 0.0
    %906 = vmatprep.subr.mxu0 0.0
    %907 = vmatpush2.msra.mxu0 0.0
    %908 = vmatprep.subr.mxu0 0.0
    %909 = vmatpush2.msra.mxu0 0.0
    %910 = vmatprep.subr.mxu0 0.0
    %911 = vmatpush2.msra.mxu0 0.0
    %912 = vmatprep.subr.mxu0 0.0
    %913 = vmatpush2.msra.mxu0 0.0
    %914 = vmatprep.mubr.f32.mxu0 0.0
    %915 = vmatmul.mubr.f32.gmra.mxu0 %v706
    %v916 = vpop.f32.mrf.mxu0
    %v917 = vadd.f32 0.0, %v916
    %v918 = vpop.f32.mrf.mxu0
    %v919 = vadd.f32 0.0, %v918
    %920 = vdwg.mxu0
    %v921 = vadd.f32 %v711, %v846
    %v922 = vadd.f32 %v712, %v848
    %v923 = vadd.f32 %v713, %v917
    %v924 = vadd.f32 %v714, %v919
    %v925 = vxor.u32 %v921, 2147483648
    %v926 = vmul.f32 %v925, 1.442695
    %v927 = vpow.pop %v926
    %v928 = vadd.f32 %v927, 1.0
    %v929 = vrcp.pop %v928
    %v930 = vmul.f32 1.0, %v929
    %v931 = vxor.u32 %v922, 2147483648
    %v932 = vmul.f32 %v931, 1.442695
    %v933 = vpow.pop %v932
    %v934 = vadd.f32 %v933, 1.0
    %v935 = vrcp.pop %v934
    %v936 = vmul.f32 1.0, %v935
    %v937 = vtanh.pop %v923
    %v938 = vxor.u32 %v924, 2147483648
    %v939 = vmul.f32 %v938, 1.442695
    %v940 = vpow.pop %v939
    %v941 = vadd.f32 %v940, 1.0
    %v942 = vrcp.pop %v941
    %v943 = vmul.f32 1.0, %v942
    %v944 = vmul.f32 %v936, %v704
    %v945 = vmul.f32 %v930, %v937
    %v946 = vadd.f32 %v944, %v945
    %v947 = vtanh.pop %v946
    %v948 = vmul.f32 %v943, %v947
    %s949 = scalar_lea.vmem [#allocation3], 8
    %950 = vst [vmem:[%s949] sm:$0xff] %v948
    %s951 = smul.u32 2, 4
    %s952 = smul.addr %s951, 8
    %s953 = scalar_lea.vmem [#allocation2], %s952
    %v954 = vld [vmem:[%s953] sm:$0xff]
    %v955 = vld [vmem:[%s953 + $0x8] sm:$0xff]
    %v956 = vld [vmem:[%s953 + $0x10] sm:$0xff]
    %v957 = vld [vmem:[%s953 + $0x18] sm:$0xff]
    %v958 = vld [vmem:[#allocation12] sm:$0xff]
    %v959 = vld [vmem:[#allocation12 + $0x8] sm:$0xff]
    %v960 = vld [vmem:[#allocation12 + $0x10] sm:$0xff]
    %v961 = vld [vmem:[#allocation12 + $0x18] sm:$0xff]
    %v962 = vld [vmem:[#allocation12 + $0x20] sm:$0xff]
    %v963 = vld [vmem:[#allocation12 + $0x28] sm:$0xff]
    %v964 = vld [vmem:[#allocation12 + $0x30] sm:$0xff]
    %v965 = vld [vmem:[#allocation12 + $0x38] sm:$0xff]
    %v966 = vld [vmem:[#allocation12 + $0x40] sm:$0xff]
    %v967 = vld [vmem:[#allocation12 + $0x48] sm:$0xff]
    %v968 = vld [vmem:[#allocation12 + $0x50] sm:$0xff]
    %v969 = vld [vmem:[#allocation12 + $0x58] sm:$0xff]
    %v970 = vld [vmem:[#allocation12 + $0x60] sm:$0xff]
    %v971 = vld [vmem:[#allocation12 + $0x68] sm:$0xff]
    %v972 = vld [vmem:[#allocation12 + $0x70] sm:$0xff]
    %v973 = vld [vmem:[#allocation12 + $0x78] sm:$0xff]
    %v974 = vld [vmem:[#allocation12 + $0x80] sm:$0xff]
    %v975 = vld [vmem:[#allocation12 + $0x88] sm:$0xff]
    %v976 = vld [vmem:[#allocation12 + $0x90] sm:$0xff]
    %v977 = vld [vmem:[#allocation12 + $0x98] sm:$0xff]
    %v978 = vld [vmem:[#allocation12 + $0xa0] sm:$0xff]
    %v979 = vld [vmem:[#allocation12 + $0xa8] sm:$0xff]
    %v980 = vld [vmem:[#allocation12 + $0xb0] sm:$0xff]
    %v981 = vld [vmem:[#allocation12 + $0xb8] sm:$0xff]
    %v982 = vld [vmem:[#allocation12 + $0xc0] sm:$0xff]
    %v983 = vld [vmem:[#allocation12 + $0xc8] sm:$0xff]
    %v984 = vld [vmem:[#allocation12 + $0xd0] sm:$0xff]
    %v985 = vld [vmem:[#allocation12 + $0xd8] sm:$0xff]
    %v986 = vld [vmem:[#allocation12 + $0xe0] sm:$0xff]
    %v987 = vld [vmem:[#allocation12 + $0xe8] sm:$0xff]
    %v988 = vld [vmem:[#allocation12 + $0xf0] sm:$0xff]
    %v989 = vld [vmem:[#allocation12 + $0xf8] sm:$0xff]
    %v990 = vld [vmem:[#allocation12 + $0x100] sm:$0xff]
    %v991 = vld [vmem:[#allocation12 + $0x108] sm:$0xff]
    %v992 = vld [vmem:[#allocation12 + $0x110] sm:$0xff]
    %v993 = vld [vmem:[#allocation12 + $0x118] sm:$0xff]
    %v994 = vld [vmem:[#allocation12 + $0x120] sm:$0xff]
    %v995 = vld [vmem:[#allocation12 + $0x128] sm:$0xff]
    %v996 = vld [vmem:[#allocation12 + $0x130] sm:$0xff]
    %v997 = vld [vmem:[#allocation12 + $0x138] sm:$0xff]
    %v998 = vld [vmem:[#allocation12 + $0x140] sm:$0xff]
    %v999 = vld [vmem:[#allocation12 + $0x148] sm:$0xff]
    %v1000 = vld [vmem:[#allocation12 + $0x150] sm:$0xff]
    %v1001 = vld [vmem:[#allocation12 + $0x158] sm:$0xff]
    %v1002 = vld [vmem:[#allocation12 + $0x160] sm:$0xff]
    %v1003 = vld [vmem:[#allocation12 + $0x168] sm:$0xff]
    %v1004 = vld [vmem:[#allocation12 + $0x170] sm:$0xff]
    %v1005 = vld [vmem:[#allocation12 + $0x178] sm:$0xff]
    %v1006 = vld [vmem:[#allocation12 + $0x180] sm:$0xff]
    %v1007 = vld [vmem:[#allocation12 + $0x188] sm:$0xff]
    %v1008 = vld [vmem:[#allocation12 + $0x190] sm:$0xff]
    %v1009 = vld [vmem:[#allocation12 + $0x198] sm:$0xff]
    %v1010 = vld [vmem:[#allocation12 + $0x1a0] sm:$0xff]
    %v1011 = vld [vmem:[#allocation12 + $0x1a8] sm:$0xff]
    %v1012 = vld [vmem:[#allocation12 + $0x1b0] sm:$0xff]
    %v1013 = vld [vmem:[#allocation12 + $0x1b8] sm:$0xff]
    %v1014 = vld [vmem:[#allocation12 + $0x1c0] sm:$0xff]
    %v1015 = vld [vmem:[#allocation12 + $0x1c8] sm:$0xff]
    %v1016 = vld [vmem:[#allocation12 + $0x1d0] sm:$0xff]
    %v1017 = vld [vmem:[#allocation12 + $0x1d8] sm:$0xff]
    %v1018 = vld [vmem:[#allocation12 + $0x1e0] sm:$0xff]
    %v1019 = vld [vmem:[#allocation12 + $0x1e8] sm:$0xff]
    %v1020 = vld [vmem:[#allocation12 + $0x1f0] sm:$0xff]
    %v1021 = vld [vmem:[#allocation12 + $0x1f8] sm:$0xff]
    %1022 = vmatprep.subr.mxu0 %v1019
    %1023 = vmatpush1.msra.mxu0 %v1018
    %1024 = vmatprep.subr.mxu0 %v1015
    %1025 = vmatpush1.msra.mxu0 %v1014
    %1026 = vmatprep.subr.mxu0 %v1011
    %1027 = vmatpush1.msra.mxu0 %v1010
    %1028 = vmatprep.subr.mxu0 %v1007
    %1029 = vmatpush1.msra.mxu0 %v1006
    %1030 = vmatprep.subr.mxu0 %v1003
    %1031 = vmatpush1.msra.mxu0 %v1002
    %1032 = vmatprep.subr.mxu0 %v999
    %1033 = vmatpush1.msra.mxu0 %v998
    %1034 = vmatprep.subr.mxu0 %v995
    %1035 = vmatpush1.msra.mxu0 %v994
    %1036 = vmatprep.subr.mxu0 %v991
    %1037 = vmatpush1.msra.mxu0 %v990
    %1038 = vmatprep.subr.mxu0 %v987
    %1039 = vmatpush1.msra.mxu0 %v986
    %1040 = vmatprep.subr.mxu0 %v983
    %1041 = vmatpush1.msra.mxu0 %v982
    %1042 = vmatprep.subr.mxu0 %v979
    %1043 = vmatpush1.msra.mxu0 %v978
    %1044 = vmatprep.subr.mxu0 %v975
    %1045 = vmatpush1.msra.mxu0 %v974
    %1046 = vmatprep.subr.mxu0 %v971
    %1047 = vmatpush1.msra.mxu0 %v970
    %1048 = vmatprep.subr.mxu0 %v967
    %1049 = vmatpush1.msra.mxu0 %v966
    %1050 = vmatprep.subr.mxu0 %v963
    %1051 = vmatpush1.msra.mxu0 %v962
    %1052 = vmatprep.subr.mxu0 %v959
    %1053 = vmatpush1.msra.mxu0 %v958
    %1054 = vmatprep.subr.mxu0 0.0
    %1055 = vmatpush2.msra.mxu0 0.0
    %1056 = vmatprep.subr.mxu0 0.0
    %1057 = vmatpush2.msra.mxu0 0.0
    %1058 = vmatprep.subr.mxu0 0.0
    %1059 = vmatpush2.msra.mxu0 0.0
    %1060 = vmatprep.subr.mxu0 0.0
    %1061 = vmatpush2.msra.mxu0 0.0
    %1062 = vmatprep.subr.mxu0 0.0
    %1063 = vmatpush2.msra.mxu0 0.0
    %1064 = vmatprep.subr.mxu0 0.0
    %1065 = vmatpush2.msra.mxu0 0.0
    %1066 = vmatprep.subr.mxu0 0.0
    %1067 = vmatpush2.msra.mxu0 0.0
    %1068 = vmatprep.subr.mxu0 0.0
    %1069 = vmatpush2.msra.mxu0 0.0
    %1070 = vmatprep.subr.mxu0 0.0
    %1071 = vmatpush2.msra.mxu0 0.0
    %1072 = vmatprep.subr.mxu0 0.0
    %1073 = vmatpush2.msra.mxu0 0.0
    %1074 = vmatprep.subr.mxu0 0.0
    %1075 = vmatpush2.msra.mxu0 0.0
    %1076 = vmatprep.subr.mxu0 0.0
    %1077 = vmatpush2.msra.mxu0 0.0
    %1078 = vmatprep.subr.mxu0 0.0
    %1079 = vmatpush2.msra.mxu0 0.0
    %1080 = vmatprep.subr.mxu0 0.0
    %1081 = vmatpush2.msra.mxu0 0.0
    %1082 = vmatprep.subr.mxu0 0.0
    %1083 = vmatpush2.msra.mxu0 0.0
    %1084 = vmatprep.subr.mxu0 0.0
    %1085 = vmatpush2.msra.mxu0 0.0
    %1086 = vmatprep.mubr.f32.mxu0 0.0
    %1087 = vmatmul.mubr.f32.gmra.mxu0 %v948
    %v1088 = vpop.f32.mrf.mxu0
    %v1089 = vadd.f32 0.0, %v1088
    %v1090 = vpop.f32.mrf.mxu0
    %v1091 = vadd.f32 0.0, %v1090
    %1092 = vdwg.mxu0
    %1093 = vmatprep.subr.mxu0 %v1021
    %1094 = vmatpush1.msra.mxu0 %v1020
    %1095 = vmatprep.subr.mxu0 %v1017
    %1096 = vmatpush1.msra.mxu0 %v1016
    %1097 = vmatprep.subr.mxu0 %v1013
    %1098 = vmatpush1.msra.mxu0 %v1012
    %1099 = vmatprep.subr.mxu0 %v1009
    %1100 = vmatpush1.msra.mxu0 %v1008
    %1101 = vmatprep.subr.mxu0 %v1005
    %1102 = vmatpush1.msra.mxu0 %v1004
    %1103 = vmatprep.subr.mxu0 %v1001
    %1104 = vmatpush1.msra.mxu0 %v1000
    %1105 = vmatprep.subr.mxu0 %v997
    %1106 = vmatpush1.msra.mxu0 %v996
    %1107 = vmatprep.subr.mxu0 %v993
    %1108 = vmatpush1.msra.mxu0 %v992
    %1109 = vmatprep.subr.mxu0 %v989
    %1110 = vmatpush1.msra.mxu0 %v988
    %1111 = vmatprep.subr.mxu0 %v985
    %1112 = vmatpush1.msra.mxu0 %v984
    %1113 = vmatprep.subr.mxu0 %v981
    %1114 = vmatpush1.msra.mxu0 %v980
    %1115 = vmatprep.subr.mxu0 %v977
    %1116 = vmatpush1.msra.mxu0 %v976
    %1117 = vmatprep.subr.mxu0 %v973
    %1118 = vmatpush1.msra.mxu0 %v972
    %1119 = vmatprep.subr.mxu0 %v969
    %1120 = vmatpush1.msra.mxu0 %v968
    %1121 = vmatprep.subr.mxu0 %v965
    %1122 = vmatpush1.msra.mxu0 %v964
    %1123 = vmatprep.subr.mxu0 %v961
    %1124 = vmatpush1.msra.mxu0 %v960
    %1125 = vmatprep.subr.mxu0 0.0
    %1126 = vmatpush2.msra.mxu0 0.0
    %1127 = vmatprep.subr.mxu0 0.0
    %1128 = vmatpush2.msra.mxu0 0.0
    %1129 = vmatprep.subr.mxu0 0.0
    %1130 = vmatpush2.msra.mxu0 0.0
    %1131 = vmatprep.subr.mxu0 0.0
    %1132 = vmatpush2.msra.mxu0 0.0
    %1133 = vmatprep.subr.mxu0 0.0
    %1134 = vmatpush2.msra.mxu0 0.0
    %1135 = vmatprep.subr.mxu0 0.0
    %1136 = vmatpush2.msra.mxu0 0.0
    %1137 = vmatprep.subr.mxu0 0.0
    %1138 = vmatpush2.msra.mxu0 0.0
    %1139 = vmatprep.subr.mxu0 0.0
    %1140 = vmatpush2.msra.mxu0 0.0
    %1141 = vmatprep.subr.mxu0 0.0
    %1142 = vmatpush2.msra.mxu0 0.0
    %1143 = vmatprep.subr.mxu0 0.0
    %1144 = vmatpush2.msra.mxu0 0.0
    %1145 = vmatprep.subr.mxu0 0.0
    %1146 = vmatpush2.msra.mxu0 0.0
    %1147 = vmatprep.subr.mxu0 0.0
    %1148 = vmatpush2.msra.mxu0 0.0
    %1149 = vmatprep.subr.mxu0 0.0
    %1150 = vmatpush2.msra.mxu0 0.0
    %1151 = vmatprep.subr.mxu0 0.0
    %1152 = vmatpush2.msra.mxu0 0.0
    %1153 = vmatprep.subr.mxu0 0.0
    %1154 = vmatpush2.msra.mxu0 0.0
    %1155 = vmatprep.subr.mxu0 0.0
    %1156 = vmatpush2.msra.mxu0 0.0
    %1157 = vmatprep.mubr.f32.mxu0 0.0
    %1158 = vmatmul.mubr.f32.gmra.mxu0 %v948
    %v1159 = vpop.f32.mrf.mxu0
    %v1160 = vadd.f32 0.0, %v1159
    %v1161 = vpop.f32.mrf.mxu0
    %v1162 = vadd.f32 0.0, %v1161
    %1163 = vdwg.mxu0
    %v1164 = vadd.f32 %v954, %v1089
    %v1165 = vadd.f32 %v955, %v1091
    %v1166 = vadd.f32 %v956, %v1160
    %v1167 = vadd.f32 %v957, %v1162
    %v1168 = vxor.u32 %v1164, 2147483648
    %v1169 = vmul.f32 %v1168, 1.442695
    %v1170 = vpow.pop %v1169
    %v1171 = vadd.f32 %v1170, 1.0
    %v1172 = vrcp.pop %v1171
    %v1173 = vmul.f32 1.0, %v1172
    %v1174 = vxor.u32 %v1165, 2147483648
    %v1175 = vmul.f32 %v1174, 1.442695
    %v1176 = vpow.pop %v1175
    %v1177 = vadd.f32 %v1176, 1.0
    %v1178 = vrcp.pop %v1177
    %v1179 = vmul.f32 1.0, %v1178
    %v1180 = vtanh.pop %v1166
    %v1181 = vxor.u32 %v1167, 2147483648
    %v1182 = vmul.f32 %v1181, 1.442695
    %v1183 = vpow.pop %v1182
    %v1184 = vadd.f32 %v1183, 1.0
    %v1185 = vrcp.pop %v1184
    %v1186 = vmul.f32 1.0, %v1185
    %v1187 = vmul.f32 %v1179, %v946
    %v1188 = vmul.f32 %v1173, %v1180
    %v1189 = vadd.f32 %v1187, %v1188
    %v1190 = vtanh.pop %v1189
    %v1191 = vmul.f32 %v1186, %v1190
    %s1192 = scalar_lea.vmem [#allocation3], 16
    %1193 = vst [vmem:[%s1192] sm:$0xff] %v1191
    %s1194 = smul.u32 3, 4
    %s1195 = smul.addr %s1194, 8
    %s1196 = scalar_lea.vmem [#allocation2], %s1195
    %v1197 = vld [vmem:[%s1196] sm:$0xff]
    %v1198 = vld [vmem:[%s1196 + $0x8] sm:$0xff]
    %v1199 = vld [vmem:[%s1196 + $0x10] sm:$0xff]
    %v1200 = vld [vmem:[%s1196 + $0x18] sm:$0xff]
    %v1201 = vld [vmem:[#allocation12] sm:$0xff]
    %v1202 = vld [vmem:[#allocation12 + $0x8] sm:$0xff]
    %v1203 = vld [vmem:[#allocation12 + $0x10] sm:$0xff]
    %v1204 = vld [vmem:[#allocation12 + $0x18] sm:$0xff]
    %v1205 = vld [vmem:[#allocation12 + $0x20] sm:$0xff]
    %v1206 = vld [vmem:[#allocation12 + $0x28] sm:$0xff]
    %v1207 = vld [vmem:[#allocation12 + $0x30] sm:$0xff]
    %v1208 = vld [vmem:[#allocation12 + $0x38] sm:$0xff]
    %v1209 = vld [vmem:[#allocation12 + $0x40] sm:$0xff]
    %v1210 = vld [vmem:[#allocation12 + $0x48] sm:$0xff]
    %v1211 = vld [vmem:[#allocation12 + $0x50] sm:$0xff]
    %v1212 = vld [vmem:[#allocation12 + $0x58] sm:$0xff]
    %v1213 = vld [vmem:[#allocation12 + $0x60] sm:$0xff]
    %v1214 = vld [vmem:[#allocation12 + $0x68] sm:$0xff]
    %v1215 = vld [vmem:[#allocation12 + $0x70] sm:$0xff]
    %v1216 = vld [vmem:[#allocation12 + $0x78] sm:$0xff]
    %v1217 = vld [vmem:[#allocation12 + $0x80] sm:$0xff]
    %v1218 = vld [vmem:[#allocation12 + $0x88] sm:$0xff]
    %v1219 = vld [vmem:[#allocation12 + $0x90] sm:$0xff]
    %v1220 = vld [vmem:[#allocation12 + $0x98] sm:$0xff]
    %v1221 = vld [vmem:[#allocation12 + $0xa0] sm:$0xff]
    %v1222 = vld [vmem:[#allocation12 + $0xa8] sm:$0xff]
    %v1223 = vld [vmem:[#allocation12 + $0xb0] sm:$0xff]
    %v1224 = vld [vmem:[#allocation12 + $0xb8] sm:$0xff]
    %v1225 = vld [vmem:[#allocation12 + $0xc0] sm:$0xff]
    %v1226 = vld [vmem:[#allocation12 + $0xc8] sm:$0xff]
    %v1227 = vld [vmem:[#allocation12 + $0xd0] sm:$0xff]
    %v1228 = vld [vmem:[#allocation12 + $0xd8] sm:$0xff]
    %v1229 = vld [vmem:[#allocation12 + $0xe0] sm:$0xff]
    %v1230 = vld [vmem:[#allocation12 + $0xe8] sm:$0xff]
    %v1231 = vld [vmem:[#allocation12 + $0xf0] sm:$0xff]
    %v1232 = vld [vmem:[#allocation12 + $0xf8] sm:$0xff]
    %v1233 = vld [vmem:[#allocation12 + $0x100] sm:$0xff]
    %v1234 = vld [vmem:[#allocation12 + $0x108] sm:$0xff]
    %v1235 = vld [vmem:[#allocation12 + $0x110] sm:$0xff]
    %v1236 = vld [vmem:[#allocation12 + $0x118] sm:$0xff]
    %v1237 = vld [vmem:[#allocation12 + $0x120] sm:$0xff]
    %v1238 = vld [vmem:[#allocation12 + $0x128] sm:$0xff]
    %v1239 = vld [vmem:[#allocation12 + $0x130] sm:$0xff]
    %v1240 = vld [vmem:[#allocation12 + $0x138] sm:$0xff]
    %v1241 = vld [vmem:[#allocation12 + $0x140] sm:$0xff]
    %v1242 = vld [vmem:[#allocation12 + $0x148] sm:$0xff]
    %v1243 = vld [vmem:[#allocation12 + $0x150] sm:$0xff]
    %v1244 = vld [vmem:[#allocation12 + $0x158] sm:$0xff]
    %v1245 = vld [vmem:[#allocation12 + $0x160] sm:$0xff]
    %v1246 = vld [vmem:[#allocation12 + $0x168] sm:$0xff]
    %v1247 = vld [vmem:[#allocation12 + $0x170] sm:$0xff]
    %v1248 = vld [vmem:[#allocation12 + $0x178] sm:$0xff]
    %v1249 = vld [vmem:[#allocation12 + $0x180] sm:$0xff]
    %v1250 = vld [vmem:[#allocation12 + $0x188] sm:$0xff]
    %v1251 = vld [vmem:[#allocation12 + $0x190] sm:$0xff]
    %v1252 = vld [vmem:[#allocation12 + $0x198] sm:$0xff]
    %v1253 = vld [vmem:[#allocation12 + $0x1a0] sm:$0xff]
    %v1254 = vld [vmem:[#allocation12 + $0x1a8] sm:$0xff]
    %v1255 = vld [vmem:[#allocation12 + $0x1b0] sm:$0xff]
    %v1256 = vld [vmem:[#allocation12 + $0x1b8] sm:$0xff]
    %v1257 = vld [vmem:[#allocation12 + $0x1c0] sm:$0xff]
    %v1258 = vld [vmem:[#allocation12 + $0x1c8] sm:$0xff]
    %v1259 = vld [vmem:[#allocation12 + $0x1d0] sm:$0xff]
    %v1260 = vld [vmem:[#allocation12 + $0x1d8] sm:$0xff]
    %v1261 = vld [vmem:[#allocation12 + $0x1e0] sm:$0xff]
    %v1262 = vld [vmem:[#allocation12 + $0x1e8] sm:$0xff]
    %v1263 = vld [vmem:[#allocation12 + $0x1f0] sm:$0xff]
    %v1264 = vld [vmem:[#allocation12 + $0x1f8] sm:$0xff]
    %1265 = vmatprep.subr.mxu0 %v1262
    %1266 = vmatpush1.msra.mxu0 %v1261
    %1267 = vmatprep.subr.mxu0 %v1258
    %1268 = vmatpush1.msra.mxu0 %v1257
    %1269 = vmatprep.subr.mxu0 %v1254
    %1270 = vmatpush1.msra.mxu0 %v1253
    %1271 = vmatprep.subr.mxu0 %v1250
    %1272 = vmatpush1.msra.mxu0 %v1249
    %1273 = vmatprep.subr.mxu0 %v1246
    %1274 = vmatpush1.msra.mxu0 %v1245
    %1275 = vmatprep.subr.mxu0 %v1242
    %1276 = vmatpush1.msra.mxu0 %v1241
    %1277 = vmatprep.subr.mxu0 %v1238
    %1278 = vmatpush1.msra.mxu0 %v1237
    %1279 = vmatprep.subr.mxu0 %v1234
    %1280 = vmatpush1.msra.mxu0 %v1233
    %1281 = vmatprep.subr.mxu0 %v1230
    %1282 = vmatpush1.msra.mxu0 %v1229
    %1283 = vmatprep.subr.mxu0 %v1226
    %1284 = vmatpush1.msra.mxu0 %v1225
    %1285 = vmatprep.subr.mxu0 %v1222
    %1286 = vmatpush1.msra.mxu0 %v1221
    %1287 = vmatprep.subr.mxu0 %v1218
    %1288 = vmatpush1.msra.mxu0 %v1217
    %1289 = vmatprep.subr.mxu0 %v1214
    %1290 = vmatpush1.msra.mxu0 %v1213
    %1291 = vmatprep.subr.mxu0 %v1210
    %1292 = vmatpush1.msra.mxu0 %v1209
    %1293 = vmatprep.subr.mxu0 %v1206
    %1294 = vmatpush1.msra.mxu0 %v1205
    %1295 = vmatprep.subr.mxu0 %v1202
    %1296 = vmatpush1.msra.mxu0 %v1201
    %1297 = vmatprep.subr.mxu0 0.0
    %1298 = vmatpush2.msra.mxu0 0.0
    %1299 = vmatprep.subr.mxu0 0.0
    %1300 = vmatpush2.msra.mxu0 0.0
    %1301 = vmatprep.subr.mxu0 0.0
    %1302 = vmatpush2.msra.mxu0 0.0
    %1303 = vmatprep.subr.mxu0 0.0
    %1304 = vmatpush2.msra.mxu0 0.0
    %1305 = vmatprep.subr.mxu0 0.0
    %1306 = vmatpush2.msra.mxu0 0.0
    %1307 = vmatprep.subr.mxu0 0.0
    %1308 = vmatpush2.msra.mxu0 0.0
    %1309 = vmatprep.subr.mxu0 0.0
    %1310 = vmatpush2.msra.mxu0 0.0
    %1311 = vmatprep.subr.mxu0 0.0
    %1312 = vmatpush2.msra.mxu0 0.0
    %1313 = vmatprep.subr.mxu0 0.0
    %1314 = vmatpush2.msra.mxu0 0.0
    %1315 = vmatprep.subr.mxu0 0.0
    %1316 = vmatpush2.msra.mxu0 0.0
    %1317 = vmatprep.subr.mxu0 0.0
    %1318 = vmatpush2.msra.mxu0 0.0
    %1319 = vmatprep.subr.mxu0 0.0
    %1320 = vmatpush2.msra.mxu0 0.0
    %1321 = vmatprep.subr.mxu0 0.0
    %1322 = vmatpush2.msra.mxu0 0.0
    %1323 = vmatprep.subr.mxu0 0.0
    %1324 = vmatpush2.msra.mxu0 0.0
    %1325 = vmatprep.subr.mxu0 0.0
    %1326 = vmatpush2.msra.mxu0 0.0
    %1327 = vmatprep.subr.mxu0 0.0
    %1328 = vmatpush2.msra.mxu0 0.0
    %1329 = vmatprep.mubr.f32.mxu0 0.0
    %1330 = vmatmul.mubr.f32.gmra.mxu0 %v1191
    %v1331 = vpop.f32.mrf.mxu0
    %v1332 = vadd.f32 0.0, %v1331
    %v1333 = vpop.f32.mrf.mxu0
    %v1334 = vadd.f32 0.0, %v1333
    %1335 = vdwg.mxu0
    %1336 = vmatprep.subr.mxu0 %v1264
    %1337 = vmatpush1.msra.mxu0 %v1263
    %1338 = vmatprep.subr.mxu0 %v1260
    %1339 = vmatpush1.msra.mxu0 %v1259
    %1340 = vmatprep.subr.mxu0 %v1256
    %1341 = vmatpush1.msra.mxu0 %v1255
    %1342 = vmatprep.subr.mxu0 %v1252
    %1343 = vmatpush1.msra.mxu0 %v1251
    %1344 = vmatprep.subr.mxu0 %v1248
    %1345 = vmatpush1.msra.mxu0 %v1247
    %1346 = vmatprep.subr.mxu0 %v1244
    %1347 = vmatpush1.msra.mxu0 %v1243
    %1348 = vmatprep.subr.mxu0 %v1240
    %1349 = vmatpush1.msra.mxu0 %v1239
    %1350 = vmatprep.subr.mxu0 %v1236
    %1351 = vmatpush1.msra.mxu0 %v1235
    %1352 = vmatprep.subr.mxu0 %v1232
    %1353 = vmatpush1.msra.mxu0 %v1231
    %1354 = vmatprep.subr.mxu0 %v1228
    %1355 = vmatpush1.msra.mxu0 %v1227
    %1356 = vmatprep.subr.mxu0 %v1224
    %1357 = vmatpush1.msra.mxu0 %v1223
    %1358 = vmatprep.subr.mxu0 %v1220
    %1359 = vmatpush1.msra.mxu0 %v1219
    %1360 = vmatprep.subr.mxu0 %v1216
    %1361 = vmatpush1.msra.mxu0 %v1215
    %1362 = vmatprep.subr.mxu0 %v1212
    %1363 = vmatpush1.msra.mxu0 %v1211
    %1364 = vmatprep.subr.mxu0 %v1208
    %1365 = vmatpush1.msra.mxu0 %v1207
    %1366 = vmatprep.subr.mxu0 %v1204
    %1367 = vmatpush1.msra.mxu0 %v1203
    %1368 = vmatprep.subr.mxu0 0.0
    %1369 = vmatpush2.msra.mxu0 0.0
    %1370 = vmatprep.subr.mxu0 0.0
    %1371 = vmatpush2.msra.mxu0 0.0
    %1372 = vmatprep.subr.mxu0 0.0
    %1373 = vmatpush2.msra.mxu0 0.0
    %1374 = vmatprep.subr.mxu0 0.0
    %1375 = vmatpush2.msra.mxu0 0.0
    %1376 = vmatprep.subr.mxu0 0.0
    %1377 = vmatpush2.msra.mxu0 0.0
    %1378 = vmatprep.subr.mxu0 0.0
    %1379 = vmatpush2.msra.mxu0 0.0
    %1380 = vmatprep.subr.mxu0 0.0
    %1381 = vmatpush2.msra.mxu0 0.0
    %1382 = vmatprep.subr.mxu0 0.0
    %1383 = vmatpush2.msra.mxu0 0.0
    %1384 = vmatprep.subr.mxu0 0.0
    %1385 = vmatpush2.msra.mxu0 0.0
    %1386 = vmatprep.subr.mxu0 0.0
    %1387 = vmatpush2.msra.mxu0 0.0
    %1388 = vmatprep.subr.mxu0 0.0
    %1389 = vmatpush2.msra.mxu0 0.0
    %1390 = vmatprep.subr.mxu0 0.0
    %1391 = vmatpush2.msra.mxu0 0.0
    %1392 = vmatprep.subr.mxu0 0.0
    %1393 = vmatpush2.msra.mxu0 0.0
    %1394 = vmatprep.subr.mxu0 0.0
    %1395 = vmatpush2.msra.mxu0 0.0
    %1396 = vmatprep.subr.mxu0 0.0
    %1397 = vmatpush2.msra.mxu0 0.0
    %1398 = vmatprep.subr.mxu0 0.0
    %1399 = vmatpush2.msra.mxu0 0.0
    %1400 = vmatprep.mubr.f32.mxu0 0.0
    %1401 = vmatmul.mubr.f32.gmra.mxu0 %v1191
    %v1402 = vpop.f32.mrf.mxu0
    %v1403 = vadd.f32 0.0, %v1402
    %v1404 = vpop.f32.mrf.mxu0
    %v1405 = vadd.f32 0.0, %v1404
    %1406 = vdwg.mxu0
    %v1407 = vadd.f32 %v1197, %v1332
    %v1408 = vadd.f32 %v1198, %v1334
    %v1409 = vadd.f32 %v1199, %v1403
    %v1410 = vadd.f32 %v1200, %v1405
    %v1411 = vxor.u32 %v1407, 2147483648
    %v1412 = vmul.f32 %v1411, 1.442695
    %v1413 = vpow.pop %v1412
    %v1414 = vadd.f32 %v1413, 1.0
    %v1415 = vrcp.pop %v1414
    %v1416 = vmul.f32 1.0, %v1415
    %v1417 = vxor.u32 %v1408, 2147483648
    %v1418 = vmul.f32 %v1417, 1.442695
    %v1419 = vpow.pop %v1418
    %v1420 = vadd.f32 %v1419, 1.0
    %v1421 = vrcp.pop %v1420
    %v1422 = vmul.f32 1.0, %v1421
    %v1423 = vtanh.pop %v1409
    %v1424 = vxor.u32 %v1410, 2147483648
    %v1425 = vmul.f32 %v1424, 1.442695
    %v1426 = vpow.pop %v1425
    %v1427 = vadd.f32 %v1426, 1.0
    %v1428 = vrcp.pop %v1427
    %v1429 = vmul.f32 1.0, %v1428
    %v1430 = vmul.f32 %v1422, %v1189
    %v1431 = vmul.f32 %v1416, %v1423
    %v1432 = vadd.f32 %v1430, %v1431
    %v1433 = vtanh.pop %v1432
    %v1434 = vmul.f32 %v1429, %v1433
    %s1435 = scalar_lea.vmem [#allocation3], 24
    %1436 = vst [vmem:[%s1435] sm:$0xff] %v1434
    %s1437 = smul.u32 4, 4
    %s1438 = smul.addr %s1437, 8
    %s1439 = scalar_lea.vmem [#allocation2], %s1438
    %v1440 = vld [vmem:[%s1439] sm:$0xff]
    %v1441 = vld [vmem:[%s1439 + $0x8] sm:$0xff]
    %v1442 = vld [vmem:[%s1439 + $0x10] sm:$0xff]
    %v1443 = vld [vmem:[%s1439 + $0x18] sm:$0xff]
    %v1444 = vld [vmem:[#allocation12] sm:$0xff]
    %v1445 = vld [vmem:[#allocation12 + $0x8] sm:$0xff]
    %v1446 = vld [vmem:[#allocation12 + $0x10] sm:$0xff]
    %v1447 = vld [vmem:[#allocation12 + $0x18] sm:$0xff]
    %v1448 = vld [vmem:[#allocation12 + $0x20] sm:$0xff]
    %v1449 = vld [vmem:[#allocation12 + $0x28] sm:$0xff]
    %v1450 = vld [vmem:[#allocation12 + $0x30] sm:$0xff]
    %v1451 = vld [vmem:[#allocation12 + $0x38] sm:$0xff]
    %v1452 = vld [vmem:[#allocation12 + $0x40] sm:$0xff]
    %v1453 = vld [vmem:[#allocation12 + $0x48] sm:$0xff]
    %v1454 = vld [vmem:[#allocation12 + $0x50] sm:$0xff]
    %v1455 = vld [vmem:[#allocation12 + $0x58] sm:$0xff]
    %v1456 = vld [vmem:[#allocation12 + $0x60] sm:$0xff]
    %v1457 = vld [vmem:[#allocation12 + $0x68] sm:$0xff]
    %v1458 = vld [vmem:[#allocation12 + $0x70] sm:$0xff]
    %v1459 = vld [vmem:[#allocation12 + $0x78] sm:$0xff]
    %v1460 = vld [vmem:[#allocation12 + $0x80] sm:$0xff]
    %v1461 = vld [vmem:[#allocation12 + $0x88] sm:$0xff]
    %v1462 = vld [vmem:[#allocation12 + $0x90] sm:$0xff]
    %v1463 = vld [vmem:[#allocation12 + $0x98] sm:$0xff]
    %v1464 = vld [vmem:[#allocation12 + $0xa0] sm:$0xff]
    %v1465 = vld [vmem:[#allocation12 + $0xa8] sm:$0xff]
    %v1466 = vld [vmem:[#allocation12 + $0xb0] sm:$0xff]
    %v1467 = vld [vmem:[#allocation12 + $0xb8] sm:$0xff]
    %v1468 = vld [vmem:[#allocation12 + $0xc0] sm:$0xff]
    %v1469 = vld [vmem:[#allocation12 + $0xc8] sm:$0xff]
    %v1470 = vld [vmem:[#allocation12 + $0xd0] sm:$0xff]
    %v1471 = vld [vmem:[#allocation12 + $0xd8] sm:$0xff]
    %v1472 = vld [vmem:[#allocation12 + $0xe0] sm:$0xff]
    %v1473 = vld [vmem:[#allocation12 + $0xe8] sm:$0xff]
    %v1474 = vld [vmem:[#allocation12 + $0xf0] sm:$0xff]
    %v1475 = vld [vmem:[#allocation12 + $0xf8] sm:$0xff]
    %v1476 = vld [vmem:[#allocation12 + $0x100] sm:$0xff]
    %v1477 = vld [vmem:[#allocation12 + $0x108] sm:$0xff]
    %v1478 = vld [vmem:[#allocation12 + $0x110] sm:$0xff]
    %v1479 = vld [vmem:[#allocation12 + $0x118] sm:$0xff]
    %v1480 = vld [vmem:[#allocation12 + $0x120] sm:$0xff]
    %v1481 = vld [vmem:[#allocation12 + $0x128] sm:$0xff]
    %v1482 = vld [vmem:[#allocation12 + $0x130] sm:$0xff]
    %v1483 = vld [vmem:[#allocation12 + $0x138] sm:$0xff]
    %v1484 = vld [vmem:[#allocation12 + $0x140] sm:$0xff]
    %v1485 = vld [vmem:[#allocation12 + $0x148] sm:$0xff]
    %v1486 = vld [vmem:[#allocation12 + $0x150] sm:$0xff]
    %v1487 = vld [vmem:[#allocation12 + $0x158] sm:$0xff]
    %v1488 = vld [vmem:[#allocation12 + $0x160] sm:$0xff]
    %v1489 = vld [vmem:[#allocation12 + $0x168] sm:$0xff]
    %v1490 = vld [vmem:[#allocation12 + $0x170] sm:$0xff]
    %v1491 = vld [vmem:[#allocation12 + $0x178] sm:$0xff]
    %v1492 = vld [vmem:[#allocation12 + $0x180] sm:$0xff]
    %v1493 = vld [vmem:[#allocation12 + $0x188] sm:$0xff]
    %v1494 = vld [vmem:[#allocation12 + $0x190] sm:$0xff]
    %v1495 = vld [vmem:[#allocation12 + $0x198] sm:$0xff]
    %v1496 = vld [vmem:[#allocation12 + $0x1a0] sm:$0xff]
    %v1497 = vld [vmem:[#allocation12 + $0x1a8] sm:$0xff]
    %v1498 = vld [vmem:[#allocation12 + $0x1b0] sm:$0xff]
    %v1499 = vld [vmem:[#allocation12 + $0x1b8] sm:$0xff]
    %v1500 = vld [vmem:[#allocation12 + $0x1c0] sm:$0xff]
    %v1501 = vld [vmem:[#allocation12 + $0x1c8] sm:$0xff]
    %v1502 = vld [vmem:[#allocation12 + $0x1d0] sm:$0xff]
    %v1503 = vld [vmem:[#allocation12 + $0x1d8] sm:$0xff]
    %v1504 = vld [vmem:[#allocation12 + $0x1e0] sm:$0xff]
    %v1505 = vld [vmem:[#allocation12 + $0x1e8] sm:$0xff]
    %v1506 = vld [vmem:[#allocation12 + $0x1f0] sm:$0xff]
    %v1507 = vld [vmem:[#allocation12 + $0x1f8] sm:$0xff]
    %1508 = vmatprep.subr.mxu0 %v1505
    %1509 = vmatpush1.msra.mxu0 %v1504
    %1510 = vmatprep.subr.mxu0 %v1501
    %1511 = vmatpush1.msra.mxu0 %v1500
    %1512 = vmatprep.subr.mxu0 %v1497
    %1513 = vmatpush1.msra.mxu0 %v1496
    %1514 = vmatprep.subr.mxu0 %v1493
    %1515 = vmatpush1.msra.mxu0 %v1492
    %1516 = vmatprep.subr.mxu0 %v1489
    %1517 = vmatpush1.msra.mxu0 %v1488
    %1518 = vmatprep.subr.mxu0 %v1485
    %1519 = vmatpush1.msra.mxu0 %v1484
    %1520 = vmatprep.subr.mxu0 %v1481
    %1521 = vmatpush1.msra.mxu0 %v1480
    %1522 = vmatprep.subr.mxu0 %v1477
    %1523 = vmatpush1.msra.mxu0 %v1476
    %1524 = vmatprep.subr.mxu0 %v1473
    %1525 = vmatpush1.msra.mxu0 %v1472
    %1526 = vmatprep.subr.mxu0 %v1469
    %1527 = vmatpush1.msra.mxu0 %v1468
    %1528 = vmatprep.subr.mxu0 %v1465
    %1529 = vmatpush1.msra.mxu0 %v1464
    %1530 = vmatprep.subr.mxu0 %v1461
    %1531 = vmatpush1.msra.mxu0 %v1460
    %1532 = vmatprep.subr.mxu0 %v1457
    %1533 = vmatpush1.msra.mxu0 %v1456
    %1534 = vmatprep.subr.mxu0 %v1453
    %1535 = vmatpush1.msra.mxu0 %v1452
    %1536 = vmatprep.subr.mxu0 %v1449
    %1537 = vmatpush1.msra.mxu0 %v1448
    %1538 = vmatprep.subr.mxu0 %v1445
    %1539 = vmatpush1.msra.mxu0 %v1444
    %1540 = vmatprep.subr.mxu0 0.0
    %1541 = vmatpush2.msra.mxu0 0.0
    %1542 = vmatprep.subr.mxu0 0.0
    %1543 = vmatpush2.msra.mxu0 0.0
    %1544 = vmatprep.subr.mxu0 0.0
    %1545 = vmatpush2.msra.mxu0 0.0
    %1546 = vmatprep.subr.mxu0 0.0
    %1547 = vmatpush2.msra.mxu0 0.0
    %1548 = vmatprep.subr.mxu0 0.0
    %1549 = vmatpush2.msra.mxu0 0.0
    %1550 = vmatprep.subr.mxu0 0.0
    %1551 = vmatpush2.msra.mxu0 0.0
    %1552 = vmatprep.subr.mxu0 0.0
    %1553 = vmatpush2.msra.mxu0 0.0
    %1554 = vmatprep.subr.mxu0 0.0
    %1555 = vmatpush2.msra.mxu0 0.0
    %1556 = vmatprep.subr.mxu0 0.0
    %1557 = vmatpush2.msra.mxu0 0.0
    %1558 = vmatprep.subr.mxu0 0.0
    %1559 = vmatpush2.msra.mxu0 0.0
    %1560 = vmatprep.subr.mxu0 0.0
    %1561 = vmatpush2.msra.mxu0 0.0
    %1562 = vmatprep.subr.mxu0 0.0
    %1563 = vmatpush2.msra.mxu0 0.0
    %1564 = vmatprep.subr.mxu0 0.0
    %1565 = vmatpush2.msra.mxu0 0.0
    %1566 = vmatprep.subr.mxu0 0.0
    %1567 = vmatpush2.msra.mxu0 0.0
    %1568 = vmatprep.subr.mxu0 0.0
    %1569 = vmatpush2.msra.mxu0 0.0
    %1570 = vmatprep.subr.mxu0 0.0
    %1571 = vmatpush2.msra.mxu0 0.0
    %1572 = vmatprep.mubr.f32.mxu0 0.0
    %1573 = vmatmul.mubr.f32.gmra.mxu0 %v1434
    %v1574 = vpop.f32.mrf.mxu0
    %v1575 = vadd.f32 0.0, %v1574
    %v1576 = vpop.f32.mrf.mxu0
    %v1577 = vadd.f32 0.0, %v1576
    %1578 = vdwg.mxu0
    %1579 = vmatprep.subr.mxu0 %v1507
    %1580 = vmatpush1.msra.mxu0 %v1506
    %1581 = vmatprep.subr.mxu0 %v1503
    %1582 = vmatpush1.msra.mxu0 %v1502
    %1583 = vmatprep.subr.mxu0 %v1499
    %1584 = vmatpush1.msra.mxu0 %v1498
    %1585 = vmatprep.subr.mxu0 %v1495
    %1586 = vmatpush1.msra.mxu0 %v1494
    %1587 = vmatprep.subr.mxu0 %v1491
    %1588 = vmatpush1.msra.mxu0 %v1490
    %1589 = vmatprep.subr.mxu0 %v1487
    %1590 = vmatpush1.msra.mxu0 %v1486
    %1591 = vmatprep.subr.mxu0 %v1483
    %1592 = vmatpush1.msra.mxu0 %v1482
    %1593 = vmatprep.subr.mxu0 %v1479
    %1594 = vmatpush1.msra.mxu0 %v1478
    %1595 = vmatprep.subr.mxu0 %v1475
    %1596 = vmatpush1.msra.mxu0 %v1474
    %1597 = vmatprep.subr.mxu0 %v1471
    %1598 = vmatpush1.msra.mxu0 %v1470
    %1599 = vmatprep.subr.mxu0 %v1467
    %1600 = vmatpush1.msra.mxu0 %v1466
    %1601 = vmatprep.subr.mxu0 %v1463
    %1602 = vmatpush1.msra.mxu0 %v1462
    %1603 = vmatprep.subr.mxu0 %v1459
    %1604 = vmatpush1.msra.mxu0 %v1458
    %1605 = vmatprep.subr.mxu0 %v1455
    %1606 = vmatpush1.msra.mxu0 %v1454
    %1607 = vmatprep.subr.mxu0 %v1451
    %1608 = vmatpush1.msra.mxu0 %v1450
    %1609 = vmatprep.subr.mxu0 %v1447
    %1610 = vmatpush1.msra.mxu0 %v1446
    %1611 = vmatprep.subr.mxu0 0.0
    %1612 = vmatpush2.msra.mxu0 0.0
    %1613 = vmatprep.subr.mxu0 0.0
    %1614 = vmatpush2.msra.mxu0 0.0
    %1615 = vmatprep.subr.mxu0 0.0
    %1616 = vmatpush2.msra.mxu0 0.0
    %1617 = vmatprep.subr.mxu0 0.0
    %1618 = vmatpush2.msra.mxu0 0.0
    %1619 = vmatprep.subr.mxu0 0.0
    %1620 = vmatpush2.msra.mxu0 0.0
    %1621 = vmatprep.subr.mxu0 0.0
    %1622 = vmatpush2.msra.mxu0 0.0
    %1623 = vmatprep.subr.mxu0 0.0
    %1624 = vmatpush2.msra.mxu0 0.0
    %1625 = vmatprep.subr.mxu0 0.0
    %1626 = vmatpush2.msra.mxu0 0.0
    %1627 = vmatprep.subr.mxu0 0.0
    %1628 = vmatpush2.msra.mxu0 0.0
    %1629 = vmatprep.subr.mxu0 0.0
    %1630 = vmatpush2.msra.mxu0 0.0
    %1631 = vmatprep.subr.mxu0 0.0
    %1632 = vmatpush2.msra.mxu0 0.0
    %1633 = vmatprep.subr.mxu0 0.0
    %1634 = vmatpush2.msra.mxu0 0.0
    %1635 = vmatprep.subr.mxu0 0.0
    %1636 = vmatpush2.msra.mxu0 0.0
    %1637 = vmatprep.subr.mxu0 0.0
    %1638 = vmatpush2.msra.mxu0 0.0
    %1639 = vmatprep.subr.mxu0 0.0
    %1640 = vmatpush2.msra.mxu0 0.0
    %1641 = vmatprep.subr.mxu0 0.0
    %1642 = vmatpush2.msra.mxu0 0.0
    %1643 = vmatprep.mubr.f32.mxu0 0.0
    %1644 = vmatmul.mubr.f32.gmra.mxu0 %v1434
    %v1645 = vpop.f32.mrf.mxu0
    %v1646 = vadd.f32 0.0, %v1645
    %v1647 = vpop.f32.mrf.mxu0
    %v1648 = vadd.f32 0.0, %v1647
    %1649 = vdwg.mxu0
    %v1650 = vadd.f32 %v1440, %v1575
    %v1651 = vadd.f32 %v1441, %v1577
    %v1652 = vadd.f32 %v1442, %v1646
    %v1653 = vadd.f32 %v1443, %v1648
    %v1654 = vxor.u32 %v1650, 2147483648
    %v1655 = vmul.f32 %v1654, 1.442695
    %v1656 = vpow.pop %v1655
    %v1657 = vadd.f32 %v1656, 1.0
    %v1658 = vrcp.pop %v1657
    %v1659 = vmul.f32 1.0, %v1658
    %v1660 = vxor.u32 %v1651, 2147483648
    %v1661 = vmul.f32 %v1660, 1.442695
    %v1662 = vpow.pop %v1661
    %v1663 = vadd.f32 %v1662, 1.0
    %v1664 = vrcp.pop %v1663
    %v1665 = vmul.f32 1.0, %v1664
    %v1666 = vtanh.pop %v1652
    %v1667 = vxor.u32 %v1653, 2147483648
    %v1668 = vmul.f32 %v1667, 1.442695
    %v1669 = vpow.pop %v1668
    %v1670 = vadd.f32 %v1669, 1.0
    %v1671 = vrcp.pop %v1670
    %v1672 = vmul.f32 1.0, %v1671
    %v1673 = vmul.f32 %v1665, %v1432
    %v1674 = vmul.f32 %v1659, %v1666
    %v1675 = vadd.f32 %v1673, %v1674
    %v1676 = vtanh.pop %v1675
    %v1677 = vmul.f32 %v1672, %v1676
    %s1678 = scalar_lea.vmem [#allocation3], 32
    %1679 = vst [vmem:[%s1678] sm:$0xff] %v1677
    %s1680 = smul.u32 5, 4
    %s1681 = smul.addr %s1680, 8
    %s1682 = scalar_lea.vmem [#allocation2], %s1681
    %v1683 = vld [vmem:[%s1682] sm:$0xff]
    %v1684 = vld [vmem:[%s1682 + $0x8] sm:$0xff]
    %v1685 = vld [vmem:[%s1682 + $0x10] sm:$0xff]
    %v1686 = vld [vmem:[%s1682 + $0x18] sm:$0xff]
    %v1687 = vld [vmem:[#allocation12] sm:$0xff]
    %v1688 = vld [vmem:[#allocation12 + $0x8] sm:$0xff]
    %v1689 = vld [vmem:[#allocation12 + $0x10] sm:$0xff]
    %v1690 = vld [vmem:[#allocation12 + $0x18] sm:$0xff]
    %v1691 = vld [vmem:[#allocation12 + $0x20] sm:$0xff]
    %v1692 = vld [vmem:[#allocation12 + $0x28] sm:$0xff]
    %v1693 = vld [vmem:[#allocation12 + $0x30] sm:$0xff]
    %v1694 = vld [vmem:[#allocation12 + $0x38] sm:$0xff]
    %v1695 = vld [vmem:[#allocation12 + $0x40] sm:$0xff]
    %v1696 = vld [vmem:[#allocation12 + $0x48] sm:$0xff]
    %v1697 = vld [vmem:[#allocation12 + $0x50] sm:$0xff]
    %v1698 = vld [vmem:[#allocation12 + $0x58] sm:$0xff]
    %v1699 = vld [vmem:[#allocation12 + $0x60] sm:$0xff]
    %v1700 = vld [vmem:[#allocation12 + $0x68] sm:$0xff]
    %v1701 = vld [vmem:[#allocation12 + $0x70] sm:$0xff]
    %v1702 = vld [vmem:[#allocation12 + $0x78] sm:$0xff]
    %v1703 = vld [vmem:[#allocation12 + $0x80] sm:$0xff]
    %v1704 = vld [vmem:[#allocation12 + $0x88] sm:$0xff]
    %v1705 = vld [vmem:[#allocation12 + $0x90] sm:$0xff]
    %v1706 = vld [vmem:[#allocation12 + $0x98] sm:$0xff]
    %v1707 = vld [vmem:[#allocation12 + $0xa0] sm:$0xff]
    %v1708 = vld [vmem:[#allocation12 + $0xa8] sm:$0xff]
    %v1709 = vld [vmem:[#allocation12 + $0xb0] sm:$0xff]
    %v1710 = vld [vmem:[#allocation12 + $0xb8] sm:$0xff]
    %v1711 = vld [vmem:[#allocation12 + $0xc0] sm:$0xff]
    %v1712 = vld [vmem:[#allocation12 + $0xc8] sm:$0xff]
    %v1713 = vld [vmem:[#allocation12 + $0xd0] sm:$0xff]
    %v1714 = vld [vmem:[#allocation12 + $0xd8] sm:$0xff]
    %v1715 = vld [vmem:[#allocation12 + $0xe0] sm:$0xff]
    %v1716 = vld [vmem:[#allocation12 + $0xe8] sm:$0xff]
    %v1717 = vld [vmem:[#allocation12 + $0xf0] sm:$0xff]
    %v1718 = vld [vmem:[#allocation12 + $0xf8] sm:$0xff]
    %v1719 = vld [vmem:[#allocation12 + $0x100] sm:$0xff]
    %v1720 = vld [vmem:[#allocation12 + $0x108] sm:$0xff]
    %v1721 = vld [vmem:[#allocation12 + $0x110] sm:$0xff]
    %v1722 = vld [vmem:[#allocation12 + $0x118] sm:$0xff]
    %v1723 = vld [vmem:[#allocation12 + $0x120] sm:$0xff]
    %v1724 = vld [vmem:[#allocation12 + $0x128] sm:$0xff]
    %v1725 = vld [vmem:[#allocation12 + $0x130] sm:$0xff]
    %v1726 = vld [vmem:[#allocation12 + $0x138] sm:$0xff]
    %v1727 = vld [vmem:[#allocation12 + $0x140] sm:$0xff]
    %v1728 = vld [vmem:[#allocation12 + $0x148] sm:$0xff]
    %v1729 = vld [vmem:[#allocation12 + $0x150] sm:$0xff]
    %v1730 = vld [vmem:[#allocation12 + $0x158] sm:$0xff]
    %v1731 = vld [vmem:[#allocation12 + $0x160] sm:$0xff]
    %v1732 = vld [vmem:[#allocation12 + $0x168] sm:$0xff]
    %v1733 = vld [vmem:[#allocation12 + $0x170] sm:$0xff]
    %v1734 = vld [vmem:[#allocation12 + $0x178] sm:$0xff]
    %v1735 = vld [vmem:[#allocation12 + $0x180] sm:$0xff]
    %v1736 = vld [vmem:[#allocation12 + $0x188] sm:$0xff]
    %v1737 = vld [vmem:[#allocation12 + $0x190] sm:$0xff]
    %v1738 = vld [vmem:[#allocation12 + $0x198] sm:$0xff]
    %v1739 = vld [vmem:[#allocation12 + $0x1a0] sm:$0xff]
    %v1740 = vld [vmem:[#allocation12 + $0x1a8] sm:$0xff]
    %v1741 = vld [vmem:[#allocation12 + $0x1b0] sm:$0xff]
    %v1742 = vld [vmem:[#allocation12 + $0x1b8] sm:$0xff]
    %v1743 = vld [vmem:[#allocation12 + $0x1c0] sm:$0xff]
    %v1744 = vld [vmem:[#allocation12 + $0x1c8] sm:$0xff]
    %v1745 = vld [vmem:[#allocation12 + $0x1d0] sm:$0xff]
    %v1746 = vld [vmem:[#allocation12 + $0x1d8] sm:$0xff]
    %v1747 = vld [vmem:[#allocation12 + $0x1e0] sm:$0xff]
    %v1748 = vld [vmem:[#allocation12 + $0x1e8] sm:$0xff]
    %v1749 = vld [vmem:[#allocation12 + $0x1f0] sm:$0xff]
    %v1750 = vld [vmem:[#allocation12 + $0x1f8] sm:$0xff]
    %1751 = vmatprep.subr.mxu0 %v1748
    %1752 = vmatpush1.msra.mxu0 %v1747
    %1753 = vmatprep.subr.mxu0 %v1744
    %1754 = vmatpush1.msra.mxu0 %v1743
    %1755 = vmatprep.subr.mxu0 %v1740
    %1756 = vmatpush1.msra.mxu0 %v1739
    %1757 = vmatprep.subr.mxu0 %v1736
    %1758 = vmatpush1.msra.mxu0 %v1735
    %1759 = vmatprep.subr.mxu0 %v1732
    %1760 = vmatpush1.msra.mxu0 %v1731
    %1761 = vmatprep.subr.mxu0 %v1728
    %1762 = vmatpush1.msra.mxu0 %v1727
    %1763 = vmatprep.subr.mxu0 %v1724
    %1764 = vmatpush1.msra.mxu0 %v1723
    %1765 = vmatprep.subr.mxu0 %v1720
    %1766 = vmatpush1.msra.mxu0 %v1719
    %1767 = vmatprep.subr.mxu0 %v1716
    %1768 = vmatpush1.msra.mxu0 %v1715
    %1769 = vmatprep.subr.mxu0 %v1712
    %1770 = vmatpush1.msra.mxu0 %v1711
    %1771 = vmatprep.subr.mxu0 %v1708
    %1772 = vmatpush1.msra.mxu0 %v1707
    %1773 = vmatprep.subr.mxu0 %v1704
    %1774 = vmatpush1.msra.mxu0 %v1703
    %1775 = vmatprep.subr.mxu0 %v1700
    %1776 = vmatpush1.msra.mxu0 %v1699
    %1777 = vmatprep.subr.mxu0 %v1696
    %1778 = vmatpush1.msra.mxu0 %v1695
    %1779 = vmatprep.subr.mxu0 %v1692
    %1780 = vmatpush1.msra.mxu0 %v1691
    %1781 = vmatprep.subr.mxu0 %v1688
    %1782 = vmatpush1.msra.mxu0 %v1687
    %1783 = vmatprep.subr.mxu0 0.0
    %1784 = vmatpush2.msra.mxu0 0.0
    %1785 = vmatprep.subr.mxu0 0.0
    %1786 = vmatpush2.msra.mxu0 0.0
    %1787 = vmatprep.subr.mxu0 0.0
    %1788 = vmatpush2.msra.mxu0 0.0
    %1789 = vmatprep.subr.mxu0 0.0
    %1790 = vmatpush2.msra.mxu0 0.0
    %1791 = vmatprep.subr.mxu0 0.0
    %1792 = vmatpush2.msra.mxu0 0.0
    %1793 = vmatprep.subr.mxu0 0.0
    %1794 = vmatpush2.msra.mxu0 0.0
    %1795 = vmatprep.subr.mxu0 0.0
    %1796 = vmatpush2.msra.mxu0 0.0
    %1797 = vmatprep.subr.mxu0 0.0
    %1798 = vmatpush2.msra.mxu0 0.0
    %1799 = vmatprep.subr.mxu0 0.0
    %1800 = vmatpush2.msra.mxu0 0.0
    %1801 = vmatprep.subr.mxu0 0.0
    %1802 = vmatpush2.msra.mxu0 0.0
    %1803 = vmatprep.subr.mxu0 0.0
    %1804 = vmatpush2.msra.mxu0 0.0
    %1805 = vmatprep.subr.mxu0 0.0
    %1806 = vmatpush2.msra.mxu0 0.0
    %1807 = vmatprep.subr.mxu0 0.0
    %1808 = vmatpush2.msra.mxu0 0.0
    %1809 = vmatprep.subr.mxu0 0.0
    %1810 = vmatpush2.msra.mxu0 0.0
    %1811 = vmatprep.subr.mxu0 0.0
    %1812 = vmatpush2.msra.mxu0 0.0
    %1813 = vmatprep.subr.mxu0 0.0
    %1814 = vmatpush2.msra.mxu0 0.0
    %1815 = vmatprep.mubr.f32.mxu0 0.0
    %1816 = vmatmul.mubr.f32.gmra.mxu0 %v1677
    %v1817 = vpop.f32.mrf.mxu0
    %v1818 = vadd.f32 0.0, %v1817
    %v1819 = vpop.f32.mrf.mxu0
    %v1820 = vadd.f32 0.0, %v1819
    %1821 = vdwg.mxu0
    %1822 = vmatprep.subr.mxu0 %v1750
    %1823 = vmatpush1.msra.mxu0 %v1749
    %1824 = vmatprep.subr.mxu0 %v1746
    %1825 = vmatpush1.msra.mxu0 %v1745
    %1826 = vmatprep.subr.mxu0 %v1742
    %1827 = vmatpush1.msra.mxu0 %v1741
    %1828 = vmatprep.subr.mxu0 %v1738
    %1829 = vmatpush1.msra.mxu0 %v1737
    %1830 = vmatprep.subr.mxu0 %v1734
    %1831 = vmatpush1.msra.mxu0 %v1733
    %1832 = vmatprep.subr.mxu0 %v1730
    %1833 = vmatpush1.msra.mxu0 %v1729
    %1834 = vmatprep.subr.mxu0 %v1726
    %1835 = vmatpush1.msra.mxu0 %v1725
    %1836 = vmatprep.subr.mxu0 %v1722
    %1837 = vmatpush1.msra.mxu0 %v1721
    %1838 = vmatprep.subr.mxu0 %v1718
    %1839 = vmatpush1.msra.mxu0 %v1717
    %1840 = vmatprep.subr.mxu0 %v1714
    %1841 = vmatpush1.msra.mxu0 %v1713
    %1842 = vmatprep.subr.mxu0 %v1710
    %1843 = vmatpush1.msra.mxu0 %v1709
    %1844 = vmatprep.subr.mxu0 %v1706
    %1845 = vmatpush1.msra.mxu0 %v1705
    %1846 = vmatprep.subr.mxu0 %v1702
    %1847 = vmatpush1.msra.mxu0 %v1701
    %1848 = vmatprep.subr.mxu0 %v1698
    %1849 = vmatpush1.msra.mxu0 %v1697
    %1850 = vmatprep.subr.mxu0 %v1694
    %1851 = vmatpush1.msra.mxu0 %v1693
    %1852 = vmatprep.subr.mxu0 %v1690
    %1853 = vmatpush1.msra.mxu0 %v1689
    %1854 = vmatprep.subr.mxu0 0.0
    %1855 = vmatpush2.msra.mxu0 0.0
    %1856 = vmatprep.subr.mxu0 0.0
    %1857 = vmatpush2.msra.mxu0 0.0
    %1858 = vmatprep.subr.mxu0 0.0
    %1859 = vmatpush2.msra.mxu0 0.0
    %1860 = vmatprep.subr.mxu0 0.0
    %1861 = vmatpush2.msra.mxu0 0.0
    %1862 = vmatprep.subr.mxu0 0.0
    %1863 = vmatpush2.msra.mxu0 0.0
    %1864 = vmatprep.subr.mxu0 0.0
    %1865 = vmatpush2.msra.mxu0 0.0
    %1866 = vmatprep.subr.mxu0 0.0
    %1867 = vmatpush2.msra.mxu0 0.0
    %1868 = vmatprep.subr.mxu0 0.0
    %1869 = vmatpush2.msra.mxu0 0.0
    %1870 = vmatprep.subr.mxu0 0.0
    %1871 = vmatpush2.msra.mxu0 0.0
    %1872 = vmatprep.subr.mxu0 0.0
    %1873 = vmatpush2.msra.mxu0 0.0
    %1874 = vmatprep.subr.mxu0 0.0
    %1875 = vmatpush2.msra.mxu0 0.0
    %1876 = vmatprep.subr.mxu0 0.0
    %1877 = vmatpush2.msra.mxu0 0.0
    %1878 = vmatprep.subr.mxu0 0.0
    %1879 = vmatpush2.msra.mxu0 0.0
    %1880 = vmatprep.subr.mxu0 0.0
    %1881 = vmatpush2.msra.mxu0 0.0
    %1882 = vmatprep.subr.mxu0 0.0
    %1883 = vmatpush2.msra.mxu0 0.0
    %1884 = vmatprep.subr.mxu0 0.0
    %1885 = vmatpush2.msra.mxu0 0.0
    %1886 = vmatprep.mubr.f32.mxu0 0.0
    %1887 = vmatmul.mubr.f32.gmra.mxu0 %v1677
    %v1888 = vpop.f32.mrf.mxu0
    %v1889 = vadd.f32 0.0, %v1888
    %v1890 = vpop.f32.mrf.mxu0
    %v1891 = vadd.f32 0.0, %v1890
    %1892 = vdwg.mxu0
    %v1893 = vadd.f32 %v1683, %v1818
    %v1894 = vadd.f32 %v1684, %v1820
    %v1895 = vadd.f32 %v1685, %v1889
    %v1896 = vadd.f32 %v1686, %v1891
    %v1897 = vxor.u32 %v1893, 2147483648
    %v1898 = vmul.f32 %v1897, 1.442695
    %v1899 = vpow.pop %v1898
    %v1900 = vadd.f32 %v1899, 1.0
    %v1901 = vrcp.pop %v1900
    %v1902 = vmul.f32 1.0, %v1901
    %v1903 = vxor.u32 %v1894, 2147483648
    %v1904 = vmul.f32 %v1903, 1.442695
    %v1905 = vpow.pop %v1904
    %v1906 = vadd.f32 %v1905, 1.0
    %v1907 = vrcp.pop %v1906
    %v1908 = vmul.f32 1.0, %v1907
    %v1909 = vtanh.pop %v1895
    %v1910 = vxor.u32 %v1896, 2147483648
    %v1911 = vmul.f32 %v1910, 1.442695
    %v1912 = vpow.pop %v1911
    %v1913 = vadd.f32 %v1912, 1.0
    %v1914 = vrcp.pop %v1913
    %v1915 = vmul.f32 1.0, %v1914
    %v1916 = vmul.f32 %v1908, %v1675
    %v1917 = vmul.f32 %v1902, %v1909
    %v1918 = vadd.f32 %v1916, %v1917
    %v1919 = vtanh.pop %v1918
    %v1920 = vmul.f32 %v1915, %v1919
    %s1921 = scalar_lea.vmem [#allocation3], 40
    %1922 = vst [vmem:[%s1921] sm:$0xff] %v1920
    %s1923 = smul.u32 6, 4
    %s1924 = smul.addr %s1923, 8
    %s1925 = scalar_lea.vmem [#allocation2], %s1924
    %v1926 = vld [vmem:[%s1925] sm:$0xff]
    %v1927 = vld [vmem:[%s1925 + $0x8] sm:$0xff]
    %v1928 = vld [vmem:[%s1925 + $0x10] sm:$0xff]
    %v1929 = vld [vmem:[%s1925 + $0x18] sm:$0xff]
    %v1930 = vld [vmem:[#allocation12] sm:$0xff]
    %v1931 = vld [vmem:[#allocation12 + $0x8] sm:$0xff]
    %v1932 = vld [vmem:[#allocation12 + $0x10] sm:$0xff]
    %v1933 = vld [vmem:[#allocation12 + $0x18] sm:$0xff]
    %v1934 = vld [vmem:[#allocation12 + $0x20] sm:$0xff]
    %v1935 = vld [vmem:[#allocation12 + $0x28] sm:$0xff]
    %v1936 = vld [vmem:[#allocation12 + $0x30] sm:$0xff]
    %v1937 = vld [vmem:[#allocation12 + $0x38] sm:$0xff]
    %v1938 = vld [vmem:[#allocation12 + $0x40] sm:$0xff]
    %v1939 = vld [vmem:[#allocation12 + $0x48] sm:$0xff]
    %v1940 = vld [vmem:[#allocation12 + $0x50] sm:$0xff]
    %v1941 = vld [vmem:[#allocation12 + $0x58] sm:$0xff]
    %v1942 = vld [vmem:[#allocation12 + $0x60] sm:$0xff]
    %v1943 = vld [vmem:[#allocation12 + $0x68] sm:$0xff]
    %v1944 = vld [vmem:[#allocation12 + $0x70] sm:$0xff]
    %v1945 = vld [vmem:[#allocation12 + $0x78] sm:$0xff]
    %v1946 = vld [vmem:[#allocation12 + $0x80] sm:$0xff]
    %v1947 = vld [vmem:[#allocation12 + $0x88] sm:$0xff]
    %v1948 = vld [vmem:[#allocation12 + $0x90] sm:$0xff]
    %v1949 = vld [vmem:[#allocation12 + $0x98] sm:$0xff]
    %v1950 = vld [vmem:[#allocation12 + $0xa0] sm:$0xff]
    %v1951 = vld [vmem:[#allocation12 + $0xa8] sm:$0xff]
    %v1952 = vld [vmem:[#allocation12 + $0xb0] sm:$0xff]
    %v1953 = vld [vmem:[#allocation12 + $0xb8] sm:$0xff]
    %v1954 = vld [vmem:[#allocation12 + $0xc0] sm:$0xff]
    %v1955 = vld [vmem:[#allocation12 + $0xc8] sm:$0xff]
    %v1956 = vld [vmem:[#allocation12 + $0xd0] sm:$0xff]
    %v1957 = vld [vmem:[#allocation12 + $0xd8] sm:$0xff]
    %v1958 = vld [vmem:[#allocation12 + $0xe0] sm:$0xff]
    %v1959 = vld [vmem:[#allocation12 + $0xe8] sm:$0xff]
    %v1960 = vld [vmem:[#allocation12 + $0xf0] sm:$0xff]
    %v1961 = vld [vmem:[#allocation12 + $0xf8] sm:$0xff]
    %v1962 = vld [vmem:[#allocation12 + $0x100] sm:$0xff]
    %v1963 = vld [vmem:[#allocation12 + $0x108] sm:$0xff]
    %v1964 = vld [vmem:[#allocation12 + $0x110] sm:$0xff]
    %v1965 = vld [vmem:[#allocation12 + $0x118] sm:$0xff]
    %v1966 = vld [vmem:[#allocation12 + $0x120] sm:$0xff]
    %v1967 = vld [vmem:[#allocation12 + $0x128] sm:$0xff]
    %v1968 = vld [vmem:[#allocation12 + $0x130] sm:$0xff]
    %v1969 = vld [vmem:[#allocation12 + $0x138] sm:$0xff]
    %v1970 = vld [vmem:[#allocation12 + $0x140] sm:$0xff]
    %v1971 = vld [vmem:[#allocation12 + $0x148] sm:$0xff]
    %v1972 = vld [vmem:[#allocation12 + $0x150] sm:$0xff]
    %v1973 = vld [vmem:[#allocation12 + $0x158] sm:$0xff]
    %v1974 = vld [vmem:[#allocation12 + $0x160] sm:$0xff]
    %v1975 = vld [vmem:[#allocation12 + $0x168] sm:$0xff]
    %v1976 = vld [vmem:[#allocation12 + $0x170] sm:$0xff]
    %v1977 = vld [vmem:[#allocation12 + $0x178] sm:$0xff]
    %v1978 = vld [vmem:[#allocation12 + $0x180] sm:$0xff]
    %v1979 = vld [vmem:[#allocation12 + $0x188] sm:$0xff]
    %v1980 = vld [vmem:[#allocation12 + $0x190] sm:$0xff]
    %v1981 = vld [vmem:[#allocation12 + $0x198] sm:$0xff]
    %v1982 = vld [vmem:[#allocation12 + $0x1a0] sm:$0xff]
    %v1983 = vld [vmem:[#allocation12 + $0x1a8] sm:$0xff]
    %v1984 = vld [vmem:[#allocation12 + $0x1b0] sm:$0xff]
    %v1985 = vld [vmem:[#allocation12 + $0x1b8] sm:$0xff]
    %v1986 = vld [vmem:[#allocation12 + $0x1c0] sm:$0xff]
    %v1987 = vld [vmem:[#allocation12 + $0x1c8] sm:$0xff]
    %v1988 = vld [vmem:[#allocation12 + $0x1d0] sm:$0xff]
    %v1989 = vld [vmem:[#allocation12 + $0x1d8] sm:$0xff]
    %v1990 = vld [vmem:[#allocation12 + $0x1e0] sm:$0xff]
    %v1991 = vld [vmem:[#allocation12 + $0x1e8] sm:$0xff]
    %v1992 = vld [vmem:[#allocation12 + $0x1f0] sm:$0xff]
    %v1993 = vld [vmem:[#allocation12 + $0x1f8] sm:$0xff]
    %1994 = vmatprep.subr.mxu0 %v1991
    %1995 = vmatpush1.msra.mxu0 %v1990
    %1996 = vmatprep.subr.mxu0 %v1987
    %1997 = vmatpush1.msra.mxu0 %v1986
    %1998 = vmatprep.subr.mxu0 %v1983
    %1999 = vmatpush1.msra.mxu0 %v1982
    %2000 = vmatprep.subr.mxu0 %v1979
    %2001 = vmatpush1.msra.mxu0 %v1978
    %2002 = vmatprep.subr.mxu0 %v1975
    %2003 = vmatpush1.msra.mxu0 %v1974
    %2004 = vmatprep.subr.mxu0 %v1971
    %2005 = vmatpush1.msra.mxu0 %v1970
    %2006 = vmatprep.subr.mxu0 %v1967
    %2007 = vmatpush1.msra.mxu0 %v1966
    %2008 = vmatprep.subr.mxu0 %v1963
    %2009 = vmatpush1.msra.mxu0 %v1962
    %2010 = vmatprep.subr.mxu0 %v1959
    %2011 = vmatpush1.msra.mxu0 %v1958
    %2012 = vmatprep.subr.mxu0 %v1955
    %2013 = vmatpush1.msra.mxu0 %v1954
    %2014 = vmatprep.subr.mxu0 %v1951
    %2015 = vmatpush1.msra.mxu0 %v1950
    %2016 = vmatprep.subr.mxu0 %v1947
    %2017 = vmatpush1.msra.mxu0 %v1946
    %2018 = vmatprep.subr.mxu0 %v1943
    %2019 = vmatpush1.msra.mxu0 %v1942
    %2020 = vmatprep.subr.mxu0 %v1939
    %2021 = vmatpush1.msra.mxu0 %v1938
    %2022 = vmatprep.subr.mxu0 %v1935
    %2023 = vmatpush1.msra.mxu0 %v1934
    %2024 = vmatprep.subr.mxu0 %v1931
    %2025 = vmatpush1.msra.mxu0 %v1930
    %2026 = vmatprep.subr.mxu0 0.0
    %2027 = vmatpush2.msra.mxu0 0.0
    %2028 = vmatprep.subr.mxu0 0.0
    %2029 = vmatpush2.msra.mxu0 0.0
    %2030 = vmatprep.subr.mxu0 0.0
    %2031 = vmatpush2.msra.mxu0 0.0
    %2032 = vmatprep.subr.mxu0 0.0
    %2033 = vmatpush2.msra.mxu0 0.0
    %2034 = vmatprep.subr.mxu0 0.0
    %2035 = vmatpush2.msra.mxu0 0.0
    %2036 = vmatprep.subr.mxu0 0.0
    %2037 = vmatpush2.msra.mxu0 0.0
    %2038 = vmatprep.subr.mxu0 0.0
    %2039 = vmatpush2.msra.mxu0 0.0
    %2040 = vmatprep.subr.mxu0 0.0
    %2041 = vmatpush2.msra.mxu0 0.0
    %2042 = vmatprep.subr.mxu0 0.0
    %2043 = vmatpush2.msra.mxu0 0.0
    %2044 = vmatprep.subr.mxu0 0.0
    %2045 = vmatpush2.msra.mxu0 0.0
    %2046 = vmatprep.subr.mxu0 0.0
    %2047 = vmatpush2.msra.mxu0 0.0
    %2048 = vmatprep.subr.mxu0 0.0
    %2049 = vmatpush2.msra.mxu0 0.0
    %2050 = vmatprep.subr.mxu0 0.0
    %2051 = vmatpush2.msra.mxu0 0.0
    %2052 = vmatprep.subr.mxu0 0.0
    %2053 = vmatpush2.msra.mxu0 0.0
    %2054 = vmatprep.subr.mxu0 0.0
    %2055 = vmatpush2.msra.mxu0 0.0
    %2056 = vmatprep.subr.mxu0 0.0
    %2057 = vmatpush2.msra.mxu0 0.0
    %2058 = vmatprep.mubr.f32.mxu0 0.0
    %2059 = vmatmul.mubr.f32.gmra.mxu0 %v1920
    %v2060 = vpop.f32.mrf.mxu0
    %v2061 = vadd.f32 0.0, %v2060
    %v2062 = vpop.f32.mrf.mxu0
    %v2063 = vadd.f32 0.0, %v2062
    %2064 = vdwg.mxu0
    %2065 = vmatprep.subr.mxu0 %v1993
    %2066 = vmatpush1.msra.mxu0 %v1992
    %2067 = vmatprep.subr.mxu0 %v1989
    %2068 = vmatpush1.msra.mxu0 %v1988
    %2069 = vmatprep.subr.mxu0 %v1985
    %2070 = vmatpush1.msra.mxu0 %v1984
    %2071 = vmatprep.subr.mxu0 %v1981
    %2072 = vmatpush1.msra.mxu0 %v1980
    %2073 = vmatprep.subr.mxu0 %v1977
    %2074 = vmatpush1.msra.mxu0 %v1976
    %2075 = vmatprep.subr.mxu0 %v1973
    %2076 = vmatpush1.msra.mxu0 %v1972
    %2077 = vmatprep.subr.mxu0 %v1969
    %2078 = vmatpush1.msra.mxu0 %v1968
    %2079 = vmatprep.subr.mxu0 %v1965
    %2080 = vmatpush1.msra.mxu0 %v1964
    %2081 = vmatprep.subr.mxu0 %v1961
    %2082 = vmatpush1.msra.mxu0 %v1960
    %2083 = vmatprep.subr.mxu0 %v1957
    %2084 = vmatpush1.msra.mxu0 %v1956
    %2085 = vmatprep.subr.mxu0 %v1953
    %2086 = vmatpush1.msra.mxu0 %v1952
    %2087 = vmatprep.subr.mxu0 %v1949
    %2088 = vmatpush1.msra.mxu0 %v1948
    %2089 = vmatprep.subr.mxu0 %v1945
    %2090 = vmatpush1.msra.mxu0 %v1944
    %2091 = vmatprep.subr.mxu0 %v1941
    %2092 = vmatpush1.msra.mxu0 %v1940
    %2093 = vmatprep.subr.mxu0 %v1937
    %2094 = vmatpush1.msra.mxu0 %v1936
    %2095 = vmatprep.subr.mxu0 %v1933
    %2096 = vmatpush1.msra.mxu0 %v1932
    %2097 = vmatprep.subr.mxu0 0.0
    %2098 = vmatpush2.msra.mxu0 0.0
    %2099 = vmatprep.subr.mxu0 0.0
    %2100 = vmatpush2.msra.mxu0 0.0
    %2101 = vmatprep.subr.mxu0 0.0
    %2102 = vmatpush2.msra.mxu0 0.0
    %2103 = vmatprep.subr.mxu0 0.0
    %2104 = vmatpush2.msra.mxu0 0.0
    %2105 = vmatprep.subr.mxu0 0.0
    %2106 = vmatpush2.msra.mxu0 0.0
    %2107 = vmatprep.subr.mxu0 0.0
    %2108 = vmatpush2.msra.mxu0 0.0
    %2109 = vmatprep.subr.mxu0 0.0
    %2110 = vmatpush2.msra.mxu0 0.0
    %2111 = vmatprep.subr.mxu0 0.0
    %2112 = vmatpush2.msra.mxu0 0.0
    %2113 = vmatprep.subr.mxu0 0.0
    %2114 = vmatpush2.msra.mxu0 0.0
    %2115 = vmatprep.subr.mxu0 0.0
    %2116 = vmatpush2.msra.mxu0 0.0
    %2117 = vmatprep.subr.mxu0 0.0
    %2118 = vmatpush2.msra.mxu0 0.0
    %2119 = vmatprep.subr.mxu0 0.0
    %2120 = vmatpush2.msra.mxu0 0.0
    %2121 = vmatprep.subr.mxu0 0.0
    %2122 = vmatpush2.msra.mxu0 0.0
    %2123 = vmatprep.subr.mxu0 0.0
    %2124 = vmatpush2.msra.mxu0 0.0
    %2125 = vmatprep.subr.mxu0 0.0
    %2126 = vmatpush2.msra.mxu0 0.0
    %2127 = vmatprep.subr.mxu0 0.0
    %2128 = vmatpush2.msra.mxu0 0.0
    %2129 = vmatprep.mubr.f32.mxu0 0.0
    %2130 = vmatmul.mubr.f32.gmra.mxu0 %v1920
    %v2131 = vpop.f32.mrf.mxu0
    %v2132 = vadd.f32 0.0, %v2131
    %v2133 = vpop.f32.mrf.mxu0
    %v2134 = vadd.f32 0.0, %v2133
    %2135 = vdwg.mxu0
    %v2136 = vadd.f32 %v1926, %v2061
    %v2137 = vadd.f32 %v1927, %v2063
    %v2138 = vadd.f32 %v1928, %v2132
    %v2139 = vadd.f32 %v1929, %v2134
    %v2140 = vxor.u32 %v2136, 2147483648
    %v2141 = vmul.f32 %v2140, 1.442695
    %v2142 = vpow.pop %v2141
    %v2143 = vadd.f32 %v2142, 1.0
    %v2144 = vrcp.pop %v2143
    %v2145 = vmul.f32 1.0, %v2144
    %v2146 = vxor.u32 %v2137, 2147483648
    %v2147 = vmul.f32 %v2146, 1.442695
    %v2148 = vpow.pop %v2147
    %v2149 = vadd.f32 %v2148, 1.0
    %v2150 = vrcp.pop %v2149
    %v2151 = vmul.f32 1.0, %v2150
    %v2152 = vtanh.pop %v2138
    %v2153 = vxor.u32 %v2139, 2147483648
    %v2154 = vmul.f32 %v2153, 1.442695
    %v2155 = vpow.pop %v2154
    %v2156 = vadd.f32 %v2155, 1.0
    %v2157 = vrcp.pop %v2156
    %v2158 = vmul.f32 1.0, %v2157
    %v2159 = vmul.f32 %v2151, %v1918
    %v2160 = vmul.f32 %v2145, %v2152
    %v2161 = vadd.f32 %v2159, %v2160
    %v2162 = vtanh.pop %v2161
    %v2163 = vmul.f32 %v2158, %v2162
    %s2164 = scalar_lea.vmem [#allocation3], 48
    %2165 = vst [vmem:[%s2164] sm:$0xff] %v2163
    %s2166 = smul.u32 7, 4
    %s2167 = smul.addr %s2166, 8
    %s2168 = scalar_lea.vmem [#allocation2], %s2167
    %v2169 = vld [vmem:[%s2168] sm:$0xff]
    %v2170 = vld [vmem:[%s2168 + $0x8] sm:$0xff]
    %v2171 = vld [vmem:[%s2168 + $0x10] sm:$0xff]
    %v2172 = vld [vmem:[%s2168 + $0x18] sm:$0xff]
    %v2173 = vld [vmem:[#allocation12] sm:$0xff]
    %v2174 = vld [vmem:[#allocation12 + $0x8] sm:$0xff]
    %v2175 = vld [vmem:[#allocation12 + $0x10] sm:$0xff]
    %v2176 = vld [vmem:[#allocation12 + $0x18] sm:$0xff]
    %v2177 = vld [vmem:[#allocation12 + $0x20] sm:$0xff]
    %v2178 = vld [vmem:[#allocation12 + $0x28] sm:$0xff]
    %v2179 = vld [vmem:[#allocation12 + $0x30] sm:$0xff]
    %v2180 = vld [vmem:[#allocation12 + $0x38] sm:$0xff]
    %v2181 = vld [vmem:[#allocation12 + $0x40] sm:$0xff]
    %v2182 = vld [vmem:[#allocation12 + $0x48] sm:$0xff]
    %v2183 = vld [vmem:[#allocation12 + $0x50] sm:$0xff]
    %v2184 = vld [vmem:[#allocation12 + $0x58] sm:$0xff]
    %v2185 = vld [vmem:[#allocation12 + $0x60] sm:$0xff]
    %v2186 = vld [vmem:[#allocation12 + $0x68] sm:$0xff]
    %v2187 = vld [vmem:[#allocation12 + $0x70] sm:$0xff]
    %v2188 = vld [vmem:[#allocation12 + $0x78] sm:$0xff]
    %v2189 = vld [vmem:[#allocation12 + $0x80] sm:$0xff]
    %v2190 = vld [vmem:[#allocation12 + $0x88] sm:$0xff]
    %v2191 = vld [vmem:[#allocation12 + $0x90] sm:$0xff]
    %v2192 = vld [vmem:[#allocation12 + $0x98] sm:$0xff]
    %v2193 = vld [vmem:[#allocation12 + $0xa0] sm:$0xff]
    %v2194 = vld [vmem:[#allocation12 + $0xa8] sm:$0xff]
    %v2195 = vld [vmem:[#allocation12 + $0xb0] sm:$0xff]
    %v2196 = vld [vmem:[#allocation12 + $0xb8] sm:$0xff]
    %v2197 = vld [vmem:[#allocation12 + $0xc0] sm:$0xff]
    %v2198 = vld [vmem:[#allocation12 + $0xc8] sm:$0xff]
    %v2199 = vld [vmem:[#allocation12 + $0xd0] sm:$0xff]
    %v2200 = vld [vmem:[#allocation12 + $0xd8] sm:$0xff]
    %v2201 = vld [vmem:[#allocation12 + $0xe0] sm:$0xff]
    %v2202 = vld [vmem:[#allocation12 + $0xe8] sm:$0xff]
    %v2203 = vld [vmem:[#allocation12 + $0xf0] sm:$0xff]
    %v2204 = vld [vmem:[#allocation12 + $0xf8] sm:$0xff]
    %v2205 = vld [vmem:[#allocation12 + $0x100] sm:$0xff]
    %v2206 = vld [vmem:[#allocation12 + $0x108] sm:$0xff]
    %v2207 = vld [vmem:[#allocation12 + $0x110] sm:$0xff]
    %v2208 = vld [vmem:[#allocation12 + $0x118] sm:$0xff]
    %v2209 = vld [vmem:[#allocation12 + $0x120] sm:$0xff]
    %v2210 = vld [vmem:[#allocation12 + $0x128] sm:$0xff]
    %v2211 = vld [vmem:[#allocation12 + $0x130] sm:$0xff]
    %v2212 = vld [vmem:[#allocation12 + $0x138] sm:$0xff]
    %v2213 = vld [vmem:[#allocation12 + $0x140] sm:$0xff]
    %v2214 = vld [vmem:[#allocation12 + $0x148] sm:$0xff]
    %v2215 = vld [vmem:[#allocation12 + $0x150] sm:$0xff]
    %v2216 = vld [vmem:[#allocation12 + $0x158] sm:$0xff]
    %v2217 = vld [vmem:[#allocation12 + $0x160] sm:$0xff]
    %v2218 = vld [vmem:[#allocation12 + $0x168] sm:$0xff]
    %v2219 = vld [vmem:[#allocation12 + $0x170] sm:$0xff]
    %v2220 = vld [vmem:[#allocation12 + $0x178] sm:$0xff]
    %v2221 = vld [vmem:[#allocation12 + $0x180] sm:$0xff]
    %v2222 = vld [vmem:[#allocation12 + $0x188] sm:$0xff]
    %v2223 = vld [vmem:[#allocation12 + $0x190] sm:$0xff]
    %v2224 = vld [vmem:[#allocation12 + $0x198] sm:$0xff]
    %v2225 = vld [vmem:[#allocation12 + $0x1a0] sm:$0xff]
    %v2226 = vld [vmem:[#allocation12 + $0x1a8] sm:$0xff]
    %v2227 = vld [vmem:[#allocation12 + $0x1b0] sm:$0xff]
    %v2228 = vld [vmem:[#allocation12 + $0x1b8] sm:$0xff]
    %v2229 = vld [vmem:[#allocation12 + $0x1c0] sm:$0xff]
    %v2230 = vld [vmem:[#allocation12 + $0x1c8] sm:$0xff]
    %v2231 = vld [vmem:[#allocation12 + $0x1d0] sm:$0xff]
    %v2232 = vld [vmem:[#allocation12 + $0x1d8] sm:$0xff]
    %v2233 = vld [vmem:[#allocation12 + $0x1e0] sm:$0xff]
    %v2234 = vld [vmem:[#allocation12 + $0x1e8] sm:$0xff]
    %v2235 = vld [vmem:[#allocation12 + $0x1f0] sm:$0xff]
    %v2236 = vld [vmem:[#allocation12 + $0x1f8] sm:$0xff]
    %2237 = vmatprep.subr.mxu0 %v2234
    %2238 = vmatpush1.msra.mxu0 %v2233
    %2239 = vmatprep.subr.mxu0 %v2230
    %2240 = vmatpush1.msra.mxu0 %v2229
    %2241 = vmatprep.subr.mxu0 %v2226
    %2242 = vmatpush1.msra.mxu0 %v2225
    %2243 = vmatprep.subr.mxu0 %v2222
    %2244 = vmatpush1.msra.mxu0 %v2221
    %2245 = vmatprep.subr.mxu0 %v2218
    %2246 = vmatpush1.msra.mxu0 %v2217
    %2247 = vmatprep.subr.mxu0 %v2214
    %2248 = vmatpush1.msra.mxu0 %v2213
    %2249 = vmatprep.subr.mxu0 %v2210
    %2250 = vmatpush1.msra.mxu0 %v2209
    %2251 = vmatprep.subr.mxu0 %v2206
    %2252 = vmatpush1.msra.mxu0 %v2205
    %2253 = vmatprep.subr.mxu0 %v2202
    %2254 = vmatpush1.msra.mxu0 %v2201
    %2255 = vmatprep.subr.mxu0 %v2198
    %2256 = vmatpush1.msra.mxu0 %v2197
    %2257 = vmatprep.subr.mxu0 %v2194
    %2258 = vmatpush1.msra.mxu0 %v2193
    %2259 = vmatprep.subr.mxu0 %v2190
    %2260 = vmatpush1.msra.mxu0 %v2189
    %2261 = vmatprep.subr.mxu0 %v2186
    %2262 = vmatpush1.msra.mxu0 %v2185
    %2263 = vmatprep.subr.mxu0 %v2182
    %2264 = vmatpush1.msra.mxu0 %v2181
    %2265 = vmatprep.subr.mxu0 %v2178
    %2266 = vmatpush1.msra.mxu0 %v2177
    %2267 = vmatprep.subr.mxu0 %v2174
    %2268 = vmatpush1.msra.mxu0 %v2173
    %2269 = vmatprep.subr.mxu0 0.0
    %2270 = vmatpush2.msra.mxu0 0.0
    %2271 = vmatprep.subr.mxu0 0.0
    %2272 = vmatpush2.msra.mxu0 0.0
    %2273 = vmatprep.subr.mxu0 0.0
    %2274 = vmatpush2.msra.mxu0 0.0
    %2275 = vmatprep.subr.mxu0 0.0
    %2276 = vmatpush2.msra.mxu0 0.0
    %2277 = vmatprep.subr.mxu0 0.0
    %2278 = vmatpush2.msra.mxu0 0.0
    %2279 = vmatprep.subr.mxu0 0.0
    %2280 = vmatpush2.msra.mxu0 0.0
    %2281 = vmatprep.subr.mxu0 0.0
    %2282 = vmatpush2.msra.mxu0 0.0
    %2283 = vmatprep.subr.mxu0 0.0
    %2284 = vmatpush2.msra.mxu0 0.0
    %2285 = vmatprep.subr.mxu0 0.0
    %2286 = vmatpush2.msra.mxu0 0.0
    %2287 = vmatprep.subr.mxu0 0.0
    %2288 = vmatpush2.msra.mxu0 0.0
    %2289 = vmatprep.subr.mxu0 0.0
    %2290 = vmatpush2.msra.mxu0 0.0
    %2291 = vmatprep.subr.mxu0 0.0
    %2292 = vmatpush2.msra.mxu0 0.0
    %2293 = vmatprep.subr.mxu0 0.0
    %2294 = vmatpush2.msra.mxu0 0.0
    %2295 = vmatprep.subr.mxu0 0.0
    %2296 = vmatpush2.msra.mxu0 0.0
    %2297 = vmatprep.subr.mxu0 0.0
    %2298 = vmatpush2.msra.mxu0 0.0
    %2299 = vmatprep.subr.mxu0 0.0
    %2300 = vmatpush2.msra.mxu0 0.0
    %2301 = vmatprep.mubr.f32.mxu0 0.0
    %2302 = vmatmul.mubr.f32.gmra.mxu0 %v2163
    %v2303 = vpop.f32.mrf.mxu0
    %v2304 = vadd.f32 0.0, %v2303
    %v2305 = vpop.f32.mrf.mxu0
    %v2306 = vadd.f32 0.0, %v2305
    %2307 = vdwg.mxu0
    %2308 = vmatprep.subr.mxu0 %v2236
    %2309 = vmatpush1.msra.mxu0 %v2235
    %2310 = vmatprep.subr.mxu0 %v2232
    %2311 = vmatpush1.msra.mxu0 %v2231
    %2312 = vmatprep.subr.mxu0 %v2228
    %2313 = vmatpush1.msra.mxu0 %v2227
    %2314 = vmatprep.subr.mxu0 %v2224
    %2315 = vmatpush1.msra.mxu0 %v2223
    %2316 = vmatprep.subr.mxu0 %v2220
    %2317 = vmatpush1.msra.mxu0 %v2219
    %2318 = vmatprep.subr.mxu0 %v2216
    %2319 = vmatpush1.msra.mxu0 %v2215
    %2320 = vmatprep.subr.mxu0 %v2212
    %2321 = vmatpush1.msra.mxu0 %v2211
    %2322 = vmatprep.subr.mxu0 %v2208
    %2323 = vmatpush1.msra.mxu0 %v2207
    %2324 = vmatprep.subr.mxu0 %v2204
    %2325 = vmatpush1.msra.mxu0 %v2203
    %2326 = vmatprep.subr.mxu0 %v2200
    %2327 = vmatpush1.msra.mxu0 %v2199
    %2328 = vmatprep.subr.mxu0 %v2196
    %2329 = vmatpush1.msra.mxu0 %v2195
    %2330 = vmatprep.subr.mxu0 %v2192
    %2331 = vmatpush1.msra.mxu0 %v2191
    %2332 = vmatprep.subr.mxu0 %v2188
    %2333 = vmatpush1.msra.mxu0 %v2187
    %2334 = vmatprep.subr.mxu0 %v2184
    %2335 = vmatpush1.msra.mxu0 %v2183
    %2336 = vmatprep.subr.mxu0 %v2180
    %2337 = vmatpush1.msra.mxu0 %v2179
    %2338 = vmatprep.subr.mxu0 %v2176
    %2339 = vmatpush1.msra.mxu0 %v2175
    %2340 = vmatprep.subr.mxu0 0.0
    %2341 = vmatpush2.msra.mxu0 0.0
    %2342 = vmatprep.subr.mxu0 0.0
    %2343 = vmatpush2.msra.mxu0 0.0
    %2344 = vmatprep.subr.mxu0 0.0
    %2345 = vmatpush2.msra.mxu0 0.0
    %2346 = vmatprep.subr.mxu0 0.0
    %2347 = vmatpush2.msra.mxu0 0.0
    %2348 = vmatprep.subr.mxu0 0.0
    %2349 = vmatpush2.msra.mxu0 0.0
    %2350 = vmatprep.subr.mxu0 0.0
    %2351 = vmatpush2.msra.mxu0 0.0
    %2352 = vmatprep.subr.mxu0 0.0
    %2353 = vmatpush2.msra.mxu0 0.0
    %2354 = vmatprep.subr.mxu0 0.0
    %2355 = vmatpush2.msra.mxu0 0.0
    %2356 = vmatprep.subr.mxu0 0.0
    %2357 = vmatpush2.msra.mxu0 0.0
    %2358 = vmatprep.subr.mxu0 0.0
    %2359 = vmatpush2.msra.mxu0 0.0
    %2360 = vmatprep.subr.mxu0 0.0
    %2361 = vmatpush2.msra.mxu0 0.0
    %2362 = vmatprep.subr.mxu0 0.0
    %2363 = vmatpush2.msra.mxu0 0.0
    %2364 = vmatprep.subr.mxu0 0.0
    %2365 = vmatpush2.msra.mxu0 0.0
    %2366 = vmatprep.subr.mxu0 0.0
    %2367 = vmatpush2.msra.mxu0 0.0
    %2368 = vmatprep.subr.mxu0 0.0
    %2369 = vmatpush2.msra.mxu0 0.0
    %2370 = vmatprep.subr.mxu0 0.0
    %2371 = vmatpush2.msra.mxu0 0.0
    %2372 = vmatprep.mubr.f32.mxu0 0.0
    %2373 = vmatmul.mubr.f32.gmra.mxu0 %v2163
    %v2374 = vpop.f32.mrf.mxu0
    %v2375 = vadd.f32 0.0, %v2374
    %v2376 = vpop.f32.mrf.mxu0
    %v2377 = vadd.f32 0.0, %v2376
    %2378 = vdwg.mxu0
    %v2379 = vadd.f32 %v2169, %v2304
    %v2380 = vadd.f32 %v2170, %v2306
    %v2381 = vadd.f32 %v2171, %v2375
    %v2382 = vadd.f32 %v2172, %v2377
    %v2383 = vxor.u32 %v2379, 2147483648
    %v2384 = vmul.f32 %v2383, 1.442695
    %v2385 = vpow.pop %v2384
    %v2386 = vadd.f32 %v2385, 1.0
    %v2387 = vrcp.pop %v2386
    %v2388 = vmul.f32 1.0, %v2387
    %v2389 = vxor.u32 %v2380, 2147483648
    %v2390 = vmul.f32 %v2389, 1.442695
    %v2391 = vpow.pop %v2390
    %v2392 = vadd.f32 %v2391, 1.0
    %v2393 = vrcp.pop %v2392
    %v2394 = vmul.f32 1.0, %v2393
    %v2395 = vtanh.pop %v2381
    %v2396 = vxor.u32 %v2382, 2147483648
    %v2397 = vmul.f32 %v2396, 1.442695
    %v2398 = vpow.pop %v2397
    %v2399 = vadd.f32 %v2398, 1.0
    %v2400 = vrcp.pop %v2399
    %v2401 = vmul.f32 1.0, %v2400
    %v2402 = vmul.f32 %v2394, %v2161
    %v2403 = vmul.f32 %v2388, %v2395
    %v2404 = vadd.f32 %v2402, %v2403
    %v2405 = vtanh.pop %v2404
    %v2406 = vmul.f32 %v2401, %v2405
    %s2407 = scalar_lea.vmem [#allocation3], 56
    %2408 = vst [vmem:[%s2407] sm:$0xff] %v2406
    %2409 = vst [vmem:[#allocation16] sm:$0xff] %v2406
    %2410 = vst [vmem:[#allocation18] sm:$0xff] %v2404
    %v2411 = vld [vmem:[#allocation3] sm:$0xff]
    %v2412 = vld [vmem:[#allocation3 + $0x8] sm:$0xff]
    %v2413 = vld [vmem:[#allocation3 + $0x10] sm:$0xff]
    %v2414 = vld [vmem:[#allocation3 + $0x18] sm:$0xff]
    %v2415 = vld [vmem:[#allocation3 + $0x20] sm:$0xff]
    %v2416 = vld [vmem:[#allocation3 + $0x28] sm:$0xff]
    %v2417 = vld [vmem:[#allocation3 + $0x30] sm:$0xff]
    %v2418 = vld [vmem:[#allocation3 + $0x38] sm:$0xff]
    %v2419 = vld [vmem:[#allocation13] sm:$0xff]
    %v2420 = vld [vmem:[#allocation13 + $0x8] sm:$0xff]
    %v2421 = vld [vmem:[#allocation13 + $0x10] sm:$0xff]
    %v2422 = vld [vmem:[#allocation13 + $0x18] sm:$0xff]
    %v2423 = vld [vmem:[#allocation13 + $0x20] sm:$0xff]
    %v2424 = vld [vmem:[#allocation13 + $0x28] sm:$0xff]
    %v2425 = vld [vmem:[#allocation13 + $0x30] sm:$0xff]
    %v2426 = vld [vmem:[#allocation13 + $0x38] sm:$0xff]
    %v2427 = vld [vmem:[#allocation13 + $0x40] sm:$0xff]
    %v2428 = vld [vmem:[#allocation13 + $0x48] sm:$0xff]
    %v2429 = vld [vmem:[#allocation13 + $0x50] sm:$0xff]
    %v2430 = vld [vmem:[#allocation13 + $0x58] sm:$0xff]
    %v2431 = vld [vmem:[#allocation13 + $0x60] sm:$0xff]
    %v2432 = vld [vmem:[#allocation13 + $0x68] sm:$0xff]
    %v2433 = vld [vmem:[#allocation13 + $0x70] sm:$0xff]
    %v2434 = vld [vmem:[#allocation13 + $0x78] sm:$0xff]
    %v2435 = vld [vmem:[%s7] sm:$0x1]
    %v2437 = vlaneseq
    %v2438 = vshrl.u32 %v2437, 7
    %v2439 = vsub.s32 0, %v2438
    %v2440 = vrot.slane %v2435, %v2439
    %2442 = vmatprep.subr.mxu0 0.0
    %2443 = vmatpush1.msra.mxu0 %v2434
    %2444 = vmatprep.subr.mxu0 0.0
    %2445 = vmatpush1.msra.mxu0 %v2433
    %2446 = vmatprep.subr.mxu0 0.0
    %2447 = vmatpush1.msra.mxu0 %v2432
    %2448 = vmatprep.subr.mxu0 0.0
    %2449 = vmatpush1.msra.mxu0 %v2431
    %2450 = vmatprep.subr.mxu0 0.0
    %2451 = vmatpush1.msra.mxu0 %v2430
    %2452 = vmatprep.subr.mxu0 0.0
    %2453 = vmatpush1.msra.mxu0 %v2429
    %2454 = vmatprep.subr.mxu0 0.0
    %2455 = vmatpush1.msra.mxu0 %v2428
    %2456 = vmatprep.subr.mxu0 0.0
    %2457 = vmatpush1.msra.mxu0 %v2427
    %2458 = vmatprep.subr.mxu0 0.0
    %2459 = vmatpush1.msra.mxu0 %v2426
    %2460 = vmatprep.subr.mxu0 0.0
    %2461 = vmatpush1.msra.mxu0 %v2425
    %2462 = vmatprep.subr.mxu0 0.0
    %2463 = vmatpush1.msra.mxu0 %v2424
    %2464 = vmatprep.subr.mxu0 0.0
    %2465 = vmatpush1.msra.mxu0 %v2423
    %2466 = vmatprep.subr.mxu0 0.0
    %2467 = vmatpush1.msra.mxu0 %v2422
    %2468 = vmatprep.subr.mxu0 0.0
    %2469 = vmatpush1.msra.mxu0 %v2421
    %2470 = vmatprep.subr.mxu0 0.0
    %2471 = vmatpush1.msra.mxu0 %v2420
    %2472 = vmatprep.subr.mxu0 0.0
    %2473 = vmatpush1.msra.mxu0 %v2419
    %2474 = vmatprep.subr.mxu0 0.0
    %2475 = vmatpush2.msra.mxu0 0.0
    %2476 = vmatprep.subr.mxu0 0.0
    %2477 = vmatpush2.msra.mxu0 0.0
    %2478 = vmatprep.subr.mxu0 0.0
    %2479 = vmatpush2.msra.mxu0 0.0
    %2480 = vmatprep.subr.mxu0 0.0
    %2481 = vmatpush2.msra.mxu0 0.0
    %2482 = vmatprep.subr.mxu0 0.0
    %2483 = vmatpush2.msra.mxu0 0.0
    %2484 = vmatprep.subr.mxu0 0.0
    %2485 = vmatpush2.msra.mxu0 0.0
    %2486 = vmatprep.subr.mxu0 0.0
    %2487 = vmatpush2.msra.mxu0 0.0
    %2488 = vmatprep.subr.mxu0 0.0
    %2489 = vmatpush2.msra.mxu0 0.0
    %2490 = vmatprep.subr.mxu0 0.0
    %2491 = vmatpush2.msra.mxu0 0.0
    %2492 = vmatprep.subr.mxu0 0.0
    %2493 = vmatpush2.msra.mxu0 0.0
    %2494 = vmatprep.subr.mxu0 0.0
    %2495 = vmatpush2.msra.mxu0 0.0
    %2496 = vmatprep.subr.mxu0 0.0
    %2497 = vmatpush2.msra.mxu0 0.0
    %2498 = vmatprep.subr.mxu0 0.0
    %2499 = vmatpush2.msra.mxu0 0.0
    %2500 = vmatprep.subr.mxu0 0.0
    %2501 = vmatpush2.msra.mxu0 0.0
    %2502 = vmatprep.subr.mxu0 0.0
    %2503 = vmatpush2.msra.mxu0 0.0
    %2504 = vmatprep.subr.mxu0 0.0
    %2505 = vmatpush2.msra.mxu0 0.0
    %2506 = vmatprep.mubr.f32.mxu0 0.0
    %2507 = vmatmul.mubr.f32.gmra.mxu0 %v2411
    %v2508 = vpop.f32.mrf.mxu0
    %v2509 = vadd.f32 %v2440, %v2508
    %v2510 = vpop.f32.mrf.mxu0
    %2511 = vmatprep.mubr.f32.mxu0 0.0
    %2512 = vmatmul.mubr.f32.gmra.mxu0 %v2412
    %v2513 = vpop.f32.mrf.mxu0
    %v2514 = vadd.f32 %v2440, %v2513
    %v2515 = vpop.f32.mrf.mxu0
    %2516 = vmatprep.mubr.f32.mxu0 0.0
    %2517 = vmatmul.mubr.f32.gmra.mxu0 %v2413
    %v2518 = vpop.f32.mrf.mxu0
    %v2519 = vadd.f32 %v2440, %v2518
    %v2520 = vpop.f32.mrf.mxu0
    %2521 = vmatprep.mubr.f32.mxu0 0.0
    %2522 = vmatmul.mubr.f32.gmra.mxu0 %v2414
    %v2523 = vpop.f32.mrf.mxu0
    %v2524 = vadd.f32 %v2440, %v2523
    %v2525 = vpop.f32.mrf.mxu0
    %2526 = vmatprep.mubr.f32.mxu0 0.0
    %2527 = vmatmul.mubr.f32.gmra.mxu0 %v2415
    %v2528 = vpop.f32.mrf.mxu0
    %v2529 = vadd.f32 %v2440, %v2528
    %v2530 = vpop.f32.mrf.mxu0
    %2531 = vmatprep.mubr.f32.mxu0 0.0
    %2532 = vmatmul.mubr.f32.gmra.mxu0 %v2416
    %v2533 = vpop.f32.mrf.mxu0
    %v2534 = vadd.f32 %v2440, %v2533
    %v2535 = vpop.f32.mrf.mxu0
    %2536 = vmatprep.mubr.f32.mxu0 0.0
    %2537 = vmatmul.mubr.f32.gmra.mxu0 %v2417
    %v2538 = vpop.f32.mrf.mxu0
    %v2539 = vadd.f32 %v2440, %v2538
    %v2540 = vpop.f32.mrf.mxu0
    %2541 = vmatprep.mubr.f32.mxu0 0.0
    %2542 = vmatmul.mubr.f32.gmra.mxu0 %v2418
    %v2543 = vpop.f32.mrf.mxu0
    %v2544 = vadd.f32 %v2440, %v2543
    %v2545 = vpop.f32.mrf.mxu0
    %2546 = vdwg.mxu0
    %2547 = vst [vmem:[#allocation15] sm:$0xff] %v2509
    %2548 = vst [vmem:[#allocation15 + $0x8] sm:$0xff] %v2514
    %2549 = vst [vmem:[#allocation15 + $0x10] sm:$0xff] %v2519
    %2550 = vst [vmem:[#allocation15 + $0x18] sm:$0xff] %v2524
    %2551 = vst [vmem:[#allocation15 + $0x20] sm:$0xff] %v2529
    %2552 = vst [vmem:[#allocation15 + $0x28] sm:$0xff] %v2534
    %2553 = vst [vmem:[#allocation15 + $0x30] sm:$0xff] %v2539
    %2554 = vst [vmem:[#allocation15 + $0x38] sm:$0xff] %v2544
    // Predicated region
    $region58: #{tpu_custom_call.1} parent=1 // pred_check
      _
    $region59: #{tpu_custom_call.1} parent=1 // pred_check_branch
      %2556 = sbr.rel (0) target = $region61
    $region60: #{tpu_custom_call.1} parent=1 // pred_region
      %s2558 = ssub.s32 1024, 1024
      %2559 = vsyncadd [#allocation6], %s2558
      %s2560 = sshll.u32 [#allocation15], 4
      %s2561 = int_to_ptr.vmem [resolvable:$true] %s2560
      %2566 = dma.vmem_to_hbm [thread:$0]  %s2561, 1024, %s8, [#allocation6], 128, 128, 8
    $region61: #{tpu_custom_call.1} parent=1 // pred_fallthru
      _
    // Predicated region
    $region62: #{tpu_custom_call.1} parent=1 // pred_check
      _
    $region63: #{tpu_custom_call.1} parent=1 // pred_check_branch
      %2568 = sbr.rel (0) target = $region65
    $region64: #{tpu_custom_call.1} parent=1 // pred_region
      %s2570 = ssub.s32 128, 128
      %2571 = vsyncadd [#allocation17], %s2570
      %s2573 = sshll.u32 [#allocation16], 4
      %s2574 = int_to_ptr.vmem [resolvable:$true] %s2573
      %2576 = dma.vmem_to_hbm [thread:$0]  %s2574, 128, %s9, [#allocation17]
    $region65: #{tpu_custom_call.1} parent=1 // pred_fallthru
      _
    // Predicated region
    $region66: #{tpu_custom_call.1} parent=1 // pred_check
      _
    $region67: #{tpu_custom_call.1} parent=1 // pred_check_branch
      %2578 = sbr.rel (0) target = $region69
    $region68: #{tpu_custom_call.1} parent=1 // pred_region
      %s2580 = ssub.s32 128, 128
      %2581 = vsyncadd [#allocation17], %s2580
      %s2583 = sshll.u32 [#allocation18], 4
      %s2584 = int_to_ptr.vmem [resolvable:$true] %s2583
      %2586 = dma.vmem_to_hbm [thread:$0]  %s2584, 128, %s10, [#allocation17]
    $region69: #{tpu_custom_call.1} parent=1 // pred_fallthru
      _
    // Predicated region
    $region70: #{tpu_custom_call.1} parent=1 // pred_check
      _
    $region71: #{tpu_custom_call.1} parent=1 // pred_check_branch
      %2588 = sbr.rel (0) target = $region73
    $region72: #{tpu_custom_call.1} parent=1 // pred_region
      %2589 = dma.done [#allocation6], 1024
    $region73: #{tpu_custom_call.1} parent=1 // pred_fallthru
      _
    // Predicated region
    $region74: #{tpu_custom_call.1} parent=1 // pred_check
      _
    $region75: #{tpu_custom_call.1} parent=1 // pred_check_branch
      %2591 = sbr.rel (0) target = $region77
    $region76: #{tpu_custom_call.1} parent=1 // pred_region
      %2592 = dma.done [#allocation17], 128
    $region77: #{tpu_custom_call.1} parent=1 // pred_fallthru
      _
    // Predicated region
    $region78: #{tpu_custom_call.1} parent=1 // pred_check
      _
    $region79: #{tpu_custom_call.1} parent=1 // pred_check_branch
      %2594 = sbr.rel (0) target = $region81
    $region80: #{tpu_custom_call.1} parent=1 // pred_region
      %2595 = dma.done [#allocation17], 128
    $region81: #{tpu_custom_call.1} parent=1 // pred_fallthru
      _
    %2596 = vsyncpa [#allocation5], 1
    %2597 = vsyncpa [#allocation8], 1
    %2598 = vsyncpa [#allocation11], 1
    %2599 = vsyncpa [#allocation14], 1
    %2600 = vsyncpa [#allocation6], 1
    %2601 = vsyncpa [#allocation17], 1

</llo_original>
